<compile_context>
chip_gen: v6e
topology: v6e:2x2x1
jax: 0.10.0
libtpu: 0.0.40
codegen_flags: <defaults>
</compile_context>

<pallas_src>
import jax
import jax.numpy as jnp
import numpy as np
from jax import lax
from jax.experimental import pallas as pl
from jax.experimental.pallas import tpu as pltpu


# ----------------------------------------------------------------------------
# Shared recurrence body
# ----------------------------------------------------------------------------
def _dlstm_recurrence(x_ref, w_ref, u_ref, b_ref, gx_ref, hs_ref):
    """DLSTM recurrence for one batch tile.

    x_ref : (T, TB, Din)    input (bf16)
    w_ref : (Din, 5*Hp)     bf16, column blocks [i|f|o|g|d] each Hp wide
    u_ref : (Hp, 4*Hp)      bf16, column blocks [i|f|o|g]
    b_ref : (1, 4*Hp)       f32
    gx_ref: (T, TB, 4*Hp)   bf16 VMEM scratch (precomputed input gates)
    hs_ref: (T, TB, Hp)     bf16 hidden sequence (output or scratch)
    """
    T, TB, Din = x_ref.shape
    Hp = hs_ref.shape[-1]
    H4 = 4 * Hp

    # ---- Phase 1: single fused input matmul  x @ [Wi|Wf|Wo|Wg|Wd] ----
    x_b = x_ref[...].astype(jnp.bfloat16)
    y = jnp.dot(x_b.reshape(T * TB, Din), w_ref[...],
                preferred_element_type=jnp.float32).reshape(T, TB, 5 * Hp)
    gates = y[..., :H4] + b_ref[...]            # (T, TB, 4Hp) f32
    yd = y[..., H4:]                            # (T, TB, Hp)  f32  == x @ Wd

    # Single-pass bf16 store of gx.  The o-gate block (cols [2Hp:3Hp]) receives
    # (x_t - x_{t-1}) @ Wd formed in output space as yd[t] - yd[t-1]; row t=0
    # gets no contribution (matches the torch zeros_like branch).
    gx_ref[:, :, :2 * Hp] = gates[..., :2 * Hp].astype(jnp.bfloat16)
    gx_ref[:, :, 3 * Hp:] = gates[..., 3 * Hp:].astype(jnp.bfloat16)
    gx_ref[0, :, 2 * Hp:3 * Hp] = gates[0, :, 2 * Hp:3 * Hp].astype(jnp.bfloat16)
    if T > 1:
        gx_ref[1:, :, 2 * Hp:3 * Hp] = (
            gates[1:, :, 2 * Hp:3 * Hp] + (yd[1:] - yd[:-1])
        ).astype(jnp.bfloat16)

    # ---- Phase 2: sequential recurrence; only h @ U on the critical path ----
    U = u_ref[...]                              # loop-invariant, VMEM resident

    def step(t, carry):
        h, c = carry
        g = gx_ref[t].astype(jnp.float32) + jnp.dot(
            h.astype(jnp.bfloat16), U, preferred_element_type=jnp.float32)
        s = jax.nn.sigmoid(g[:, :3 * Hp])       # [i|f|o] in one contiguous slab
        i_t = s[:, :Hp]
        f_t = s[:, Hp:2 * Hp]
        o_t = s[:, 2 * Hp:]
        g_t = jnp.tanh(g[:, 3 * Hp:])
        c = f_t * c + i_t * g_t
        h = o_t * jnp.tanh(c)
        hs_ref[t] = h.astype(hs_ref.dtype)
        return (h, c)

    carry = (jnp.zeros((TB, Hp), jnp.float32),
             jnp.zeros((TB, Hp), jnp.float32))
    if T <= 32:
        # Full unroll for small static T: lets the scheduler overlap step t+1's
        # h@U with step t's EUP sigmoid/tanh and VPU elementwise.
        for t in range(T):
            carry = step(t, carry)
    else:
        carry = lax.fori_loop(0, T, step, carry, unroll=8)
    return carry


# ----------------------------------------------------------------------------
# Pallas kernels
# ----------------------------------------------------------------------------
def dlstm_layer_kernel(x_ref, w_ref, u_ref, b_ref, hs_ref, gx_ref):
    _dlstm_recurrence(x_ref, w_ref, u_ref, b_ref, gx_ref, hs_ref)


def dlstm_last_layer_kernel(x_ref, w_ref, u_ref, b_ref, pw_ref, pb_ref,
                            out_ref, hs_ref, gx_ref):
    """Last DLSTM layer with the output projection fused into the epilogue.

    hs_ref is VMEM scratch: the last hidden sequence never hits HBM.
    """
    _dlstm_recurrence(x_ref, w_ref, u_ref, b_ref, gx_ref, hs_ref)
    T, TB, Hp = hs_ref.shape
    C = out_ref.shape[-1]
    proj = jnp.dot(hs_ref[...].reshape(T * TB, Hp), pw_ref[...],
                   preferred_element_type=jnp.float32) + pb_ref[...]
    # TODO(synk): for a lane-dense store write a (C, T, TB) slab when TB >= 128;
    # with tiny c_out the masked stores here are negligible.
    out_ref[...] = proj.reshape(T, TB, C)


# ----------------------------------------------------------------------------
# Parameter preparation (hoisted out of the jitted forward; done once)
# ----------------------------------------------------------------------------
def _round_up(x, m):
    return (x + m - 1) // m * m


def _reorder_pad_gates(w, H, Hp):
    """Reorder last-dim gate blocks [i|f|g|o] -> [i|f|o|g] and pad H -> Hp."""
    lead = w.shape[:-1]
    w4 = w.reshape(lead + (4, H))
    w4 = jnp.stack([w4[..., 0, :], w4[..., 1, :], w4[..., 3, :], w4[..., 2, :]],
                   axis=-2)
    w4 = jnp.pad(w4, [(0, 0)] * len(lead) + [(0, 0), (0, Hp - H)])
    return w4.reshape(lead + (4 * Hp,))


def _prep_layer(layer, H, Hp, din_pad):
    """Pad / reorder / cast one layer's parameters to the kernel layout."""
    W, U, b, Wd = layer["W"], layer["U"], layer["b"], layer["Wd"]
    Wg = _reorder_pad_gates(W, H, Hp)                       # (din, 4Hp)
    Wd_p = jnp.pad(Wd, ((0, 0), (0, Hp - H)))               # (din, Hp)
    Wa = jnp.concatenate([Wg, Wd_p], axis=1)                # (din, 5Hp) fused
    Wa = jnp.pad(Wa, ((0, din_pad - Wa.shape[0]), (0, 0))).astype(jnp.bfloat16)
    Up = _reorder_pad_gates(U, H, Hp)
    Up = jnp.pad(Up, ((0, Hp - H), (0, 0))).astype(jnp.bfloat16)
    bp = _reorder_pad_gates(b.reshape(1, -1), H, Hp).astype(jnp.float32)
    return {"Wa": Wa, "U": Up, "b": bp}


def prepare_params(params):
    """One-time weight padding / reordering / bf16 casts (outside jit)."""
    H = params["dlstm"][0]["Wd"].shape[1]
    Hp = _round_up(H, 128)
    layers = []
    for i, layer in enumerate(params["dlstm"]):
        din = layer["W"].shape[0]
        din_pad = din if i == 0 else Hp
        layers.append(_prep_layer(layer, H, Hp, din_pad))
    C = params["proj_w"].shape[1]
    pw = jnp.pad(params["proj_w"], ((0, Hp - H), (0, 0))).astype(jnp.bfloat16)
    pb = params["proj_b"].reshape(1, C).astype(jnp.float32)
    return {"layers": layers, "pw": pw, "pb": pb}


# ----------------------------------------------------------------------------
# Wrapper helpers
# ----------------------------------------------------------------------------
def _pick_tb(B, Hp):
    """Batch tile / padded batch.  >=2 tiles when possible (megacore / v7x 2nd TC),
    multiple of 16 (bf16 sublane packing) unless the tile equals the full batch,
    capped at 64 when Hp >= 256 (v5e vreg pressure)."""
    cap = 64 if Hp >= 256 else 128
    bp8 = _round_up(max(B, 1), 8)
    if bp8 <= 16:
        return bp8, bp8                       # single tile == full padded batch
    tb = min(cap, _round_up((bp8 + 1) // 2, 16))
    bp = _round_up(bp8, tb)
    return tb, bp


def _vmem_limit(T, TB, Din, x_bytes, Hp, out_elems, out_bytes, extra=0):
    b = 0
    b += 2 * T * TB * Din * x_bytes           # x block (double-buffered)
    b += 2 * T * TB * out_elems * out_bytes   # output block (double-buffered)
    b += 2 * Din * 5 * Hp * 2                 # fused W (bf16, double-buffered)
    b += 2 * Hp * 4 * Hp * 2                  # U (bf16)
    b += 2 * 4 * Hp * 4                       # bias
    b += T * TB * 4 * Hp * 2                  # gx scratch (bf16)
    b += T * TB * 5 * Hp * 4                  # transient f32 matmul output
    b += extra
    b = int(b * 1.25) + (2 << 20)
    return max(32 << 20, min(b, 96 << 20))


def dlstm_layer_tm(x_tbd, layer, Hp, TB):
    """One DLSTM layer, time-major. x_tbd: (T, Bp, Din) -> hs (T, Bp, Hp) bf16."""
    T, Bp, Din = x_tbd.shape
    Wa, U, b = layer["Wa"], layer["U"], layer["b"]
    vmem = _vmem_limit(T, TB, Din, x_tbd.dtype.itemsize, Hp, Hp, 2)
    hs = pl.pallas_call(
        dlstm_layer_kernel,
        out_shape=jax.ShapeDtypeStruct((T, Bp, Hp), jnp.bfloat16),
        grid=(Bp // TB,),
        in_specs=[
            pl.BlockSpec((T, TB, Din), lambda i: (0, i, 0)),      # x (batch-tiled)
            pl.BlockSpec((Din, 5 * Hp), lambda i: (0, 0)),        # fused W (resident)
            pl.BlockSpec((Hp, 4 * Hp), lambda i: (0, 0)),         # U (resident)
            pl.BlockSpec((1, 4 * Hp), lambda i: (0, 0)),          # b
        ],
        out_specs=pl.BlockSpec((T, TB, Hp), lambda i: (0, i, 0)), # hidden sequence
        scratch_shapes=[pltpu.VMEM((T, TB, 4 * Hp), jnp.bfloat16)],
        compiler_params=pltpu.CompilerParams(
            dimension_semantics=("parallel",), vmem_limit_bytes=vmem),
    )(x_tbd, Wa, U, b)
    return hs


def dlstm_last_layer_tm(x_tbd, layer, pw, pb, Hp, TB):
    """Last DLSTM layer + fused projection. Returns out (T, Bp, C) f32."""
    T, Bp, Din = x_tbd.shape
    Wa, U, b = layer["Wa"], layer["U"], layer["b"]
    C = pw.shape[1]
    extra = T * TB * Hp * 2 + 2 * (Hp * C * 2 + C * 4)
    vmem = _vmem_limit(T, TB, Din, x_tbd.dtype.itemsize, Hp, C, 4, extra)
    out = pl.pallas_call(
        dlstm_last_layer_kernel,
        out_shape=jax.ShapeDtypeStruct((T, Bp, C), jnp.float32),
        grid=(Bp // TB,),
        in_specs=[
            pl.BlockSpec((T, TB, Din), lambda i: (0, i, 0)),      # x (batch-tiled)
            pl.BlockSpec((Din, 5 * Hp), lambda i: (0, 0)),        # fused W
            pl.BlockSpec((Hp, 4 * Hp), lambda i: (0, 0)),         # U
            pl.BlockSpec((1, 4 * Hp), lambda i: (0, 0)),          # b
            pl.BlockSpec((Hp, C), lambda i: (0, 0)),              # proj W
            pl.BlockSpec((1, C), lambda i: (0, 0)),               # proj b
        ],
        out_specs=pl.BlockSpec((T, TB, C), lambda i: (0, i, 0)),  # dec_out (time-major)
        scratch_shapes=[pltpu.VMEM((T, TB, Hp), jnp.bfloat16),    # hidden seq (VMEM only)
                        pltpu.VMEM((T, TB, 4 * Hp), jnp.bfloat16)],
        compiler_params=pltpu.CompilerParams(
            dimension_semantics=("parallel",), vmem_limit_bytes=vmem),
    )(x_tbd, Wa, U, b, pw, pb)
    return out


@jax.jit
def model_forward(prep, x_enc):
    """Equivalent of Model.forward(x_enc, ...). Mark/dec inputs are unused."""
    B, T, _ = x_enc.shape
    Hp = prep["layers"][0]["U"].shape[0]
    TB, Bp = _pick_tb(B, Hp)

    # Single layout change at the model boundary: batch-major -> time-major,
    # bf16 activations, batch padded to the tile.
    x = jnp.transpose(x_enc, (1, 0, 2)).astype(jnp.bfloat16)
    if Bp != B:
        x = jnp.pad(x, ((0, 0), (0, Bp - B), (0, 0)))

    n_layers = len(prep["layers"])
    out_tbc = None
    for li, layer in enumerate(prep["layers"]):
        if li < n_layers - 1:
            x = dlstm_layer_tm(x, layer, Hp, TB)
        else:
            out_tbc = dlstm_last_layer_tm(x, layer, prep["pw"], prep["pb"], Hp, TB)
    return jnp.transpose(out_tbc, (1, 0, 2))[:B]


# ----------------------------------------------------------------------------
# Pure-JAX reference (for correctness check)
# ----------------------------------------------------------------------------
def _ref_dlstm_layer(x, W, U, b, Wd):
    B, T, _ = x.shape
    H = Wd.shape[1]

    def step(carry, t):
        h, c = carry
        x_t = x[:, t, :]
        x_d = jnp.where(t > 0, x_t - x[:, jnp.maximum(t - 1, 0), :], 0.0)
        gates = x_t @ W + h @ U + b
        i_t = jax.nn.sigmoid(gates[:, :H])
        f_t = jax.nn.sigmoid(gates[:, H:2 * H])
        g_t = jnp.tanh(gates[:, 2 * H:3 * H])
        o_t = jax.nn.sigmoid(gates[:, 3 * H:] + x_d @ Wd)
        c_n = f_t * c + i_t * g_t
        h_n = o_t * jnp.tanh(c_n)
        return (h_n, c_n), h_n

    (hT, cT), hs = lax.scan(step,
                            (jnp.zeros((B, H)), jnp.zeros((B, H))),
                            jnp.arange(T))
    return jnp.transpose(hs, (1, 0, 2)), (hT, cT)


def _ref_forward(params, x_enc):
    output = x_enc
    for layer in params["dlstm"]:
        output, _ = _ref_dlstm_layer(output, layer["W"], layer["U"],
                                     layer["b"], layer["Wd"])
    return jnp.einsum("bth,hc->btc", output, params["proj_w"]) + params["proj_b"]


# ----------------------------------------------------------------------------
# Parameter init (deterministic, mirrors module __init__ shapes)
# ----------------------------------------------------------------------------
def init_params(key, enc_in, d_model, e_layers, c_out):
    params = {"dlstm": []}
    std = 1.0 / np.sqrt(d_model)
    for i in range(e_layers):
        din = enc_in if i == 0 else d_model
        key, k1, k2, k3 = jax.random.split(key, 4)
        params["dlstm"].append({
            "W": std * jax.random.normal(k1, (din, d_model * 4), jnp.float32),
            "U": std * jax.random.normal(k2, (d_model, d_model * 4), jnp.float32),
            "b": jnp.zeros((d_model * 4,), jnp.float32),
            "Wd": std * jax.random.normal(k3, (din, d_model), jnp.float32),
        })
    key, kp = jax.random.split(key)
    params["proj_w"] = std * jax.random.normal(kp, (d_model, c_out), jnp.float32)
    params["proj_b"] = jnp.zeros((c_out,), jnp.float32)
    return params


# ----------------------------------------------------------------------------
if __name__ == "__main__":
    # Small config consistent with the module: configs.{enc_in, d_model,
    # e_layers, c_out, seq_len}
    B, T = 2, 8          # batch, seq_len
    enc_in = 8
    d_model = 32
    e_layers = 2
    c_out = 1

    key = jax.random.PRNGKey(0)
    key, kx = jax.random.split(key)
    x_enc = jax.random.normal(kx, (B, T, enc_in), jnp.float32)

    params = init_params(key, enc_in, d_model, e_layers, c_out)
    prep = prepare_params(params)                      # one-time weight prep

    dec_out = model_forward(prep, x_enc)
    dec_out = jax.block_until_ready(dec_out)

    ref = _ref_forward(params, x_enc)
    # Tolerance loosened vs. an fp32-only version: matmuls run in bf16 with f32
    # accumulation and gx / inter-layer activations are stored in bf16.
    np.testing.assert_allclose(np.asarray(dec_out), np.asarray(ref),
                               rtol=5e-2, atol=5e-2)
    assert dec_out.shape == (B, T, c_out)
    print("KERNEL_OK")
</pallas_src>

<mosaic_0001>
module attributes {stable_mosaic.version = 11 : i64} {
  func.func @dlstm_layer_kernel(%arg0: i32, %arg1: memref<8x8x8xbf16, #tpu.memory_space<vmem>>, %arg2: memref<8x640xbf16, #tpu.memory_space<vmem>>, %arg3: memref<128x512xbf16, #tpu.memory_space<vmem>>, %arg4: memref<1x512xf32, #tpu.memory_space<vmem>>, %arg5: memref<8x8x128xbf16, #tpu.memory_space<vmem>>, %arg6: memref<8x8x512xbf16, #tpu.memory_space<vmem>>) attributes {dimension_semantics = [#tpu.dimension_semantics<parallel>], iteration_bounds = array<i64: 1>, scalar_prefetch = 0 : i64, scratch_operands = 1 : i64, tpu.core_type = #tpu.core_type<tc>, window_params = [{transform_indices = @transform_0, window_bounds = array<i64: 8, 8, 8>}, {pipeline_mode = #tpu.pipeline_mode<synchronous>, transform_indices = @transform_1, window_bounds = array<i64: 8, 640>}, {pipeline_mode = #tpu.pipeline_mode<synchronous>, transform_indices = @transform_2, window_bounds = array<i64: 128, 512>}, {pipeline_mode = #tpu.pipeline_mode<synchronous>, transform_indices = @transform_3, window_bounds = array<i64: 1, 512>}, {transform_indices = @transform_4, window_bounds = array<i64: 8, 8, 128>}]} {
    %c0 = arith.constant 0 : index
    %c0_0 = arith.constant 0 : index
    %c0_1 = arith.constant 0 : index
    %0 = vector.load %arg1[%c0, %c0_0, %c0_1] : memref<8x8x8xbf16, #tpu.memory_space<vmem>>, vector<8x8x8xbf16>
    %1 = vector.shape_cast %0 : vector<8x8x8xbf16> to vector<64x8xbf16>
    %c0_2 = arith.constant 0 : index
    %c0_3 = arith.constant 0 : index
    %2 = vector.load %arg2[%c0_2, %c0_3] : memref<8x640xbf16, #tpu.memory_space<vmem>>, vector<8x640xbf16>
    %cst = arith.constant dense<0.000000e+00> : vector<64x640xf32>
    %3 = tpu.matmul %1, %2, %cst {dimension_numbers = #tpu.dot_dimension_numbers<[1], [0], [0], [1], [0, 0, 1, 1], [], []>} : vector<64x8xbf16>, vector<8x640xbf16>, vector<64x640xf32> -> vector<64x640xf32>
    %4 = vector.shape_cast %3 : vector<64x640xf32> to vector<8x8x640xf32>
    %5 = vector.extract_strided_slice %4 {offsets = [0, 0, 0], sizes = [8, 8, 512], strides = [1, 1, 1]} : vector<8x8x640xf32> to vector<8x8x512xf32>
    %c0_4 = arith.constant 0 : index
    %c0_5 = arith.constant 0 : index
    %6 = vector.load %arg4[%c0_4, %c0_5] : memref<1x512xf32, #tpu.memory_space<vmem>>, vector<1x512xf32>
    %7 = vector.shape_cast %6 : vector<1x512xf32> to vector<1x1x512xf32>
    %8 = vector.broadcast %7 : vector<1x1x512xf32> to vector<8x8x512xf32>
    %9 = arith.addf %5, %8 : vector<8x8x512xf32>
    %10 = vector.extract_strided_slice %4 {offsets = [0, 0, 512], sizes = [8, 8, 128], strides = [1, 1, 1]} : vector<8x8x640xf32> to vector<8x8x128xf32>
    %11 = vector.extract_strided_slice %9 {offsets = [0, 0, 0], sizes = [8, 8, 256], strides = [1, 1, 1]} : vector<8x8x512xf32> to vector<8x8x256xf32>
    %12 = arith.truncf %11 : vector<8x8x256xf32> to vector<8x8x256xbf16>
    %c0_6 = arith.constant 0 : index
    %c0_7 = arith.constant 0 : index
    %c0_8 = arith.constant 0 : index
    %13 = vector.load %arg6[%c0_6, %c0_7, %c0_8] : memref<8x8x512xbf16, #tpu.memory_space<vmem>>, vector<8x8x256xbf16>
    tpu.vector_store %arg6[%c0_6, %c0_7, %c0_8], %12 {strides = array<i32>} : memref<8x8x512xbf16, #tpu.memory_space<vmem>>, vector<8x8x256xbf16>,
    %14 = vector.extract_strided_slice %9 {offsets = [0, 0, 384], sizes = [8, 8, 128], strides = [1, 1, 1]} : vector<8x8x512xf32> to vector<8x8x128xf32>
    %15 = arith.truncf %14 : vector<8x8x128xf32> to vector<8x8x128xbf16>
    %c0_9 = arith.constant 0 : index
    %c0_10 = arith.constant 0 : index
    %c384 = arith.constant 384 : index
    %16 = vector.load %arg6[%c0_9, %c0_10, %c384] : memref<8x8x512xbf16, #tpu.memory_space<vmem>>, vector<8x8x128xbf16>
    tpu.vector_store %arg6[%c0_9, %c0_10, %c384], %15 {strides = array<i32>} : memref<8x8x512xbf16, #tpu.memory_space<vmem>>, vector<8x8x128xbf16>,
    %17 = vector.extract_strided_slice %9 {offsets = [0, 0, 256], sizes = [1, 8, 128], strides = [1, 1, 1]} : vector<8x8x512xf32> to vector<1x8x128xf32>
    %18 = vector.shape_cast %17 : vector<1x8x128xf32> to vector<8x128xf32>
    %19 = arith.truncf %18 : vector<8x128xf32> to vector<8x128xbf16>
    %c0_11 = arith.constant 0 : index
    %c0_12 = arith.constant 0 : index
    %c256 = arith.constant 256 : index
    %20 = vector.load %arg6[%c0_11, %c0_12, %c256] : memref<8x8x512xbf16, #tpu.memory_space<vmem>>, vector<1x8x128xbf16>
    %21 = vector.shape_cast %20 : vector<1x8x128xbf16> to vector<8x128xbf16>
    %22 = vector.shape_cast %19 : vector<8x128xbf16> to vector<1x8x128xbf16>
    tpu.vector_store %arg6[%c0_11, %c0_12, %c256], %22 {strides = array<i32>} : memref<8x8x512xbf16, #tpu.memory_space<vmem>>, vector<1x8x128xbf16>,
    %23 = vector.extract_strided_slice %9 {offsets = [1, 0, 256], sizes = [7, 8, 128], strides = [1, 1, 1]} : vector<8x8x512xf32> to vector<7x8x128xf32>
    %24 = vector.extract_strided_slice %10 {offsets = [1, 0, 0], sizes = [7, 8, 128], strides = [1, 1, 1]} : vector<8x8x128xf32> to vector<7x8x128xf32>
    %25 = vector.extract_strided_slice %10 {offsets = [0, 0, 0], sizes = [7, 8, 128], strides = [1, 1, 1]} : vector<8x8x128xf32> to vector<7x8x128xf32>
    %26 = arith.subf %24, %25 : vector<7x8x128xf32>
    %27 = arith.addf %23, %26 : vector<7x8x128xf32>
    %28 = arith.truncf %27 : vector<7x8x128xf32> to vector<7x8x128xbf16>
    %c1 = arith.constant 1 : index
    %c0_13 = arith.constant 0 : index
    %c256_14 = arith.constant 256 : index
    %29 = vector.load %arg6[%c1, %c0_13, %c256_14] : memref<8x8x512xbf16, #tpu.memory_space<vmem>>, vector<7x8x128xbf16>
    tpu.vector_store %arg6[%c1, %c0_13, %c256_14], %28 {strides = array<i32>} : memref<8x8x512xbf16, #tpu.memory_space<vmem>>, vector<7x8x128xbf16>,
    %c0_15 = arith.constant 0 : index
    %c0_16 = arith.constant 0 : index
    %30 = vector.load %arg3[%c0_15, %c0_16] : memref<128x512xbf16, #tpu.memory_space<vmem>>, vector<128x512xbf16>
    %cst_17 = arith.constant 0.000000e+00 : f32
    %31 = vector.broadcast %cst_17 : f32 to vector<8x128xf32>
    %cst_18 = arith.constant 0.000000e+00 : f32
    %32 = vector.broadcast %cst_18 : f32 to vector<8x128xf32>
    %c0_19 = arith.constant 0 : index
    %c0_20 = arith.constant 0 : index
    %c0_21 = arith.constant 0 : index
    %33 = vector.load %arg6[%c0_19, %c0_20, %c0_21] : memref<8x8x512xbf16, #tpu.memory_space<vmem>>, vector<1x8x512xbf16>
    %34 = vector.shape_cast %33 : vector<1x8x512xbf16> to vector<8x512xbf16>
    %35 = arith.extf %34 : vector<8x512xbf16> to vector<8x512xf32>
    %36 = arith.truncf %31 : vector<8x128xf32> to vector<8x128xbf16>
    %cst_22 = arith.constant dense<0.000000e+00> : vector<8x512xf32>
    %37 = tpu.matmul %36, %30, %cst_22 {dimension_numbers = #tpu.dot_dimension_numbers<[1], [0], [0], [1], [0, 0, 1, 1], [], []>} : vector<8x128xbf16>, vector<128x512xbf16>, vector<8x512xf32> -> vector<8x512xf32>
    %38 = arith.addf %35, %37 : vector<8x512xf32>
    %39 = vector.extract_strided_slice %38 {offsets = [0, 0], sizes = [8, 384], strides = [1, 1]} : vector<8x512xf32> to vector<8x384xf32>
    %40 = arith.negf %39 : vector<8x384xf32>
    %41 = math.exp %40 : vector<8x384xf32>
    %cst_23 = arith.constant 1.000000e+00 : f32
    %42 = vector.broadcast %cst_23 : f32 to vector<8x384xf32>
    %43 = arith.addf %42, %41 : vector<8x384xf32>
    %44 = arith.divf %42, %43 : vector<8x384xf32>
    %45 = vector.extract_strided_slice %44 {offsets = [0, 0], sizes = [8, 128], strides = [1, 1]} : vector<8x384xf32> to vector<8x128xf32>
    %46 = vector.extract_strided_slice %44 {offsets = [0, 128], sizes = [8, 128], strides = [1, 1]} : vector<8x384xf32> to vector<8x128xf32>
    %47 = vector.extract_strided_slice %44 {offsets = [0, 256], sizes = [8, 128], strides = [1, 1]} : vector<8x384xf32> to vector<8x128xf32>
    %48 = vector.extract_strided_slice %38 {offsets = [0, 384], sizes = [8, 128], strides = [1, 1]} : vector<8x512xf32> to vector<8x128xf32>
    %49 = math.tanh %48 : vector<8x128xf32>
    %50 = arith.mulf %46, %32 : vector<8x128xf32>
    %51 = arith.mulf %45, %49 : vector<8x128xf32>
    %52 = arith.addf %50, %51 : vector<8x128xf32>
    %53 = math.tanh %52 : vector<8x128xf32>
    %54 = arith.mulf %47, %53 : vector<8x128xf32>
    %55 = arith.truncf %54 : vector<8x128xf32> to vector<8x128xbf16>
    %c0_24 = arith.constant 0 : index
    %c0_25 = arith.constant 0 : index
    %c0_26 = arith.constant 0 : index
    %56 = vector.load %arg5[%c0_24, %c0_25, %c0_26] : memref<8x8x128xbf16, #tpu.memory_space<vmem>>, vector<1x8x128xbf16>
    %57 = vector.shape_cast %56 : vector<1x8x128xbf16> to vector<8x128xbf16>
    %58 = vector.shape_cast %55 : vector<8x128xbf16> to vector<1x8x128xbf16>
    tpu.vector_store %arg5[%c0_24, %c0_25, %c0_26], %58 {strides = array<i32>} : memref<8x8x128xbf16, #tpu.memory_space<vmem>>, vector<1x8x128xbf16>,
    %c1_27 = arith.constant 1 : index
    %c0_28 = arith.constant 0 : index
    %c0_29 = arith.constant 0 : index
    %59 = vector.load %arg6[%c1_27, %c0_28, %c0_29] : memref<8x8x512xbf16, #tpu.memory_space<vmem>>, vector<1x8x512xbf16>
    %60 = vector.shape_cast %59 : vector<1x8x512xbf16> to vector<8x512xbf16>
    %61 = arith.extf %60 : vector<8x512xbf16> to vector<8x512xf32>
    %62 = arith.truncf %54 : vector<8x128xf32> to vector<8x128xbf16>
    %cst_30 = arith.constant dense<0.000000e+00> : vector<8x512xf32>
    %63 = tpu.matmul %62, %30, %cst_30 {dimension_numbers = #tpu.dot_dimension_numbers<[1], [0], [0], [1], [0, 0, 1, 1], [], []>} : vector<8x128xbf16>, vector<128x512xbf16>, vector<8x512xf32> -> vector<8x512xf32>
    %64 = arith.addf %61, %63 : vector<8x512xf32>
    %65 = vector.extract_strided_slice %64 {offsets = [0, 0], sizes = [8, 384], strides = [1, 1]} : vector<8x512xf32> to vector<8x384xf32>
    %66 = arith.negf %65 : vector<8x384xf32>
    %67 = math.exp %66 : vector<8x384xf32>
    %cst_31 = arith.constant 1.000000e+00 : f32
    %68 = vector.broadcast %cst_31 : f32 to vector<8x384xf32>
    %69 = arith.addf %68, %67 : vector<8x384xf32>
    %70 = arith.divf %68, %69 : vector<8x384xf32>
    %71 = vector.extract_strided_slice %70 {offsets = [0, 0], sizes = [8, 128], strides = [1, 1]} : vector<8x384xf32> to vector<8x128xf32>
    %72 = vector.extract_strided_slice %70 {offsets = [0, 128], sizes = [8, 128], strides = [1, 1]} : vector<8x384xf32> to vector<8x128xf32>
    %73 = vector.extract_strided_slice %70 {offsets = [0, 256], sizes = [8, 128], strides = [1, 1]} : vector<8x384xf32> to vector<8x128xf32>
    %74 = vector.extract_strided_slice %64 {offsets = [0, 384], sizes = [8, 128], strides = [1, 1]} : vector<8x512xf32> to vector<8x128xf32>
    %75 = math.tanh %74 : vector<8x128xf32>
    %76 = arith.mulf %72, %52 : vector<8x128xf32>
    %77 = arith.mulf %71, %75 : vector<8x128xf32>
    %78 = arith.addf %76, %77 : vector<8x128xf32>
    %79 = math.tanh %78 : vector<8x128xf32>
    %80 = arith.mulf %73, %79 : vector<8x128xf32>
    %81 = arith.truncf %80 : vector<8x128xf32> to vector<8x128xbf16>
    %c1_32 = arith.constant 1 : index
    %c0_33 = arith.constant 0 : index
    %c0_34 = arith.constant 0 : index
    %82 = vector.load %arg5[%c1_32, %c0_33, %c0_34] : memref<8x8x128xbf16, #tpu.memory_space<vmem>>, vector<1x8x128xbf16>
    %83 = vector.shape_cast %82 : vector<1x8x128xbf16> to vector<8x128xbf16>
    %84 = vector.shape_cast %81 : vector<8x128xbf16> to vector<1x8x128xbf16>
    tpu.vector_store %arg5[%c1_32, %c0_33, %c0_34], %84 {strides = array<i32>} : memref<8x8x128xbf16, #tpu.memory_space<vmem>>, vector<1x8x128xbf16>,
    %c2 = arith.constant 2 : index
    %c0_35 = arith.constant 0 : index
    %c0_36 = arith.constant 0 : index
    %85 = vector.load %arg6[%c2, %c0_35, %c0_36] : memref<8x8x512xbf16, #tpu.memory_space<vmem>>, vector<1x8x512xbf16>
    %86 = vector.shape_cast %85 : vector<1x8x512xbf16> to vector<8x512xbf16>
    %87 = arith.extf %86 : vector<8x512xbf16> to vector<8x512xf32>
    %88 = arith.truncf %80 : vector<8x128xf32> to vector<8x128xbf16>
    %cst_37 = arith.constant dense<0.000000e+00> : vector<8x512xf32>
    %89 = tpu.matmul %88, %30, %cst_37 {dimension_numbers = #tpu.dot_dimension_numbers<[1], [0], [0], [1], [0, 0, 1, 1], [], []>} : vector<8x128xbf16>, vector<128x512xbf16>, vector<8x512xf32> -> vector<8x512xf32>
    %90 = arith.addf %87, %89 : vector<8x512xf32>
    %91 = vector.extract_strided_slice %90 {offsets = [0, 0], sizes = [8, 384], strides = [1, 1]} : vector<8x512xf32> to vector<8x384xf32>
    %92 = arith.negf %91 : vector<8x384xf32>
    %93 = math.exp %92 : vector<8x384xf32>
    %cst_38 = arith.constant 1.000000e+00 : f32
    %94 = vector.broadcast %cst_38 : f32 to vector<8x384xf32>
    %95 = arith.addf %94, %93 : vector<8x384xf32>
    %96 = arith.divf %94, %95 : vector<8x384xf32>
    %97 = vector.extract_strided_slice %96 {offsets = [0, 0], sizes = [8, 128], strides = [1, 1]} : vector<8x384xf32> to vector<8x128xf32>
    %98 = vector.extract_strided_slice %96 {offsets = [0, 128], sizes = [8, 128], strides = [1, 1]} : vector<8x384xf32> to vector<8x128xf32>
    %99 = vector.extract_strided_slice %96 {offsets = [0, 256], sizes = [8, 128], strides = [1, 1]} : vector<8x384xf32> to vector<8x128xf32>
    %100 = vector.extract_strided_slice %90 {offsets = [0, 384], sizes = [8, 128], strides = [1, 1]} : vector<8x512xf32> to vector<8x128xf32>
    %101 = math.tanh %100 : vector<8x128xf32>
    %102 = arith.mulf %98, %78 : vector<8x128xf32>
    %103 = arith.mulf %97, %101 : vector<8x128xf32>
    %104 = arith.addf %102, %103 : vector<8x128xf32>
    %105 = math.tanh %104 : vector<8x128xf32>
    %106 = arith.mulf %99, %105 : vector<8x128xf32>
    %107 = arith.truncf %106 : vector<8x128xf32> to vector<8x128xbf16>
    %c2_39 = arith.constant 2 : index
    %c0_40 = arith.constant 0 : index
    %c0_41 = arith.constant 0 : index
    %108 = vector.load %arg5[%c2_39, %c0_40, %c0_41] : memref<8x8x128xbf16, #tpu.memory_space<vmem>>, vector<1x8x128xbf16>
    %109 = vector.shape_cast %108 : vector<1x8x128xbf16> to vector<8x128xbf16>
    %110 = vector.shape_cast %107 : vector<8x128xbf16> to vector<1x8x128xbf16>
    tpu.vector_store %arg5[%c2_39, %c0_40, %c0_41], %110 {strides = array<i32>} : memref<8x8x128xbf16, #tpu.memory_space<vmem>>, vector<1x8x128xbf16>,
    %c3 = arith.constant 3 : index
    %c0_42 = arith.constant 0 : index
    %c0_43 = arith.constant 0 : index
    %111 = vector.load %arg6[%c3, %c0_42, %c0_43] : memref<8x8x512xbf16, #tpu.memory_space<vmem>>, vector<1x8x512xbf16>
    %112 = vector.shape_cast %111 : vector<1x8x512xbf16> to vector<8x512xbf16>
    %113 = arith.extf %112 : vector<8x512xbf16> to vector<8x512xf32>
    %114 = arith.truncf %106 : vector<8x128xf32> to vector<8x128xbf16>
    %cst_44 = arith.constant dense<0.000000e+00> : vector<8x512xf32>
    %115 = tpu.matmul %114, %30, %cst_44 {dimension_numbers = #tpu.dot_dimension_numbers<[1], [0], [0], [1], [0, 0, 1, 1], [], []>} : vector<8x128xbf16>, vector<128x512xbf16>, vector<8x512xf32> -> vector<8x512xf32>
    %116 = arith.addf %113, %115 : vector<8x512xf32>
    %117 = vector.extract_strided_slice %116 {offsets = [0, 0], sizes = [8, 384], strides = [1, 1]} : vector<8x512xf32> to vector<8x384xf32>
    %118 = arith.negf %117 : vector<8x384xf32>
    %119 = math.exp %118 : vector<8x384xf32>
    %cst_45 = arith.constant 1.000000e+00 : f32
    %120 = vector.broadcast %cst_45 : f32 to vector<8x384xf32>
    %121 = arith.addf %120, %119 : vector<8x384xf32>
    %122 = arith.divf %120, %121 : vector<8x384xf32>
    %123 = vector.extract_strided_slice %122 {offsets = [0, 0], sizes = [8, 128], strides = [1, 1]} : vector<8x384xf32> to vector<8x128xf32>
    %124 = vector.extract_strided_slice %122 {offsets = [0, 128], sizes = [8, 128], strides = [1, 1]} : vector<8x384xf32> to vector<8x128xf32>
    %125 = vector.extract_strided_slice %122 {offsets = [0, 256], sizes = [8, 128], strides = [1, 1]} : vector<8x384xf32> to vector<8x128xf32>
    %126 = vector.extract_strided_slice %116 {offsets = [0, 384], sizes = [8, 128], strides = [1, 1]} : vector<8x512xf32> to vector<8x128xf32>
    %127 = math.tanh %126 : vector<8x128xf32>
    %128 = arith.mulf %124, %104 : vector<8x128xf32>
    %129 = arith.mulf %123, %127 : vector<8x128xf32>
    %130 = arith.addf %128, %129 : vector<8x128xf32>
    %131 = math.tanh %130 : vector<8x128xf32>
    %132 = arith.mulf %125, %131 : vector<8x128xf32>
    %133 = arith.truncf %132 : vector<8x128xf32> to vector<8x128xbf16>
    %c3_46 = arith.constant 3 : index
    %c0_47 = arith.constant 0 : index
    %c0_48 = arith.constant 0 : index
    %134 = vector.load %arg5[%c3_46, %c0_47, %c0_48] : memref<8x8x128xbf16, #tpu.memory_space<vmem>>, vector<1x8x128xbf16>
    %135 = vector.shape_cast %134 : vector<1x8x128xbf16> to vector<8x128xbf16>
    %136 = vector.shape_cast %133 : vector<8x128xbf16> to vector<1x8x128xbf16>
    tpu.vector_store %arg5[%c3_46, %c0_47, %c0_48], %136 {strides = array<i32>} : memref<8x8x128xbf16, #tpu.memory_space<vmem>>, vector<1x8x128xbf16>,
    %c4 = arith.constant 4 : index
    %c0_49 = arith.constant 0 : index
    %c0_50 = arith.constant 0 : index
    %137 = vector.load %arg6[%c4, %c0_49, %c0_50] : memref<8x8x512xbf16, #tpu.memory_space<vmem>>, vector<1x8x512xbf16>
    %138 = vector.shape_cast %137 : vector<1x8x512xbf16> to vector<8x512xbf16>
    %139 = arith.extf %138 : vector<8x512xbf16> to vector<8x512xf32>
    %140 = arith.truncf %132 : vector<8x128xf32> to vector<8x128xbf16>
    %cst_51 = arith.constant dense<0.000000e+00> : vector<8x512xf32>
    %141 = tpu.matmul %140, %30, %cst_51 {dimension_numbers = #tpu.dot_dimension_numbers<[1], [0], [0], [1], [0, 0, 1, 1], [], []>} : vector<8x128xbf16>, vector<128x512xbf16>, vector<8x512xf32> -> vector<8x512xf32>
    %142 = arith.addf %139, %141 : vector<8x512xf32>
    %143 = vector.extract_strided_slice %142 {offsets = [0, 0], sizes = [8, 384], strides = [1, 1]} : vector<8x512xf32> to vector<8x384xf32>
    %144 = arith.negf %143 : vector<8x384xf32>
    %145 = math.exp %144 : vector<8x384xf32>
    %cst_52 = arith.constant 1.000000e+00 : f32
    %146 = vector.broadcast %cst_52 : f32 to vector<8x384xf32>
    %147 = arith.addf %146, %145 : vector<8x384xf32>
    %148 = arith.divf %146, %147 : vector<8x384xf32>
    %149 = vector.extract_strided_slice %148 {offsets = [0, 0], sizes = [8, 128], strides = [1, 1]} : vector<8x384xf32> to vector<8x128xf32>
    %150 = vector.extract_strided_slice %148 {offsets = [0, 128], sizes = [8, 128], strides = [1, 1]} : vector<8x384xf32> to vector<8x128xf32>
    %151 = vector.extract_strided_slice %148 {offsets = [0, 256], sizes = [8, 128], strides = [1, 1]} : vector<8x384xf32> to vector<8x128xf32>
    %152 = vector.extract_strided_slice %142 {offsets = [0, 384], sizes = [8, 128], strides = [1, 1]} : vector<8x512xf32> to vector<8x128xf32>
    %153 = math.tanh %152 : vector<8x128xf32>
    %154 = arith.mulf %150, %130 : vector<8x128xf32>
    %155 = arith.mulf %149, %153 : vector<8x128xf32>
    %156 = arith.addf %154, %155 : vector<8x128xf32>
    %157 = math.tanh %156 : vector<8x128xf32>
    %158 = arith.mulf %151, %157 : vector<8x128xf32>
    %159 = arith.truncf %158 : vector<8x128xf32> to vector<8x128xbf16>
    %c4_53 = arith.constant 4 : index
    %c0_54 = arith.constant 0 : index
    %c0_55 = arith.constant 0 : index
    %160 = vector.load %arg5[%c4_53, %c0_54, %c0_55] : memref<8x8x128xbf16, #tpu.memory_space<vmem>>, vector<1x8x128xbf16>
    %161 = vector.shape_cast %160 : vector<1x8x128xbf16> to vector<8x128xbf16>
    %162 = vector.shape_cast %159 : vector<8x128xbf16> to vector<1x8x128xbf16>
    tpu.vector_store %arg5[%c4_53, %c0_54, %c0_55], %162 {strides = array<i32>} : memref<8x8x128xbf16, #tpu.memory_space<vmem>>, vector<1x8x128xbf16>,
    %c5 = arith.constant 5 : index
    %c0_56 = arith.constant 0 : index
    %c0_57 = arith.constant 0 : index
    %163 = vector.load %arg6[%c5, %c0_56, %c0_57] : memref<8x8x512xbf16, #tpu.memory_space<vmem>>, vector<1x8x512xbf16>
    %164 = vector.shape_cast %163 : vector<1x8x512xbf16> to vector<8x512xbf16>
    %165 = arith.extf %164 : vector<8x512xbf16> to vector<8x512xf32>
    %166 = arith.truncf %158 : vector<8x128xf32> to vector<8x128xbf16>
    %cst_58 = arith.constant dense<0.000000e+00> : vector<8x512xf32>
    %167 = tpu.matmul %166, %30, %cst_58 {dimension_numbers = #tpu.dot_dimension_numbers<[1], [0], [0], [1], [0, 0, 1, 1], [], []>} : vector<8x128xbf16>, vector<128x512xbf16>, vector<8x512xf32> -> vector<8x512xf32>
    %168 = arith.addf %165, %167 : vector<8x512xf32>
    %169 = vector.extract_strided_slice %168 {offsets = [0, 0], sizes = [8, 384], strides = [1, 1]} : vector<8x512xf32> to vector<8x384xf32>
    %170 = arith.negf %169 : vector<8x384xf32>
    %171 = math.exp %170 : vector<8x384xf32>
    %cst_59 = arith.constant 1.000000e+00 : f32
    %172 = vector.broadcast %cst_59 : f32 to vector<8x384xf32>
    %173 = arith.addf %172, %171 : vector<8x384xf32>
    %174 = arith.divf %172, %173 : vector<8x384xf32>
    %175 = vector.extract_strided_slice %174 {offsets = [0, 0], sizes = [8, 128], strides = [1, 1]} : vector<8x384xf32> to vector<8x128xf32>
    %176 = vector.extract_strided_slice %174 {offsets = [0, 128], sizes = [8, 128], strides = [1, 1]} : vector<8x384xf32> to vector<8x128xf32>
    %177 = vector.extract_strided_slice %174 {offsets = [0, 256], sizes = [8, 128], strides = [1, 1]} : vector<8x384xf32> to vector<8x128xf32>
    %178 = vector.extract_strided_slice %168 {offsets = [0, 384], sizes = [8, 128], strides = [1, 1]} : vector<8x512xf32> to vector<8x128xf32>
    %179 = math.tanh %178 : vector<8x128xf32>
    %180 = arith.mulf %176, %156 : vector<8x128xf32>
    %181 = arith.mulf %175, %179 : vector<8x128xf32>
    %182 = arith.addf %180, %181 : vector<8x128xf32>
    %183 = math.tanh %182 : vector<8x128xf32>
    %184 = arith.mulf %177, %183 : vector<8x128xf32>
    %185 = arith.truncf %184 : vector<8x128xf32> to vector<8x128xbf16>
    %c5_60 = arith.constant 5 : index
    %c0_61 = arith.constant 0 : index
    %c0_62 = arith.constant 0 : index
    %186 = vector.load %arg5[%c5_60, %c0_61, %c0_62] : memref<8x8x128xbf16, #tpu.memory_space<vmem>>, vector<1x8x128xbf16>
    %187 = vector.shape_cast %186 : vector<1x8x128xbf16> to vector<8x128xbf16>
    %188 = vector.shape_cast %185 : vector<8x128xbf16> to vector<1x8x128xbf16>
    tpu.vector_store %arg5[%c5_60, %c0_61, %c0_62], %188 {strides = array<i32>} : memref<8x8x128xbf16, #tpu.memory_space<vmem>>, vector<1x8x128xbf16>,
    %c6 = arith.constant 6 : index
    %c0_63 = arith.constant 0 : index
    %c0_64 = arith.constant 0 : index
    %189 = vector.load %arg6[%c6, %c0_63, %c0_64] : memref<8x8x512xbf16, #tpu.memory_space<vmem>>, vector<1x8x512xbf16>
    %190 = vector.shape_cast %189 : vector<1x8x512xbf16> to vector<8x512xbf16>
    %191 = arith.extf %190 : vector<8x512xbf16> to vector<8x512xf32>
    %192 = arith.truncf %184 : vector<8x128xf32> to vector<8x128xbf16>
    %cst_65 = arith.constant dense<0.000000e+00> : vector<8x512xf32>
    %193 = tpu.matmul %192, %30, %cst_65 {dimension_numbers = #tpu.dot_dimension_numbers<[1], [0], [0], [1], [0, 0, 1, 1], [], []>} : vector<8x128xbf16>, vector<128x512xbf16>, vector<8x512xf32> -> vector<8x512xf32>
    %194 = arith.addf %191, %193 : vector<8x512xf32>
    %195 = vector.extract_strided_slice %194 {offsets = [0, 0], sizes = [8, 384], strides = [1, 1]} : vector<8x512xf32> to vector<8x384xf32>
    %196 = arith.negf %195 : vector<8x384xf32>
    %197 = math.exp %196 : vector<8x384xf32>
    %cst_66 = arith.constant 1.000000e+00 : f32
    %198 = vector.broadcast %cst_66 : f32 to vector<8x384xf32>
    %199 = arith.addf %198, %197 : vector<8x384xf32>
    %200 = arith.divf %198, %199 : vector<8x384xf32>
    %201 = vector.extract_strided_slice %200 {offsets = [0, 0], sizes = [8, 128], strides = [1, 1]} : vector<8x384xf32> to vector<8x128xf32>
    %202 = vector.extract_strided_slice %200 {offsets = [0, 128], sizes = [8, 128], strides = [1, 1]} : vector<8x384xf32> to vector<8x128xf32>
    %203 = vector.extract_strided_slice %200 {offsets = [0, 256], sizes = [8, 128], strides = [1, 1]} : vector<8x384xf32> to vector<8x128xf32>
    %204 = vector.extract_strided_slice %194 {offsets = [0, 384], sizes = [8, 128], strides = [1, 1]} : vector<8x512xf32> to vector<8x128xf32>
    %205 = math.tanh %204 : vector<8x128xf32>
    %206 = arith.mulf %202, %182 : vector<8x128xf32>
    %207 = arith.mulf %201, %205 : vector<8x128xf32>
    %208 = arith.addf %206, %207 : vector<8x128xf32>
    %209 = math.tanh %208 : vector<8x128xf32>
    %210 = arith.mulf %203, %209 : vector<8x128xf32>
    %211 = arith.truncf %210 : vector<8x128xf32> to vector<8x128xbf16>
    %c6_67 = arith.constant 6 : index
    %c0_68 = arith.constant 0 : index
    %c0_69 = arith.constant 0 : index
    %212 = vector.load %arg5[%c6_67, %c0_68, %c0_69] : memref<8x8x128xbf16, #tpu.memory_space<vmem>>, vector<1x8x128xbf16>
    %213 = vector.shape_cast %212 : vector<1x8x128xbf16> to vector<8x128xbf16>
    %214 = vector.shape_cast %211 : vector<8x128xbf16> to vector<1x8x128xbf16>
    tpu.vector_store %arg5[%c6_67, %c0_68, %c0_69], %214 {strides = array<i32>} : memref<8x8x128xbf16, #tpu.memory_space<vmem>>, vector<1x8x128xbf16>,
    %c7 = arith.constant 7 : index
    %c0_70 = arith.constant 0 : index
    %c0_71 = arith.constant 0 : index
    %215 = vector.load %arg6[%c7, %c0_70, %c0_71] : memref<8x8x512xbf16, #tpu.memory_space<vmem>>, vector<1x8x512xbf16>
    %216 = vector.shape_cast %215 : vector<1x8x512xbf16> to vector<8x512xbf16>
    %217 = arith.extf %216 : vector<8x512xbf16> to vector<8x512xf32>
    %218 = arith.truncf %210 : vector<8x128xf32> to vector<8x128xbf16>
    %cst_72 = arith.constant dense<0.000000e+00> : vector<8x512xf32>
    %219 = tpu.matmul %218, %30, %cst_72 {dimension_numbers = #tpu.dot_dimension_numbers<[1], [0], [0], [1], [0, 0, 1, 1], [], []>} : vector<8x128xbf16>, vector<128x512xbf16>, vector<8x512xf32> -> vector<8x512xf32>
    %220 = arith.addf %217, %219 : vector<8x512xf32>
    %221 = vector.extract_strided_slice %220 {offsets = [0, 0], sizes = [8, 384], strides = [1, 1]} : vector<8x512xf32> to vector<8x384xf32>
    %222 = arith.negf %221 : vector<8x384xf32>
    %223 = math.exp %222 : vector<8x384xf32>
    %cst_73 = arith.constant 1.000000e+00 : f32
    %224 = vector.broadcast %cst_73 : f32 to vector<8x384xf32>
    %225 = arith.addf %224, %223 : vector<8x384xf32>
    %226 = arith.divf %224, %225 : vector<8x384xf32>
    %227 = vector.extract_strided_slice %226 {offsets = [0, 0], sizes = [8, 128], strides = [1, 1]} : vector<8x384xf32> to vector<8x128xf32>
    %228 = vector.extract_strided_slice %226 {offsets = [0, 128], sizes = [8, 128], strides = [1, 1]} : vector<8x384xf32> to vector<8x128xf32>
    %229 = vector.extract_strided_slice %226 {offsets = [0, 256], sizes = [8, 128], strides = [1, 1]} : vector<8x384xf32> to vector<8x128xf32>
    %230 = vector.extract_strided_slice %220 {offsets = [0, 384], sizes = [8, 128], strides = [1, 1]} : vector<8x512xf32> to vector<8x128xf32>
    %231 = math.tanh %230 : vector<8x128xf32>
    %232 = arith.mulf %228, %208 : vector<8x128xf32>
    %233 = arith.mulf %227, %231 : vector<8x128xf32>
    %234 = arith.addf %232, %233 : vector<8x128xf32>
    %235 = math.tanh %234 : vector<8x128xf32>
    %236 = arith.mulf %229, %235 : vector<8x128xf32>
    %237 = arith.truncf %236 : vector<8x128xf32> to vector<8x128xbf16>
    %c7_74 = arith.constant 7 : index
    %c0_75 = arith.constant 0 : index
    %c0_76 = arith.constant 0 : index
    %238 = vector.load %arg5[%c7_74, %c0_75, %c0_76] : memref<8x8x128xbf16, #tpu.memory_space<vmem>>, vector<1x8x128xbf16>
    %239 = vector.shape_cast %238 : vector<1x8x128xbf16> to vector<8x128xbf16>
    %240 = vector.shape_cast %237 : vector<8x128xbf16> to vector<1x8x128xbf16>
    tpu.vector_store %arg5[%c7_74, %c0_75, %c0_76], %240 {strides = array<i32>} : memref<8x8x128xbf16, #tpu.memory_space<vmem>>, vector<1x8x128xbf16>,
    return
  }
  func.func @transform_0(%arg0: i32) -> (i32, i32, i32) {
    %c0_i32 = arith.constant 0 : i32
    %c0_i32_0 = arith.constant 0 : i32
    %c0_i32_1 = arith.constant 0 : i32
    return %c0_i32, %arg0, %c0_i32_0 : i32, i32, i32
  }
  func.func @transform_1(%arg0: i32) -> (i32, i32) {
    %c0_i32 = arith.constant 0 : i32
    %c0_i32_0 = arith.constant 0 : i32
    %c0_i32_1 = arith.constant 0 : i32
    return %c0_i32, %c0_i32_0 : i32, i32
  }
  func.func @transform_2(%arg0: i32) -> (i32, i32) {
    %c0_i32 = arith.constant 0 : i32
    %c0_i32_0 = arith.constant 0 : i32
    %c0_i32_1 = arith.constant 0 : i32
    return %c0_i32, %c0_i32_0 : i32, i32
  }
  func.func @transform_3(%arg0: i32) -> (i32, i32) {
    %c0_i32 = arith.constant 0 : i32
    %c0_i32_0 = arith.constant 0 : i32
    %c0_i32_1 = arith.constant 0 : i32
    return %c0_i32, %c0_i32_0 : i32, i32
  }
  func.func @transform_4(%arg0: i32) -> (i32, i32, i32) {
    %c0_i32 = arith.constant 0 : i32
    %c0_i32_0 = arith.constant 0 : i32
    %c0_i32_1 = arith.constant 0 : i32
    return %c0_i32, %arg0, %c0_i32_0 : i32, i32, i32
  }
}

module attributes {stable_mosaic.version = 11 : i64} {
  func.func @dlstm_last_layer_kernel(%arg0: i32, %arg1: memref<8x8x128xbf16, #tpu.memory_space<vmem>>, %arg2: memref<128x640xbf16, #tpu.memory_space<vmem>>, %arg3: memref<128x512xbf16, #tpu.memory_space<vmem>>, %arg4: memref<1x512xf32, #tpu.memory_space<vmem>>, %arg5: memref<128x1xbf16, #tpu.memory_space<vmem>>, %arg6: memref<1x1xf32, #tpu.memory_space<vmem>>, %arg7: memref<8x8x1xf32, #tpu.memory_space<vmem>>, %arg8: memref<8x8x128xbf16, #tpu.memory_space<vmem>>, %arg9: memref<8x8x512xbf16, #tpu.memory_space<vmem>>) attributes {dimension_semantics = [#tpu.dimension_semantics<parallel>], iteration_bounds = array<i64: 1>, scalar_prefetch = 0 : i64, scratch_operands = 2 : i64, tpu.core_type = #tpu.core_type<tc>, window_params = [{transform_indices = @transform_0, window_bounds = array<i64: 8, 8, 128>}, {pipeline_mode = #tpu.pipeline_mode<synchronous>, transform_indices = @transform_1, window_bounds = array<i64: 128, 640>}, {pipeline_mode = #tpu.pipeline_mode<synchronous>, transform_indices = @transform_2, window_bounds = array<i64: 128, 512>}, {pipeline_mode = #tpu.pipeline_mode<synchronous>, transform_indices = @transform_3, window_bounds = array<i64: 1, 512>}, {pipeline_mode = #tpu.pipeline_mode<synchronous>, transform_indices = @transform_4, window_bounds = array<i64: 128, 1>}, {pipeline_mode = #tpu.pipeline_mode<synchronous>, transform_indices = @transform_5, window_bounds = array<i64: 1, 1>}, {transform_indices = @transform_6, window_bounds = array<i64: 8, 8, 1>}]} {
    %c0 = arith.constant 0 : index
    %c0_0 = arith.constant 0 : index
    %c0_1 = arith.constant 0 : index
    %0 = vector.load %arg1[%c0, %c0_0, %c0_1] : memref<8x8x128xbf16, #tpu.memory_space<vmem>>, vector<8x8x128xbf16>
    %1 = vector.shape_cast %0 : vector<8x8x128xbf16> to vector<64x128xbf16>
    %c0_2 = arith.constant 0 : index
    %c0_3 = arith.constant 0 : index
    %2 = vector.load %arg2[%c0_2, %c0_3] : memref<128x640xbf16, #tpu.memory_space<vmem>>, vector<128x640xbf16>
    %cst = arith.constant dense<0.000000e+00> : vector<64x640xf32>
    %3 = tpu.matmul %1, %2, %cst {dimension_numbers = #tpu.dot_dimension_numbers<[1], [0], [0], [1], [0, 0, 1, 1], [], []>} : vector<64x128xbf16>, vector<128x640xbf16>, vector<64x640xf32> -> vector<64x640xf32>
    %4 = vector.shape_cast %3 : vector<64x640xf32> to vector<8x8x640xf32>
    %5 = vector.extract_strided_slice %4 {offsets = [0, 0, 0], sizes = [8, 8, 512], strides = [1, 1, 1]} : vector<8x8x640xf32> to vector<8x8x512xf32>
    %c0_4 = arith.constant 0 : index
    %c0_5 = arith.constant 0 : index
    %6 = vector.load %arg4[%c0_4, %c0_5] : memref<1x512xf32, #tpu.memory_space<vmem>>, vector<1x512xf32>
    %7 = vector.shape_cast %6 : vector<1x512xf32> to vector<1x1x512xf32>
    %8 = vector.broadcast %7 : vector<1x1x512xf32> to vector<8x8x512xf32>
    %9 = arith.addf %5, %8 : vector<8x8x512xf32>
    %10 = vector.extract_strided_slice %4 {offsets = [0, 0, 512], sizes = [8, 8, 128], strides = [1, 1, 1]} : vector<8x8x640xf32> to vector<8x8x128xf32>
    %11 = vector.extract_strided_slice %9 {offsets = [0, 0, 0], sizes = [8, 8, 256], strides = [1, 1, 1]} : vector<8x8x512xf32> to vector<8x8x256xf32>
    %12 = arith.truncf %11 : vector<8x8x256xf32> to vector<8x8x256xbf16>
    %c0_6 = arith.constant 0 : index
    %c0_7 = arith.constant 0 : index
    %c0_8 = arith.constant 0 : index
    %13 = vector.load %arg9[%c0_6, %c0_7, %c0_8] : memref<8x8x512xbf16, #tpu.memory_space<vmem>>, vector<8x8x256xbf16>
    tpu.vector_store %arg9[%c0_6, %c0_7, %c0_8], %12 {strides = array<i32>} : memref<8x8x512xbf16, #tpu.memory_space<vmem>>, vector<8x8x256xbf16>,
    %14 = vector.extract_strided_slice %9 {offsets = [0, 0, 384], sizes = [8, 8, 128], strides = [1, 1, 1]} : vector<8x8x512xf32> to vector<8x8x128xf32>
    %15 = arith.truncf %14 : vector<8x8x128xf32> to vector<8x8x128xbf16>
    %c0_9 = arith.constant 0 : index
    %c0_10 = arith.constant 0 : index
    %c384 = arith.constant 384 : index
    %16 = vector.load %arg9[%c0_9, %c0_10, %c384] : memref<8x8x512xbf16, #tpu.memory_space<vmem>>, vector<8x8x128xbf16>
    tpu.vector_store %arg9[%c0_9, %c0_10, %c384], %15 {strides = array<i32>} : memref<8x8x512xbf16, #tpu.memory_space<vmem>>, vector<8x8x128xbf16>,
    %17 = vector.extract_strided_slice %9 {offsets = [0, 0, 256], sizes = [1, 8, 128], strides = [1, 1, 1]} : vector<8x8x512xf32> to vector<1x8x128xf32>
    %18 = vector.shape_cast %17 : vector<1x8x128xf32> to vector<8x128xf32>
    %19 = arith.truncf %18 : vector<8x128xf32> to vector<8x128xbf16>
    %c0_11 = arith.constant 0 : index
    %c0_12 = arith.constant 0 : index
    %c256 = arith.constant 256 : index
    %20 = vector.load %arg9[%c0_11, %c0_12, %c256] : memref<8x8x512xbf16, #tpu.memory_space<vmem>>, vector<1x8x128xbf16>
    %21 = vector.shape_cast %20 : vector<1x8x128xbf16> to vector<8x128xbf16>
    %22 = vector.shape_cast %19 : vector<8x128xbf16> to vector<1x8x128xbf16>
    tpu.vector_store %arg9[%c0_11, %c0_12, %c256], %22 {strides = array<i32>} : memref<8x8x512xbf16, #tpu.memory_space<vmem>>, vector<1x8x128xbf16>,
    %23 = vector.extract_strided_slice %9 {offsets = [1, 0, 256], sizes = [7, 8, 128], strides = [1, 1, 1]} : vector<8x8x512xf32> to vector<7x8x128xf32>
    %24 = vector.extract_strided_slice %10 {offsets = [1, 0, 0], sizes = [7, 8, 128], strides = [1, 1, 1]} : vector<8x8x128xf32> to vector<7x8x128xf32>
    %25 = vector.extract_strided_slice %10 {offsets = [0, 0, 0], sizes = [7, 8, 128], strides = [1, 1, 1]} : vector<8x8x128xf32> to vector<7x8x128xf32>
    %26 = arith.subf %24, %25 : vector<7x8x128xf32>
    %27 = arith.addf %23, %26 : vector<7x8x128xf32>
    %28 = arith.truncf %27 : vector<7x8x128xf32> to vector<7x8x128xbf16>
    %c1 = arith.constant 1 : index
    %c0_13 = arith.constant 0 : index
    %c256_14 = arith.constant 256 : index
    %29 = vector.load %arg9[%c1, %c0_13, %c256_14] : memref<8x8x512xbf16, #tpu.memory_space<vmem>>, vector<7x8x128xbf16>
    tpu.vector_store %arg9[%c1, %c0_13, %c256_14], %28 {strides = array<i32>} : memref<8x8x512xbf16, #tpu.memory_space<vmem>>, vector<7x8x128xbf16>,
    %c0_15 = arith.constant 0 : index
    %c0_16 = arith.constant 0 : index
    %30 = vector.load %arg3[%c0_15, %c0_16] : memref<128x512xbf16, #tpu.memory_space<vmem>>, vector<128x512xbf16>
    %cst_17 = arith.constant 0.000000e+00 : f32
    %31 = vector.broadcast %cst_17 : f32 to vector<8x128xf32>
    %cst_18 = arith.constant 0.000000e+00 : f32
    %32 = vector.broadcast %cst_18 : f32 to vector<8x128xf32>
    %c0_19 = arith.constant 0 : index
    %c0_20 = arith.constant 0 : index
    %c0_21 = arith.constant 0 : index
    %33 = vector.load %arg9[%c0_19, %c0_20, %c0_21] : memref<8x8x512xbf16, #tpu.memory_space<vmem>>, vector<1x8x512xbf16>
    %34 = vector.shape_cast %33 : vector<1x8x512xbf16> to vector<8x512xbf16>
    %35 = arith.extf %34 : vector<8x512xbf16> to vector<8x512xf32>
    %36 = arith.truncf %31 : vector<8x128xf32> to vector<8x128xbf16>
    %cst_22 = arith.constant dense<0.000000e+00> : vector<8x512xf32>
    %37 = tpu.matmul %36, %30, %cst_22 {dimension_numbers = #tpu.dot_dimension_numbers<[1], [0], [0], [1], [0, 0, 1, 1], [], []>} : vector<8x128xbf16>, vector<128x512xbf16>, vector<8x512xf32> -> vector<8x512xf32>
    %38 = arith.addf %35, %37 : vector<8x512xf32>
    %39 = vector.extract_strided_slice %38 {offsets = [0, 0], sizes = [8, 384], strides = [1, 1]} : vector<8x512xf32> to vector<8x384xf32>
    %40 = arith.negf %39 : vector<8x384xf32>
    %41 = math.exp %40 : vector<8x384xf32>
    %cst_23 = arith.constant 1.000000e+00 : f32
    %42 = vector.broadcast %cst_23 : f32 to vector<8x384xf32>
    %43 = arith.addf %42, %41 : vector<8x384xf32>
    %44 = arith.divf %42, %43 : vector<8x384xf32>
    %45 = vector.extract_strided_slice %44 {offsets = [0, 0], sizes = [8, 128], strides = [1, 1]} : vector<8x384xf32> to vector<8x128xf32>
    %46 = vector.extract_strided_slice %44 {offsets = [0, 128], sizes = [8, 128], strides = [1, 1]} : vector<8x384xf32> to vector<8x128xf32>
    %47 = vector.extract_strided_slice %44 {offsets = [0, 256], sizes = [8, 128], strides = [1, 1]} : vector<8x384xf32> to vector<8x128xf32>
    %48 = vector.extract_strided_slice %38 {offsets = [0, 384], sizes = [8, 128], strides = [1, 1]} : vector<8x512xf32> to vector<8x128xf32>
    %49 = math.tanh %48 : vector<8x128xf32>
    %50 = arith.mulf %46, %32 : vector<8x128xf32>
    %51 = arith.mulf %45, %49 : vector<8x128xf32>
    %52 = arith.addf %50, %51 : vector<8x128xf32>
    %53 = math.tanh %52 : vector<8x128xf32>
    %54 = arith.mulf %47, %53 : vector<8x128xf32>
    %55 = arith.truncf %54 : vector<8x128xf32> to vector<8x128xbf16>
    %c0_24 = arith.constant 0 : index
    %c0_25 = arith.constant 0 : index
    %c0_26 = arith.constant 0 : index
    %56 = vector.load %arg8[%c0_24, %c0_25, %c0_26] : memref<8x8x128xbf16, #tpu.memory_space<vmem>>, vector<1x8x128xbf16>
    %57 = vector.shape_cast %56 : vector<1x8x128xbf16> to vector<8x128xbf16>
    %58 = vector.shape_cast %55 : vector<8x128xbf16> to vector<1x8x128xbf16>
    tpu.vector_store %arg8[%c0_24, %c0_25, %c0_26], %58 {strides = array<i32>} : memref<8x8x128xbf16, #tpu.memory_space<vmem>>, vector<1x8x128xbf16>,
    %c1_27 = arith.constant 1 : index
    %c0_28 = arith.constant 0 : index
    %c0_29 = arith.constant 0 : index
    %59 = vector.load %arg9[%c1_27, %c0_28, %c0_29] : memref<8x8x512xbf16, #tpu.memory_space<vmem>>, vector<1x8x512xbf16>
    %60 = vector.shape_cast %59 : vector<1x8x512xbf16> to vector<8x512xbf16>
    %61 = arith.extf %60 : vector<8x512xbf16> to vector<8x512xf32>
    %62 = arith.truncf %54 : vector<8x128xf32> to vector<8x128xbf16>
    %cst_30 = arith.constant dense<0.000000e+00> : vector<8x512xf32>
    %63 = tpu.matmul %62, %30, %cst_30 {dimension_numbers = #tpu.dot_dimension_numbers<[1], [0], [0], [1], [0, 0, 1, 1], [], []>} : vector<8x128xbf16>, vector<128x512xbf16>, vector<8x512xf32> -> vector<8x512xf32>
    %64 = arith.addf %61, %63 : vector<8x512xf32>
    %65 = vector.extract_strided_slice %64 {offsets = [0, 0], sizes = [8, 384], strides = [1, 1]} : vector<8x512xf32> to vector<8x384xf32>
    %66 = arith.negf %65 : vector<8x384xf32>
    %67 = math.exp %66 : vector<8x384xf32>
    %cst_31 = arith.constant 1.000000e+00 : f32
    %68 = vector.broadcast %cst_31 : f32 to vector<8x384xf32>
    %69 = arith.addf %68, %67 : vector<8x384xf32>
    %70 = arith.divf %68, %69 : vector<8x384xf32>
    %71 = vector.extract_strided_slice %70 {offsets = [0, 0], sizes = [8, 128], strides = [1, 1]} : vector<8x384xf32> to vector<8x128xf32>
    %72 = vector.extract_strided_slice %70 {offsets = [0, 128], sizes = [8, 128], strides = [1, 1]} : vector<8x384xf32> to vector<8x128xf32>
    %73 = vector.extract_strided_slice %70 {offsets = [0, 256], sizes = [8, 128], strides = [1, 1]} : vector<8x384xf32> to vector<8x128xf32>
    %74 = vector.extract_strided_slice %64 {offsets = [0, 384], sizes = [8, 128], strides = [1, 1]} : vector<8x512xf32> to vector<8x128xf32>
    %75 = math.tanh %74 : vector<8x128xf32>
    %76 = arith.mulf %72, %52 : vector<8x128xf32>
    %77 = arith.mulf %71, %75 : vector<8x128xf32>
    %78 = arith.addf %76, %77 : vector<8x128xf32>
    %79 = math.tanh %78 : vector<8x128xf32>
    %80 = arith.mulf %73, %79 : vector<8x128xf32>
    %81 = arith.truncf %80 : vector<8x128xf32> to vector<8x128xbf16>
    %c1_32 = arith.constant 1 : index
    %c0_33 = arith.constant 0 : index
    %c0_34 = arith.constant 0 : index
    %82 = vector.load %arg8[%c1_32, %c0_33, %c0_34] : memref<8x8x128xbf16, #tpu.memory_space<vmem>>, vector<1x8x128xbf16>
    %83 = vector.shape_cast %82 : vector<1x8x128xbf16> to vector<8x128xbf16>
    %84 = vector.shape_cast %81 : vector<8x128xbf16> to vector<1x8x128xbf16>
    tpu.vector_store %arg8[%c1_32, %c0_33, %c0_34], %84 {strides = array<i32>} : memref<8x8x128xbf16, #tpu.memory_space<vmem>>, vector<1x8x128xbf16>,
    %c2 = arith.constant 2 : index
    %c0_35 = arith.constant 0 : index
    %c0_36 = arith.constant 0 : index
    %85 = vector.load %arg9[%c2, %c0_35, %c0_36] : memref<8x8x512xbf16, #tpu.memory_space<vmem>>, vector<1x8x512xbf16>
    %86 = vector.shape_cast %85 : vector<1x8x512xbf16> to vector<8x512xbf16>
    %87 = arith.extf %86 : vector<8x512xbf16> to vector<8x512xf32>
    %88 = arith.truncf %80 : vector<8x128xf32> to vector<8x128xbf16>
    %cst_37 = arith.constant dense<0.000000e+00> : vector<8x512xf32>
    %89 = tpu.matmul %88, %30, %cst_37 {dimension_numbers = #tpu.dot_dimension_numbers<[1], [0], [0], [1], [0, 0, 1, 1], [], []>} : vector<8x128xbf16>, vector<128x512xbf16>, vector<8x512xf32> -> vector<8x512xf32>
    %90 = arith.addf %87, %89 : vector<8x512xf32>
    %91 = vector.extract_strided_slice %90 {offsets = [0, 0], sizes = [8, 384], strides = [1, 1]} : vector<8x512xf32> to vector<8x384xf32>
    %92 = arith.negf %91 : vector<8x384xf32>
    %93 = math.exp %92 : vector<8x384xf32>
    %cst_38 = arith.constant 1.000000e+00 : f32
    %94 = vector.broadcast %cst_38 : f32 to vector<8x384xf32>
    %95 = arith.addf %94, %93 : vector<8x384xf32>
    %96 = arith.divf %94, %95 : vector<8x384xf32>
    %97 = vector.extract_strided_slice %96 {offsets = [0, 0], sizes = [8, 128], strides = [1, 1]} : vector<8x384xf32> to vector<8x128xf32>
    %98 = vector.extract_strided_slice %96 {offsets = [0, 128], sizes = [8, 128], strides = [1, 1]} : vector<8x384xf32> to vector<8x128xf32>
    %99 = vector.extract_strided_slice %96 {offsets = [0, 256], sizes = [8, 128], strides = [1, 1]} : vector<8x384xf32> to vector<8x128xf32>
    %100 = vector.extract_strided_slice %90 {offsets = [0, 384], sizes = [8, 128], strides = [1, 1]} : vector<8x512xf32> to vector<8x128xf32>
    %101 = math.tanh %100 : vector<8x128xf32>
    %102 = arith.mulf %98, %78 : vector<8x128xf32>
    %103 = arith.mulf %97, %101 : vector<8x128xf32>
    %104 = arith.addf %102, %103 : vector<8x128xf32>
    %105 = math.tanh %104 : vector<8x128xf32>
    %106 = arith.mulf %99, %105 : vector<8x128xf32>
    %107 = arith.truncf %106 : vector<8x128xf32> to vector<8x128xbf16>
    %c2_39 = arith.constant 2 : index
    %c0_40 = arith.constant 0 : index
    %c0_41 = arith.constant 0 : index
    %108 = vector.load %arg8[%c2_39, %c0_40, %c0_41] : memref<8x8x128xbf16, #tpu.memory_space<vmem>>, vector<1x8x128xbf16>
    %109 = vector.shape_cast %108 : vector<1x8x128xbf16> to vector<8x128xbf16>
    %110 = vector.shape_cast %107 : vector<8x128xbf16> to vector<1x8x128xbf16>
    tpu.vector_store %arg8[%c2_39, %c0_40, %c0_41], %110 {strides = array<i32>} : memref<8x8x128xbf16, #tpu.memory_space<vmem>>, vector<1x8x128xbf16>,
    %c3 = arith.constant 3 : index
    %c0_42 = arith.constant 0 : index
    %c0_43 = arith.constant 0 : index
    %111 = vector.load %arg9[%c3, %c0_42, %c0_43] : memref<8x8x512xbf16, #tpu.memory_space<vmem>>, vector<1x8x512xbf16>
    %112 = vector.shape_cast %111 : vector<1x8x512xbf16> to vector<8x512xbf16>
    %113 = arith.extf %112 : vector<8x512xbf16> to vector<8x512xf32>
    %114 = arith.truncf %106 : vector<8x128xf32> to vector<8x128xbf16>
    %cst_44 = arith.constant dense<0.000000e+00> : vector<8x512xf32>
    %115 = tpu.matmul %114, %30, %cst_44 {dimension_numbers = #tpu.dot_dimension_numbers<[1], [0], [0], [1], [0, 0, 1, 1], [], []>} : vector<8x128xbf16>, vector<128x512xbf16>, vector<8x512xf32> -> vector<8x512xf32>
    %116 = arith.addf %113, %115 : vector<8x512xf32>
    %117 = vector.extract_strided_slice %116 {offsets = [0, 0], sizes = [8, 384], strides = [1, 1]} : vector<8x512xf32> to vector<8x384xf32>
    %118 = arith.negf %117 : vector<8x384xf32>
    %119 = math.exp %118 : vector<8x384xf32>
    %cst_45 = arith.constant 1.000000e+00 : f32
    %120 = vector.broadcast %cst_45 : f32 to vector<8x384xf32>
    %121 = arith.addf %120, %119 : vector<8x384xf32>
    %122 = arith.divf %120, %121 : vector<8x384xf32>
    %123 = vector.extract_strided_slice %122 {offsets = [0, 0], sizes = [8, 128], strides = [1, 1]} : vector<8x384xf32> to vector<8x128xf32>
    %124 = vector.extract_strided_slice %122 {offsets = [0, 128], sizes = [8, 128], strides = [1, 1]} : vector<8x384xf32> to vector<8x128xf32>
    %125 = vector.extract_strided_slice %122 {offsets = [0, 256], sizes = [8, 128], strides = [1, 1]} : vector<8x384xf32> to vector<8x128xf32>
    %126 = vector.extract_strided_slice %116 {offsets = [0, 384], sizes = [8, 128], strides = [1, 1]} : vector<8x512xf32> to vector<8x128xf32>
    %127 = math.tanh %126 : vector<8x128xf32>
    %128 = arith.mulf %124, %104 : vector<8x128xf32>
    %129 = arith.mulf %123, %127 : vector<8x128xf32>
    %130 = arith.addf %128, %129 : vector<8x128xf32>
    %131 = math.tanh %130 : vector<8x128xf32>
    %132 = arith.mulf %125, %131 : vector<8x128xf32>
    %133 = arith.truncf %132 : vector<8x128xf32> to vector<8x128xbf16>
    %c3_46 = arith.constant 3 : index
    %c0_47 = arith.constant 0 : index
    %c0_48 = arith.constant 0 : index
    %134 = vector.load %arg8[%c3_46, %c0_47, %c0_48] : memref<8x8x128xbf16, #tpu.memory_space<vmem>>, vector<1x8x128xbf16>
    %135 = vector.shape_cast %134 : vector<1x8x128xbf16> to vector<8x128xbf16>
    %136 = vector.shape_cast %133 : vector<8x128xbf16> to vector<1x8x128xbf16>
    tpu.vector_store %arg8[%c3_46, %c0_47, %c0_48], %136 {strides = array<i32>} : memref<8x8x128xbf16, #tpu.memory_space<vmem>>, vector<1x8x128xbf16>,
    %c4 = arith.constant 4 : index
    %c0_49 = arith.constant 0 : index
    %c0_50 = arith.constant 0 : index
    %137 = vector.load %arg9[%c4, %c0_49, %c0_50] : memref<8x8x512xbf16, #tpu.memory_space<vmem>>, vector<1x8x512xbf16>
    %138 = vector.shape_cast %137 : vector<1x8x512xbf16> to vector<8x512xbf16>
    %139 = arith.extf %138 : vector<8x512xbf16> to vector<8x512xf32>
    %140 = arith.truncf %132 : vector<8x128xf32> to vector<8x128xbf16>
    %cst_51 = arith.constant dense<0.000000e+00> : vector<8x512xf32>
    %141 = tpu.matmul %140, %30, %cst_51 {dimension_numbers = #tpu.dot_dimension_numbers<[1], [0], [0], [1], [0, 0, 1, 1], [], []>} : vector<8x128xbf16>, vector<128x512xbf16>, vector<8x512xf32> -> vector<8x512xf32>
    %142 = arith.addf %139, %141 : vector<8x512xf32>
    %143 = vector.extract_strided_slice %142 {offsets = [0, 0], sizes = [8, 384], strides = [1, 1]} : vector<8x512xf32> to vector<8x384xf32>
    %144 = arith.negf %143 : vector<8x384xf32>
    %145 = math.exp %144 : vector<8x384xf32>
    %cst_52 = arith.constant 1.000000e+00 : f32
    %146 = vector.broadcast %cst_52 : f32 to vector<8x384xf32>
    %147 = arith.addf %146, %145 : vector<8x384xf32>
    %148 = arith.divf %146, %147 : vector<8x384xf32>
    %149 = vector.extract_strided_slice %148 {offsets = [0, 0], sizes = [8, 128], strides = [1, 1]} : vector<8x384xf32> to vector<8x128xf32>
    %150 = vector.extract_strided_slice %148 {offsets = [0, 128], sizes = [8, 128], strides = [1, 1]} : vector<8x384xf32> to vector<8x128xf32>
    %151 = vector.extract_strided_slice %148 {offsets = [0, 256], sizes = [8, 128], strides = [1, 1]} : vector<8x384xf32> to vector<8x128xf32>
    %152 = vector.extract_strided_slice %142 {offsets = [0, 384], sizes = [8, 128], strides = [1, 1]} : vector<8x512xf32> to vector<8x128xf32>
    %153 = math.tanh %152 : vector<8x128xf32>
    %154 = arith.mulf %150, %130 : vector<8x128xf32>
    %155 = arith.mulf %149, %153 : vector<8x128xf32>
    %156 = arith.addf %154, %155 : vector<8x128xf32>
    %157 = math.tanh %156 : vector<8x128xf32>
    %158 = arith.mulf %151, %157 : vector<8x128xf32>
    %159 = arith.truncf %158 : vector<8x128xf32> to vector<8x128xbf16>
    %c4_53 = arith.constant 4 : index
    %c0_54 = arith.constant 0 : index
    %c0_55 = arith.constant 0 : index
    %160 = vector.load %arg8[%c4_53, %c0_54, %c0_55] : memref<8x8x128xbf16, #tpu.memory_space<vmem>>, vector<1x8x128xbf16>
    %161 = vector.shape_cast %160 : vector<1x8x128xbf16> to vector<8x128xbf16>
    %162 = vector.shape_cast %159 : vector<8x128xbf16> to vector<1x8x128xbf16>
    tpu.vector_store %arg8[%c4_53, %c0_54, %c0_55], %162 {strides = array<i32>} : memref<8x8x128xbf16, #tpu.memory_space<vmem>>, vector<1x8x128xbf16>,
    %c5 = arith.constant 5 : index
    %c0_56 = arith.constant 0 : index
    %c0_57 = arith.constant 0 : index
    %163 = vector.load %arg9[%c5, %c0_56, %c0_57] : memref<8x8x512xbf16, #tpu.memory_space<vmem>>, vector<1x8x512xbf16>
    %164 = vector.shape_cast %163 : vector<1x8x512xbf16> to vector<8x512xbf16>
    %165 = arith.extf %164 : vector<8x512xbf16> to vector<8x512xf32>
    %166 = arith.truncf %158 : vector<8x128xf32> to vector<8x128xbf16>
    %cst_58 = arith.constant dense<0.000000e+00> : vector<8x512xf32>
    %167 = tpu.matmul %166, %30, %cst_58 {dimension_numbers = #tpu.dot_dimension_numbers<[1], [0], [0], [1], [0, 0, 1, 1], [], []>} : vector<8x128xbf16>, vector<128x512xbf16>, vector<8x512xf32> -> vector<8x512xf32>
    %168 = arith.addf %165, %167 : vector<8x512xf32>
    %169 = vector.extract_strided_slice %168 {offsets = [0, 0], sizes = [8, 384], strides = [1, 1]} : vector<8x512xf32> to vector<8x384xf32>
    %170 = arith.negf %169 : vector<8x384xf32>
    %171 = math.exp %170 : vector<8x384xf32>
    %cst_59 = arith.constant 1.000000e+00 : f32
    %172 = vector.broadcast %cst_59 : f32 to vector<8x384xf32>
    %173 = arith.addf %172, %171 : vector<8x384xf32>
    %174 = arith.divf %172, %173 : vector<8x384xf32>
    %175 = vector.extract_strided_slice %174 {offsets = [0, 0], sizes = [8, 128], strides = [1, 1]} : vector<8x384xf32> to vector<8x128xf32>
    %176 = vector.extract_strided_slice %174 {offsets = [0, 128], sizes = [8, 128], strides = [1, 1]} : vector<8x384xf32> to vector<8x128xf32>
    %177 = vector.extract_strided_slice %174 {offsets = [0, 256], sizes = [8, 128], strides = [1, 1]} : vector<8x384xf32> to vector<8x128xf32>
    %178 = vector.extract_strided_slice %168 {offsets = [0, 384], sizes = [8, 128], strides = [1, 1]} : vector<8x512xf32> to vector<8x128xf32>
    %179 = math.tanh %178 : vector<8x128xf32>
    %180 = arith.mulf %176, %156 : vector<8x128xf32>
    %181 = arith.mulf %175, %179 : vector<8x128xf32>
    %182 = arith.addf %180, %181 : vector<8x128xf32>
    %183 = math.tanh %182 : vector<8x128xf32>
    %184 = arith.mulf %177, %183 : vector<8x128xf32>
    %185 = arith.truncf %184 : vector<8x128xf32> to vector<8x128xbf16>
    %c5_60 = arith.constant 5 : index
    %c0_61 = arith.constant 0 : index
    %c0_62 = arith.constant 0 : index
    %186 = vector.load %arg8[%c5_60, %c0_61, %c0_62] : memref<8x8x128xbf16, #tpu.memory_space<vmem>>, vector<1x8x128xbf16>
    %187 = vector.shape_cast %186 : vector<1x8x128xbf16> to vector<8x128xbf16>
    %188 = vector.shape_cast %185 : vector<8x128xbf16> to vector<1x8x128xbf16>
    tpu.vector_store %arg8[%c5_60, %c0_61, %c0_62], %188 {strides = array<i32>} : memref<8x8x128xbf16, #tpu.memory_space<vmem>>, vector<1x8x128xbf16>,
    %c6 = arith.constant 6 : index
    %c0_63 = arith.constant 0 : index
    %c0_64 = arith.constant 0 : index
    %189 = vector.load %arg9[%c6, %c0_63, %c0_64] : memref<8x8x512xbf16, #tpu.memory_space<vmem>>, vector<1x8x512xbf16>
    %190 = vector.shape_cast %189 : vector<1x8x512xbf16> to vector<8x512xbf16>
    %191 = arith.extf %190 : vector<8x512xbf16> to vector<8x512xf32>
    %192 = arith.truncf %184 : vector<8x128xf32> to vector<8x128xbf16>
    %cst_65 = arith.constant dense<0.000000e+00> : vector<8x512xf32>
    %193 = tpu.matmul %192, %30, %cst_65 {dimension_numbers = #tpu.dot_dimension_numbers<[1], [0], [0], [1], [0, 0, 1, 1], [], []>} : vector<8x128xbf16>, vector<128x512xbf16>, vector<8x512xf32> -> vector<8x512xf32>
    %194 = arith.addf %191, %193 : vector<8x512xf32>
    %195 = vector.extract_strided_slice %194 {offsets = [0, 0], sizes = [8, 384], strides = [1, 1]} : vector<8x512xf32> to vector<8x384xf32>
    %196 = arith.negf %195 : vector<8x384xf32>
    %197 = math.exp %196 : vector<8x384xf32>
    %cst_66 = arith.constant 1.000000e+00 : f32
    %198 = vector.broadcast %cst_66 : f32 to vector<8x384xf32>
    %199 = arith.addf %198, %197 : vector<8x384xf32>
    %200 = arith.divf %198, %199 : vector<8x384xf32>
    %201 = vector.extract_strided_slice %200 {offsets = [0, 0], sizes = [8, 128], strides = [1, 1]} : vector<8x384xf32> to vector<8x128xf32>
    %202 = vector.extract_strided_slice %200 {offsets = [0, 128], sizes = [8, 128], strides = [1, 1]} : vector<8x384xf32> to vector<8x128xf32>
    %203 = vector.extract_strided_slice %200 {offsets = [0, 256], sizes = [8, 128], strides = [1, 1]} : vector<8x384xf32> to vector<8x128xf32>
    %204 = vector.extract_strided_slice %194 {offsets = [0, 384], sizes = [8, 128], strides = [1, 1]} : vector<8x512xf32> to vector<8x128xf32>
    %205 = math.tanh %204 : vector<8x128xf32>
    %206 = arith.mulf %202, %182 : vector<8x128xf32>
    %207 = arith.mulf %201, %205 : vector<8x128xf32>
    %208 = arith.addf %206, %207 : vector<8x128xf32>
    %209 = math.tanh %208 : vector<8x128xf32>
    %210 = arith.mulf %203, %209 : vector<8x128xf32>
    %211 = arith.truncf %210 : vector<8x128xf32> to vector<8x128xbf16>
    %c6_67 = arith.constant 6 : index
    %c0_68 = arith.constant 0 : index
    %c0_69 = arith.constant 0 : index
    %212 = vector.load %arg8[%c6_67, %c0_68, %c0_69] : memref<8x8x128xbf16, #tpu.memory_space<vmem>>, vector<1x8x128xbf16>
    %213 = vector.shape_cast %212 : vector<1x8x128xbf16> to vector<8x128xbf16>
    %214 = vector.shape_cast %211 : vector<8x128xbf16> to vector<1x8x128xbf16>
    tpu.vector_store %arg8[%c6_67, %c0_68, %c0_69], %214 {strides = array<i32>} : memref<8x8x128xbf16, #tpu.memory_space<vmem>>, vector<1x8x128xbf16>,
    %c7 = arith.constant 7 : index
    %c0_70 = arith.constant 0 : index
    %c0_71 = arith.constant 0 : index
    %215 = vector.load %arg9[%c7, %c0_70, %c0_71] : memref<8x8x512xbf16, #tpu.memory_space<vmem>>, vector<1x8x512xbf16>
    %216 = vector.shape_cast %215 : vector<1x8x512xbf16> to vector<8x512xbf16>
    %217 = arith.extf %216 : vector<8x512xbf16> to vector<8x512xf32>
    %218 = arith.truncf %210 : vector<8x128xf32> to vector<8x128xbf16>
    %cst_72 = arith.constant dense<0.000000e+00> : vector<8x512xf32>
    %219 = tpu.matmul %218, %30, %cst_72 {dimension_numbers = #tpu.dot_dimension_numbers<[1], [0], [0], [1], [0, 0, 1, 1], [], []>} : vector<8x128xbf16>, vector<128x512xbf16>, vector<8x512xf32> -> vector<8x512xf32>
    %220 = arith.addf %217, %219 : vector<8x512xf32>
    %221 = vector.extract_strided_slice %220 {offsets = [0, 0], sizes = [8, 384], strides = [1, 1]} : vector<8x512xf32> to vector<8x384xf32>
    %222 = arith.negf %221 : vector<8x384xf32>
    %223 = math.exp %222 : vector<8x384xf32>
    %cst_73 = arith.constant 1.000000e+00 : f32
    %224 = vector.broadcast %cst_73 : f32 to vector<8x384xf32>
    %225 = arith.addf %224, %223 : vector<8x384xf32>
    %226 = arith.divf %224, %225 : vector<8x384xf32>
    %227 = vector.extract_strided_slice %226 {offsets = [0, 0], sizes = [8, 128], strides = [1, 1]} : vector<8x384xf32> to vector<8x128xf32>
    %228 = vector.extract_strided_slice %226 {offsets = [0, 128], sizes = [8, 128], strides = [1, 1]} : vector<8x384xf32> to vector<8x128xf32>
    %229 = vector.extract_strided_slice %226 {offsets = [0, 256], sizes = [8, 128], strides = [1, 1]} : vector<8x384xf32> to vector<8x128xf32>
    %230 = vector.extract_strided_slice %220 {offsets = [0, 384], sizes = [8, 128], strides = [1, 1]} : vector<8x512xf32> to vector<8x128xf32>
    %231 = math.tanh %230 : vector<8x128xf32>
    %232 = arith.mulf %228, %208 : vector<8x128xf32>
    %233 = arith.mulf %227, %231 : vector<8x128xf32>
    %234 = arith.addf %232, %233 : vector<8x128xf32>
    %235 = math.tanh %234 : vector<8x128xf32>
    %236 = arith.mulf %229, %235 : vector<8x128xf32>
    %237 = arith.truncf %236 : vector<8x128xf32> to vector<8x128xbf16>
    %c7_74 = arith.constant 7 : index
    %c0_75 = arith.constant 0 : index
    %c0_76 = arith.constant 0 : index
    %238 = vector.load %arg8[%c7_74, %c0_75, %c0_76] : memref<8x8x128xbf16, #tpu.memory_space<vmem>>, vector<1x8x128xbf16>
    %239 = vector.shape_cast %238 : vector<1x8x128xbf16> to vector<8x128xbf16>
    %240 = vector.shape_cast %237 : vector<8x128xbf16> to vector<1x8x128xbf16>
    tpu.vector_store %arg8[%c7_74, %c0_75, %c0_76], %240 {strides = array<i32>} : memref<8x8x128xbf16, #tpu.memory_space<vmem>>, vector<1x8x128xbf16>,
    %c0_77 = arith.constant 0 : index
    %c0_78 = arith.constant 0 : index
    %c0_79 = arith.constant 0 : index
    %241 = vector.load %arg8[%c0_77, %c0_78, %c0_79] : memref<8x8x128xbf16, #tpu.memory_space<vmem>>, vector<8x8x128xbf16>
    %242 = vector.shape_cast %241 : vector<8x8x128xbf16> to vector<64x128xbf16>
    %c0_80 = arith.constant 0 : index
    %c0_81 = arith.constant 0 : index
    %243 = vector.load %arg5[%c0_80, %c0_81] : memref<128x1xbf16, #tpu.memory_space<vmem>>, vector<128x1xbf16>
    %cst_82 = arith.constant dense<0.000000e+00> : vector<64x1xf32>
    %244 = tpu.matmul %242, %243, %cst_82 {dimension_numbers = #tpu.dot_dimension_numbers<[1], [0], [0], [1], [0, 0, 1, 1], [], []>} : vector<64x128xbf16>, vector<128x1xbf16>, vector<64x1xf32> -> vector<64x1xf32>
    %c0_83 = arith.constant 0 : index
    %c0_84 = arith.constant 0 : index
    %245 = vector.load %arg6[%c0_83, %c0_84] : memref<1x1xf32, #tpu.memory_space<vmem>>, vector<1x1xf32>
    %246 = vector.broadcast %245 : vector<1x1xf32> to vector<64x1xf32>
    %247 = arith.addf %244, %246 : vector<64x1xf32>
    %248 = vector.shape_cast %247 : vector<64x1xf32> to vector<8x8x1xf32>
    %c0_85 = arith.constant 0 : index
    %c0_86 = arith.constant 0 : index
    %c0_87 = arith.constant 0 : index
    %249 = vector.load %arg7[%c0_85, %c0_86, %c0_87] : memref<8x8x1xf32, #tpu.memory_space<vmem>>, vector<8x8x1xf32>
    tpu.vector_store %arg7[%c0_85, %c0_86, %c0_87], %248 {strides = array<i32>} : memref<8x8x1xf32, #tpu.memory_space<vmem>>, vector<8x8x1xf32>,
    return
  }
  func.func @transform_0(%arg0: i32) -> (i32, i32, i32) {
    %c0_i32 = arith.constant 0 : i32
    %c0_i32_0 = arith.constant 0 : i32
    %c0_i32_1 = arith.constant 0 : i32
    return %c0_i32, %arg0, %c0_i32_0 : i32, i32, i32
  }
  func.func @transform_1(%arg0: i32) -> (i32, i32) {
    %c0_i32 = arith.constant 0 : i32
    %c0_i32_0 = arith.constant 0 : i32
    %c0_i32_1 = arith.constant 0 : i32
    return %c0_i32, %c0_i32_0 : i32, i32
  }
  func.func @transform_2(%arg0: i32) -> (i32, i32) {
    %c0_i32 = arith.constant 0 : i32
    %c0_i32_0 = arith.constant 0 : i32
    %c0_i32_1 = arith.constant 0 : i32
    return %c0_i32, %c0_i32_0 : i32, i32
  }
  func.func @transform_3(%arg0: i32) -> (i32, i32) {
    %c0_i32 = arith.constant 0 : i32
    %c0_i32_0 = arith.constant 0 : i32
    %c0_i32_1 = arith.constant 0 : i32
    return %c0_i32, %c0_i32_0 : i32, i32
  }
  func.func @transform_4(%arg0: i32) -> (i32, i32) {
    %c0_i32 = arith.constant 0 : i32
    %c0_i32_0 = arith.constant 0 : i32
    %c0_i32_1 = arith.constant 0 : i32
    return %c0_i32, %c0_i32_0 : i32, i32
  }
  func.func @transform_5(%arg0: i32) -> (i32, i32) {
    %c0_i32 = arith.constant 0 : i32
    %c0_i32_0 = arith.constant 0 : i32
    %c0_i32_1 = arith.constant 0 : i32
    return %c0_i32, %c0_i32_0 : i32, i32
  }
  func.func @transform_6(%arg0: i32) -> (i32, i32, i32) {
    %c0_i32 = arith.constant 0 : i32
    %c0_i32_0 = arith.constant 0 : i32
    %c0_i32_1 = arith.constant 0 : i32
    return %c0_i32, %arg0, %c0_i32_0 : i32, i32, i32
  }
}

</mosaic_0001>

<llo_original>
// kernel: model_forward.2
$region0: #{model_forward.2}
  #allocation0 [shape = 'u32[]', space=smem, size = 0x4, offset = 0x4, fixed_abs, tag = 'smem constant byte address 0x4 - core index']
  #allocation1 [shape = 'u32[144,128]{1,0:T(1,128)}', space=vmem, size = 0x12000, scoped, tag = 'internal scratch']
  #allocation2 [shape = 'bf16[8,8,512]{2,1,0:T(8,128)(2,1)}', space=vmem, size = 0x10000, scoped, tag = 'scratch operand']
  %s0 = inlined_call_operand.vmem [shape: bf16[8,8,8], index: 0, kind: input, shape index: {}]
  %s1 = inlined_call_operand.hbm [shape: bf16[8,640], index: 1, kind: input, shape index: {}]
  %s2 = inlined_call_operand.hbm [shape: bf16[128,512], index: 2, kind: input, shape index: {}]
  %s3 = inlined_call_operand.hbm [shape: f32[1,512], index: 3, kind: input, shape index: {}]
  %s4 = inlined_call_operand.vmem [shape: bf16[8,8,128], index: 4, kind: output, shape index: {}]
  %s5 = sld [smem:[#allocation0]]
  $region38: #{model_forward.2} parent=0
    _
  %s7 = ssub.s32 1, %s5
  %s8 = scalar_select 0, %s7, %s5
  $region1: #{model_forward.2} parent=0
    #allocation3 [shape = 'u8[10240]{0}', space=vmem, size = 0x2800, scoped, tag = 'input window, operand 1, single buffered']
    #allocation4 [shape = 's32[1]{0}', space=sflag, size = 0x4, scoped, tag = 'scoped memory for model_forward.2']
    #allocation5 [shape = 'u8[131072]{0}', space=vmem, size = 0x20000, scoped, tag = 'input window, operand 2, single buffered']
    #allocation6 [shape = 's32[1]{0}', space=sflag, size = 0x4, scoped, tag = 'scoped memory for model_forward.2']
    #allocation7 [shape = 'u8[2048]{0}', space=vmem, size = 0x800, scoped, tag = 'input window, operand 3, single buffered']
    %9 = vsyncpa [#allocation4], 0
    %10 = vsyncpa [#allocation6], 0
    // Predicated region
    $region2: #{model_forward.2} parent=1 // pred_check
      _
    $region3: #{model_forward.2} parent=1 // pred_check_branch
      %12 = sbr.rel (0) target = $region5
    $region4: #{model_forward.2} parent=1 // pred_region
      _
    $region5: #{model_forward.2} parent=1 // pred_fallthru
      _
    // Predicated region
    $region6: #{model_forward.2} parent=1 // pred_check
      _
    $region7: #{model_forward.2} parent=1 // pred_check_branch
      %14 = sbr.rel (0) target = $region9
    $region8: #{model_forward.2} parent=1 // pred_region
      %s16 = ssub.s32 320, 320
      %17 = vsyncadd [#allocation4], %s16
      %s19 = sshll.u32 [#allocation3], 4
      %s20 = int_to_ptr.vmem [resolvable:$true] %s19
      %22 = dma.hbm_to_vmem [thread:$0]  %s1, 320, %s20, [#allocation4]
    $region9: #{model_forward.2} parent=1 // pred_fallthru
      _
    // Predicated region
    $region10: #{model_forward.2} parent=1 // pred_check
      _
    $region11: #{model_forward.2} parent=1 // pred_check_branch
      %24 = sbr.rel (0) target = $region13
    $region12: #{model_forward.2} parent=1 // pred_region
      %s26 = ssub.s32 4096, 4096
      %27 = vsyncadd [#allocation6], %s26
      %s28 = sshll.u32 [#allocation5], 4
      %s29 = int_to_ptr.vmem [resolvable:$true] %s28
      %34 = dma.hbm_to_vmem [thread:$0]  %s2, 4096, %s29, [#allocation6], 256, 256, 16
    $region13: #{model_forward.2} parent=1 // pred_fallthru
      _
    // Predicated region
    $region14: #{model_forward.2} parent=1 // pred_check
      _
    $region15: #{model_forward.2} parent=1 // pred_check_branch
      %36 = sbr.rel (0) target = $region17
    $region16: #{model_forward.2} parent=1 // pred_region
      %s38 = ssub.s32 64, 64
      %39 = vsyncadd [#allocation6], %s38
      %s41 = sshll.u32 [#allocation7], 4
      %s42 = int_to_ptr.vmem [resolvable:$true] %s41
      %44 = dma.hbm_to_vmem [thread:$0]  %s3, 64, %s42, [#allocation6]
    $region17: #{model_forward.2} parent=1 // pred_fallthru
      _
    // Predicated region
    $region18: #{model_forward.2} parent=1 // pred_check
      _
    $region19: #{model_forward.2} parent=1 // pred_check_branch
      %46 = sbr.rel (0) target = $region21
    $region20: #{model_forward.2} parent=1 // pred_region
      %47 = dma.done [#allocation4], 320
    $region21: #{model_forward.2} parent=1 // pred_fallthru
      _
    // Predicated region
    $region22: #{model_forward.2} parent=1 // pred_check
      _
    $region23: #{model_forward.2} parent=1 // pred_check_branch
      %49 = sbr.rel (0) target = $region25
    $region24: #{model_forward.2} parent=1 // pred_region
      %50 = dma.done [#allocation6], 4096
    $region25: #{model_forward.2} parent=1 // pred_fallthru
      _
    // Predicated region
    $region26: #{model_forward.2} parent=1 // pred_check
      _
    $region27: #{model_forward.2} parent=1 // pred_check_branch
      %52 = sbr.rel (0) target = $region29
    $region28: #{model_forward.2} parent=1 // pred_region
      %53 = dma.done [#allocation6], 64
    $region29: #{model_forward.2} parent=1 // pred_fallthru
      _
    %v55 = vld [vmem:[%s0] sm:$0xf]
    %v56 = vld [vmem:[%s0 + $0x4] sm:$0xf]
    %v57 = vld [vmem:[%s0 + $0x8] sm:$0xf]
    %v58 = vld [vmem:[%s0 + $0xc] sm:$0xf]
    %v59 = vld [vmem:[%s0 + $0x10] sm:$0xf]
    %v60 = vld [vmem:[%s0 + $0x14] sm:$0xf]
    %v61 = vld [vmem:[%s0 + $0x18] sm:$0xf]
    %v62 = vld [vmem:[%s0 + $0x1c] sm:$0xf]
    %v63 = vld [vmem:[#allocation3] sm:$0xff]
    %v64 = vld [vmem:[#allocation3 + $0x8] sm:$0xff]
    %v65 = vld [vmem:[#allocation3 + $0x10] sm:$0xf]
    %v74 = vunpack.c.l.b16 %v55
    %v75 = vunpack.c.l.b16 %v56
    %v76 = vunpack.c.l.b16 %v57
    %v77 = vunpack.c.l.b16 %v58
    %v78 = vunpack.c.l.b16 %v59
    %v79 = vunpack.c.l.b16 %v60
    %v80 = vunpack.c.l.b16 %v61
    %v81 = vunpack.c.l.b16 %v62
    %v82 = vpack.c.b16 %v75, %v74
    %v83 = vpack.c.b16 %v77, %v76
    %v84 = vpack.c.b16 %v79, %v78
    %v85 = vpack.c.b16 %v81, %v80
    %v89 = vunpack.c.l.b16 %v63
    %v90 = vunpack.c.h.b16 %v63
    %v91 = vunpack.c.l.b16 %v64
    %v92 = vunpack.c.h.b16 %v64
    %v93 = vunpack.c.l.b16 %v65
    %v94 = vpack.c.b16 %v89, %v89
    %v95 = vpack.c.b16 %v90, %v90
    %v96 = vpack.c.b16 %v91, %v91
    %v97 = vpack.c.b16 %v92, %v92
    %v98 = vpack.c.b16 %v93, %v93
    %vm99 = vcmask 64512
    %v101 = vsel %vm99, %v82, 0
    %v104 = vsel %vm99, %v83, 0
    %v107 = vsel %vm99, %v84, 0
    %v110 = vsel %vm99, %v85, 0
    %vm112 = vcmask 1043456
    %v114 = vsel %vm112, %v94, 0
    %v117 = vsel %vm112, %v95, 0
    %v120 = vsel %vm112, %v96, 0
    %v123 = vsel %vm112, %v97, 0
    %v126 = vsel %vm112, %v98, 0
    %128 = vmatprep.subr.bf16.mxu0 0
    %129 = vmatpush1.bf16.msra.mxu0 0
    %130 = vmatprep.subr.bf16.mxu0 0
    %131 = vmatpush1.bf16.msra.mxu0 0
    %132 = vmatprep.subr.bf16.mxu0 0
    %133 = vmatpush1.bf16.msra.mxu0 0
    %134 = vmatprep.subr.bf16.mxu0 0
    %135 = vmatpush1.bf16.msra.mxu0 0
    %136 = vmatprep.subr.bf16.mxu0 0
    %137 = vmatpush1.bf16.msra.mxu0 0
    %138 = vmatprep.subr.bf16.mxu0 0
    %139 = vmatpush1.bf16.msra.mxu0 0
    %140 = vmatprep.subr.bf16.mxu0 0
    %141 = vmatpush1.bf16.msra.mxu0 0
    %142 = vmatprep.subr.bf16.mxu0 %v117
    %143 = vmatpush1.bf16.msra.mxu0 %v114
    %144 = vmatprep.subr.bf16.mxu0 0
    %145 = vmatpush2.bf16.msra.mxu0 0
    %146 = vmatprep.subr.bf16.mxu0 0
    %147 = vmatpush2.bf16.msra.mxu0 0
    %148 = vmatprep.subr.bf16.mxu0 0
    %149 = vmatpush2.bf16.msra.mxu0 0
    %150 = vmatprep.subr.bf16.mxu0 0
    %151 = vmatpush2.bf16.msra.mxu0 0
    %152 = vmatprep.subr.bf16.mxu0 0
    %153 = vmatpush2.bf16.msra.mxu0 0
    %154 = vmatprep.subr.bf16.mxu0 0
    %155 = vmatpush2.bf16.msra.mxu0 0
    %156 = vmatprep.subr.bf16.mxu0 0
    %157 = vmatpush2.bf16.msra.mxu0 0
    %158 = vmatprep.subr.bf16.mxu0 0
    %159 = vmatpush2.bf16.msra.mxu0 0
    %160 = vmatprep.mubr.bf16.mxu0 0
    %161 = vmatmul.mubr.bf16.gmra.mxu0 %v101
    %v162 = vpop.f32.mrf.mxu0
    %v163 = vadd.f32 0.0, %v162
    %v164 = vpop.f32.mrf.mxu0
    %v165 = vadd.f32 0.0, %v164
    %v166 = vpop.f32.mrf.mxu0
    %v167 = vadd.f32 0.0, %v166
    %v168 = vpop.f32.mrf.mxu0
    %v169 = vadd.f32 0.0, %v168
    %170 = vmatprep.mubr.bf16.mxu0 0
    %171 = vmatmul.mubr.bf16.gmra.mxu0 %v104
    %v172 = vpop.f32.mrf.mxu0
    %v173 = vadd.f32 0.0, %v172
    %v174 = vpop.f32.mrf.mxu0
    %v175 = vadd.f32 0.0, %v174
    %v176 = vpop.f32.mrf.mxu0
    %v177 = vadd.f32 0.0, %v176
    %v178 = vpop.f32.mrf.mxu0
    %v179 = vadd.f32 0.0, %v178
    %180 = vmatprep.mubr.bf16.mxu0 0
    %181 = vmatmul.mubr.bf16.gmra.mxu0 %v107
    %v182 = vpop.f32.mrf.mxu0
    %v183 = vadd.f32 0.0, %v182
    %v184 = vpop.f32.mrf.mxu0
    %v185 = vadd.f32 0.0, %v184
    %v186 = vpop.f32.mrf.mxu0
    %v187 = vadd.f32 0.0, %v186
    %v188 = vpop.f32.mrf.mxu0
    %v189 = vadd.f32 0.0, %v188
    %190 = vmatprep.mubr.bf16.mxu0 0
    %191 = vmatmul.mubr.bf16.gmra.mxu0 %v110
    %v192 = vpop.f32.mrf.mxu0
    %v193 = vadd.f32 0.0, %v192
    %v194 = vpop.f32.mrf.mxu0
    %v195 = vadd.f32 0.0, %v194
    %v196 = vpop.f32.mrf.mxu0
    %v197 = vadd.f32 0.0, %v196
    %v198 = vpop.f32.mrf.mxu0
    %v199 = vadd.f32 0.0, %v198
    %200 = vdwg.mxu0
    %201 = vmatprep.subr.bf16.mxu0 0
    %202 = vmatpush1.bf16.msra.mxu0 0
    %203 = vmatprep.subr.bf16.mxu0 0
    %204 = vmatpush1.bf16.msra.mxu0 0
    %205 = vmatprep.subr.bf16.mxu0 0
    %206 = vmatpush1.bf16.msra.mxu0 0
    %207 = vmatprep.subr.bf16.mxu0 0
    %208 = vmatpush1.bf16.msra.mxu0 0
    %209 = vmatprep.subr.bf16.mxu0 0
    %210 = vmatpush1.bf16.msra.mxu0 0
    %211 = vmatprep.subr.bf16.mxu0 0
    %212 = vmatpush1.bf16.msra.mxu0 0
    %213 = vmatprep.subr.bf16.mxu0 0
    %214 = vmatpush1.bf16.msra.mxu0 0
    %215 = vmatprep.subr.bf16.mxu0 %v123
    %216 = vmatpush1.bf16.msra.mxu0 %v120
    %217 = vmatprep.subr.bf16.mxu0 0
    %218 = vmatpush2.bf16.msra.mxu0 0
    %219 = vmatprep.subr.bf16.mxu0 0
    %220 = vmatpush2.bf16.msra.mxu0 0
    %221 = vmatprep.subr.bf16.mxu0 0
    %222 = vmatpush2.bf16.msra.mxu0 0
    %223 = vmatprep.subr.bf16.mxu0 0
    %224 = vmatpush2.bf16.msra.mxu0 0
    %225 = vmatprep.subr.bf16.mxu0 0
    %226 = vmatpush2.bf16.msra.mxu0 0
    %227 = vmatprep.subr.bf16.mxu0 0
    %228 = vmatpush2.bf16.msra.mxu0 0
    %229 = vmatprep.subr.bf16.mxu0 0
    %230 = vmatpush2.bf16.msra.mxu0 0
    %231 = vmatprep.subr.bf16.mxu0 0
    %232 = vmatpush2.bf16.msra.mxu0 0
    %233 = vmatprep.mubr.bf16.mxu0 0
    %234 = vmatmul.mubr.bf16.gmra.mxu0 %v101
    %v235 = vpop.f32.mrf.mxu0
    %v236 = vadd.f32 0.0, %v235
    %v237 = vpop.f32.mrf.mxu0
    %v238 = vadd.f32 0.0, %v237
    %v239 = vpop.f32.mrf.mxu0
    %v240 = vadd.f32 0.0, %v239
    %v241 = vpop.f32.mrf.mxu0
    %v242 = vadd.f32 0.0, %v241
    %243 = vmatprep.mubr.bf16.mxu0 0
    %244 = vmatmul.mubr.bf16.gmra.mxu0 %v104
    %v245 = vpop.f32.mrf.mxu0
    %v246 = vadd.f32 0.0, %v245
    %v247 = vpop.f32.mrf.mxu0
    %v248 = vadd.f32 0.0, %v247
    %v249 = vpop.f32.mrf.mxu0
    %v250 = vadd.f32 0.0, %v249
    %v251 = vpop.f32.mrf.mxu0
    %v252 = vadd.f32 0.0, %v251
    %253 = vmatprep.mubr.bf16.mxu0 0
    %254 = vmatmul.mubr.bf16.gmra.mxu0 %v107
    %v255 = vpop.f32.mrf.mxu0
    %v256 = vadd.f32 0.0, %v255
    %v257 = vpop.f32.mrf.mxu0
    %v258 = vadd.f32 0.0, %v257
    %v259 = vpop.f32.mrf.mxu0
    %v260 = vadd.f32 0.0, %v259
    %v261 = vpop.f32.mrf.mxu0
    %v262 = vadd.f32 0.0, %v261
    %263 = vmatprep.mubr.bf16.mxu0 0
    %264 = vmatmul.mubr.bf16.gmra.mxu0 %v110
    %v265 = vpop.f32.mrf.mxu0
    %v266 = vadd.f32 0.0, %v265
    %v267 = vpop.f32.mrf.mxu0
    %v268 = vadd.f32 0.0, %v267
    %v269 = vpop.f32.mrf.mxu0
    %v270 = vadd.f32 0.0, %v269
    %v271 = vpop.f32.mrf.mxu0
    %v272 = vadd.f32 0.0, %v271
    %273 = vdwg.mxu0
    %274 = vmatprep.subr.bf16.mxu0 0
    %275 = vmatpush1.bf16.msra.mxu0 0
    %276 = vmatprep.subr.bf16.mxu0 0
    %277 = vmatpush1.bf16.msra.mxu0 0
    %278 = vmatprep.subr.bf16.mxu0 0
    %279 = vmatpush1.bf16.msra.mxu0 0
    %280 = vmatprep.subr.bf16.mxu0 0
    %281 = vmatpush1.bf16.msra.mxu0 0
    %282 = vmatprep.subr.bf16.mxu0 0
    %283 = vmatpush1.bf16.msra.mxu0 0
    %284 = vmatprep.subr.bf16.mxu0 0
    %285 = vmatpush1.bf16.msra.mxu0 0
    %286 = vmatprep.subr.bf16.mxu0 0
    %287 = vmatpush1.bf16.msra.mxu0 0
    %288 = vmatprep.subr.bf16.mxu0 0
    %289 = vmatpush1.bf16.msra.mxu0 %v126
    %290 = vmatprep.subr.bf16.mxu0 0
    %291 = vmatpush2.bf16.msra.mxu0 0
    %292 = vmatprep.subr.bf16.mxu0 0
    %293 = vmatpush2.bf16.msra.mxu0 0
    %294 = vmatprep.subr.bf16.mxu0 0
    %295 = vmatpush2.bf16.msra.mxu0 0
    %296 = vmatprep.subr.bf16.mxu0 0
    %297 = vmatpush2.bf16.msra.mxu0 0
    %298 = vmatprep.subr.bf16.mxu0 0
    %299 = vmatpush2.bf16.msra.mxu0 0
    %300 = vmatprep.subr.bf16.mxu0 0
    %301 = vmatpush2.bf16.msra.mxu0 0
    %302 = vmatprep.subr.bf16.mxu0 0
    %303 = vmatpush2.bf16.msra.mxu0 0
    %304 = vmatprep.subr.bf16.mxu0 0
    %305 = vmatpush2.bf16.msra.mxu0 0
    %306 = vmatprep.mubr.bf16.mxu0 0
    %307 = vmatmul.mubr.bf16.gmra.mxu0 %v101
    %v308 = vpop.f32.mrf.mxu0
    %v309 = vadd.f32 0.0, %v308
    %v310 = vpop.f32.mrf.mxu0
    %v311 = vpop.f32.mrf.mxu0
    %v312 = vadd.f32 0.0, %v311
    %v313 = vpop.f32.mrf.mxu0
    %314 = vmatprep.mubr.bf16.mxu0 0
    %315 = vmatmul.mubr.bf16.gmra.mxu0 %v104
    %v316 = vpop.f32.mrf.mxu0
    %v317 = vadd.f32 0.0, %v316
    %v318 = vpop.f32.mrf.mxu0
    %v319 = vpop.f32.mrf.mxu0
    %v320 = vadd.f32 0.0, %v319
    %v321 = vpop.f32.mrf.mxu0
    %322 = vmatprep.mubr.bf16.mxu0 0
    %323 = vmatmul.mubr.bf16.gmra.mxu0 %v107
    %v324 = vpop.f32.mrf.mxu0
    %v325 = vadd.f32 0.0, %v324
    %v326 = vpop.f32.mrf.mxu0
    %v327 = vpop.f32.mrf.mxu0
    %v328 = vadd.f32 0.0, %v327
    %v329 = vpop.f32.mrf.mxu0
    %330 = vmatprep.mubr.bf16.mxu0 0
    %331 = vmatmul.mubr.bf16.gmra.mxu0 %v110
    %v332 = vpop.f32.mrf.mxu0
    %v333 = vadd.f32 0.0, %v332
    %v334 = vpop.f32.mrf.mxu0
    %v335 = vpop.f32.mrf.mxu0
    %v336 = vadd.f32 0.0, %v335
    %v337 = vpop.f32.mrf.mxu0
    %338 = vdwg.mxu0
    %v339 = vld [vmem:[#allocation7] sm:$0xf]
    %v341 = vlaneseq
    %v342 = vshrl.u32 %v341, 7
    %v343 = vsub.s32 0, %v342
    %v344 = vrot.slane %v339, %v343
    %v345 = vlaneseq
    %v346 = vshrl.u32 %v345, 7
    %v347 = vsub.s32 1, %v346
    %v348 = vrot.slane %v339, %v347
    %v349 = vlaneseq
    %v350 = vshrl.u32 %v349, 7
    %v351 = vsub.s32 2, %v350
    %v352 = vrot.slane %v339, %v351
    %v353 = vlaneseq
    %v354 = vshrl.u32 %v353, 7
    %v355 = vsub.s32 3, %v354
    %v356 = vrot.slane %v339, %v355
    %v361 = vadd.f32 %v163, %v344
    %v362 = vadd.f32 %v165, %v348
    %v363 = vadd.f32 %v236, %v352
    %v364 = vadd.f32 %v238, %v356
    %v365 = vadd.f32 %v167, %v344
    %v366 = vadd.f32 %v169, %v348
    %v367 = vadd.f32 %v240, %v352
    %v368 = vadd.f32 %v242, %v356
    %v369 = vadd.f32 %v173, %v344
    %v370 = vadd.f32 %v175, %v348
    %v371 = vadd.f32 %v246, %v352
    %v372 = vadd.f32 %v248, %v356
    %v373 = vadd.f32 %v177, %v344
    %v374 = vadd.f32 %v179, %v348
    %v375 = vadd.f32 %v250, %v352
    %v376 = vadd.f32 %v252, %v356
    %v377 = vadd.f32 %v183, %v344
    %v378 = vadd.f32 %v185, %v348
    %v379 = vadd.f32 %v256, %v352
    %v380 = vadd.f32 %v258, %v356
    %v381 = vadd.f32 %v187, %v344
    %v382 = vadd.f32 %v189, %v348
    %v383 = vadd.f32 %v260, %v352
    %v384 = vadd.f32 %v262, %v356
    %v385 = vadd.f32 %v193, %v344
    %v386 = vadd.f32 %v195, %v348
    %v387 = vadd.f32 %v266, %v352
    %v388 = vadd.f32 %v268, %v356
    %v389 = vadd.f32 %v197, %v344
    %v390 = vadd.f32 %v199, %v348
    %v391 = vadd.f32 %v270, %v352
    %v392 = vadd.f32 %v272, %v356
    %v393 = vpack.c.bf16 %v361, %v361
    %v394 = vpack.c.bf16 %v362, %v362
    %v395 = vpack.c.bf16 %v365, %v365
    %v396 = vpack.c.bf16 %v366, %v366
    %v397 = vpack.c.bf16 %v369, %v369
    %v398 = vpack.c.bf16 %v370, %v370
    %v399 = vpack.c.bf16 %v373, %v373
    %v400 = vpack.c.bf16 %v374, %v374
    %v401 = vpack.c.bf16 %v377, %v377
    %v402 = vpack.c.bf16 %v378, %v378
    %v403 = vpack.c.bf16 %v381, %v381
    %v404 = vpack.c.bf16 %v382, %v382
    %v405 = vpack.c.bf16 %v385, %v385
    %v406 = vpack.c.bf16 %v386, %v386
    %v407 = vpack.c.bf16 %v389, %v389
    %v408 = vpack.c.bf16 %v390, %v390
    %v425 = vunpack.c.l.b16 %v393
    %v426 = vunpack.c.l.b16 %v394
    %v427 = vunpack.c.l.b16 %v395
    %v428 = vunpack.c.l.b16 %v396
    %v429 = vunpack.c.l.b16 %v397
    %v430 = vunpack.c.l.b16 %v398
    %v431 = vunpack.c.l.b16 %v399
    %v432 = vunpack.c.l.b16 %v400
    %v433 = vunpack.c.l.b16 %v401
    %v434 = vunpack.c.l.b16 %v402
    %v435 = vunpack.c.l.b16 %v403
    %v436 = vunpack.c.l.b16 %v404
    %v437 = vunpack.c.l.b16 %v405
    %v438 = vunpack.c.l.b16 %v406
    %v439 = vunpack.c.l.b16 %v407
    %v440 = vunpack.c.l.b16 %v408
    %v441 = vpack.c.b16 %v426, %v425
    %v442 = vpack.c.b16 %v428, %v427
    %v443 = vpack.c.b16 %v430, %v429
    %v444 = vpack.c.b16 %v432, %v431
    %v445 = vpack.c.b16 %v434, %v433
    %v446 = vpack.c.b16 %v436, %v435
    %v447 = vpack.c.b16 %v438, %v437
    %v448 = vpack.c.b16 %v440, %v439
    %457 = vst [vmem:[#allocation2] sm:$0xff] %v441
    %458 = vst [vmem:[#allocation2 + $0x10] sm:$0xff] %v442
    %459 = vst [vmem:[#allocation2 + $0x20] sm:$0xff] %v443
    %460 = vst [vmem:[#allocation2 + $0x30] sm:$0xff] %v444
    %461 = vst [vmem:[#allocation2 + $0x40] sm:$0xff] %v445
    %462 = vst [vmem:[#allocation2 + $0x50] sm:$0xff] %v446
    %463 = vst [vmem:[#allocation2 + $0x60] sm:$0xff] %v447
    %464 = vst [vmem:[#allocation2 + $0x70] sm:$0xff] %v448
    %v465 = vpack.c.bf16 %v364, %v364
    %v466 = vpack.c.bf16 %v368, %v368
    %v467 = vpack.c.bf16 %v372, %v372
    %v468 = vpack.c.bf16 %v376, %v376
    %v469 = vpack.c.bf16 %v380, %v380
    %v470 = vpack.c.bf16 %v384, %v384
    %v471 = vpack.c.bf16 %v388, %v388
    %v472 = vpack.c.bf16 %v392, %v392
    %473 = vst [vmem:[#allocation2 + $0xc] sm:$0xf] %v465
    %474 = vst [vmem:[#allocation2 + $0x1c] sm:$0xf] %v466
    %475 = vst [vmem:[#allocation2 + $0x2c] sm:$0xf] %v467
    %476 = vst [vmem:[#allocation2 + $0x3c] sm:$0xf] %v468
    %477 = vst [vmem:[#allocation2 + $0x4c] sm:$0xf] %v469
    %478 = vst [vmem:[#allocation2 + $0x5c] sm:$0xf] %v470
    %479 = vst [vmem:[#allocation2 + $0x6c] sm:$0xf] %v471
    %480 = vst [vmem:[#allocation2 + $0x7c] sm:$0xf] %v472
    %v481 = vpack.c.bf16 %v363, %v363
    %482 = vst [vmem:[#allocation2 + $0x8] sm:$0xf] %v481
    %v483 = vsub.f32 %v312, %v309
    %v484 = vsub.f32 %v317, %v312
    %v485 = vsub.f32 %v320, %v317
    %v486 = vsub.f32 %v325, %v320
    %v487 = vsub.f32 %v328, %v325
    %v488 = vsub.f32 %v333, %v328
    %v489 = vsub.f32 %v336, %v333
    %v490 = vadd.f32 %v367, %v483
    %v491 = vadd.f32 %v371, %v484
    %v492 = vadd.f32 %v375, %v485
    %v493 = vadd.f32 %v379, %v486
    %v494 = vadd.f32 %v383, %v487
    %v495 = vadd.f32 %v387, %v488
    %v496 = vadd.f32 %v391, %v489
    %v497 = vpack.c.bf16 %v490, %v490
    %v498 = vpack.c.bf16 %v491, %v491
    %v499 = vpack.c.bf16 %v492, %v492
    %v500 = vpack.c.bf16 %v493, %v493
    %v501 = vpack.c.bf16 %v494, %v494
    %v502 = vpack.c.bf16 %v495, %v495
    %v503 = vpack.c.bf16 %v496, %v496
    %s504 = scalar_lea.vmem [#allocation2], 16
    %505 = vst [vmem:[%s504 + $0x8] sm:$0xf] %v497
    %506 = vst [vmem:[%s504 + $0x18] sm:$0xf] %v498
    %507 = vst [vmem:[%s504 + $0x28] sm:$0xf] %v499
    %508 = vst [vmem:[%s504 + $0x38] sm:$0xf] %v500
    %509 = vst [vmem:[%s504 + $0x48] sm:$0xf] %v501
    %510 = vst [vmem:[%s504 + $0x58] sm:$0xf] %v502
    %511 = vst [vmem:[%s504 + $0x68] sm:$0xf] %v503
    %v512 = vld [vmem:[#allocation5] sm:$0xff]
    %v513 = vld [vmem:[#allocation5 + $0x8] sm:$0xff]
    %v514 = vld [vmem:[#allocation5 + $0x10] sm:$0xff]
    %v515 = vld [vmem:[#allocation5 + $0x18] sm:$0xff]
    %v516 = vld [vmem:[#allocation5 + $0x20] sm:$0xff]
    %v517 = vld [vmem:[#allocation5 + $0x28] sm:$0xff]
    %v518 = vld [vmem:[#allocation5 + $0x30] sm:$0xff]
    %v519 = vld [vmem:[#allocation5 + $0x38] sm:$0xff]
    %v520 = vld [vmem:[#allocation5 + $0x40] sm:$0xff]
    %v521 = vld [vmem:[#allocation5 + $0x48] sm:$0xff]
    %v522 = vld [vmem:[#allocation5 + $0x50] sm:$0xff]
    %v523 = vld [vmem:[#allocation5 + $0x58] sm:$0xff]
    %v524 = vld [vmem:[#allocation5 + $0x60] sm:$0xff]
    %v525 = vld [vmem:[#allocation5 + $0x68] sm:$0xff]
    %v526 = vld [vmem:[#allocation5 + $0x70] sm:$0xff]
    %v527 = vld [vmem:[#allocation5 + $0x78] sm:$0xff]
    %v528 = vld [vmem:[#allocation5 + $0x80] sm:$0xff]
    %v529 = vld [vmem:[#allocation5 + $0x88] sm:$0xff]
    %v530 = vld [vmem:[#allocation5 + $0x90] sm:$0xff]
    %v531 = vld [vmem:[#allocation5 + $0x98] sm:$0xff]
    %v532 = vld [vmem:[#allocation5 + $0xa0] sm:$0xff]
    %v533 = vld [vmem:[#allocation5 + $0xa8] sm:$0xff]
    %v534 = vld [vmem:[#allocation5 + $0xb0] sm:$0xff]
    %v535 = vld [vmem:[#allocation5 + $0xb8] sm:$0xff]
    %v536 = vld [vmem:[#allocation5 + $0xc0] sm:$0xff]
    %v537 = vld [vmem:[#allocation5 + $0xc8] sm:$0xff]
    %v538 = vld [vmem:[#allocation5 + $0xd0] sm:$0xff]
    %v539 = vld [vmem:[#allocation5 + $0xd8] sm:$0xff]
    %v540 = vld [vmem:[#allocation5 + $0xe0] sm:$0xff]
    %v541 = vld [vmem:[#allocation5 + $0xe8] sm:$0xff]
    %v542 = vld [vmem:[#allocation5 + $0xf0] sm:$0xff]
    %v543 = vld [vmem:[#allocation5 + $0xf8] sm:$0xff]
    %v544 = vld [vmem:[#allocation2] sm:$0xff]
    %v545 = vld [vmem:[#allocation2 + $0x8] sm:$0xff]
    %v546 = vunpack.c.l.bf16 %v544
    %v547 = vunpack.c.h.bf16 %v544
    %v548 = vunpack.c.l.bf16 %v545
    %v549 = vunpack.c.h.bf16 %v545
    %v582 = vunpack.c.l.b16 %v512
    %v583 = vunpack.c.h.b16 %v512
    %v584 = vunpack.c.l.b16 %v513
    %v585 = vunpack.c.h.b16 %v513
    %v586 = vunpack.c.l.b16 %v514
    %v587 = vunpack.c.h.b16 %v514
    %v588 = vunpack.c.l.b16 %v515
    %v589 = vunpack.c.h.b16 %v515
    %v590 = vunpack.c.l.b16 %v516
    %v591 = vunpack.c.h.b16 %v516
    %v592 = vunpack.c.l.b16 %v517
    %v593 = vunpack.c.h.b16 %v517
    %v594 = vunpack.c.l.b16 %v518
    %v595 = vunpack.c.h.b16 %v518
    %v596 = vunpack.c.l.b16 %v519
    %v597 = vunpack.c.h.b16 %v519
    %v598 = vunpack.c.l.b16 %v520
    %v599 = vunpack.c.h.b16 %v520
    %v600 = vunpack.c.l.b16 %v521
    %v601 = vunpack.c.h.b16 %v521
    %v602 = vunpack.c.l.b16 %v522
    %v603 = vunpack.c.h.b16 %v522
    %v604 = vunpack.c.l.b16 %v523
    %v605 = vunpack.c.h.b16 %v523
    %v606 = vunpack.c.l.b16 %v524
    %v607 = vunpack.c.h.b16 %v524
    %v608 = vunpack.c.l.b16 %v525
    %v609 = vunpack.c.h.b16 %v525
    %v610 = vunpack.c.l.b16 %v526
    %v611 = vunpack.c.h.b16 %v526
    %v612 = vunpack.c.l.b16 %v527
    %v613 = vunpack.c.h.b16 %v527
    %v614 = vunpack.c.l.b16 %v528
    %v615 = vunpack.c.h.b16 %v528
    %v616 = vunpack.c.l.b16 %v529
    %v617 = vunpack.c.h.b16 %v529
    %v618 = vunpack.c.l.b16 %v530
    %v619 = vunpack.c.h.b16 %v530
    %v620 = vunpack.c.l.b16 %v531
    %v621 = vunpack.c.h.b16 %v531
    %v622 = vunpack.c.l.b16 %v532
    %v623 = vunpack.c.h.b16 %v532
    %v624 = vunpack.c.l.b16 %v533
    %v625 = vunpack.c.h.b16 %v533
    %v626 = vunpack.c.l.b16 %v534
    %v627 = vunpack.c.h.b16 %v534
    %v628 = vunpack.c.l.b16 %v535
    %v629 = vunpack.c.h.b16 %v535
    %v630 = vunpack.c.l.b16 %v536
    %v631 = vunpack.c.h.b16 %v536
    %v632 = vunpack.c.l.b16 %v537
    %v633 = vunpack.c.h.b16 %v537
    %v634 = vunpack.c.l.b16 %v538
    %v635 = vunpack.c.h.b16 %v538
    %v636 = vunpack.c.l.b16 %v539
    %v637 = vunpack.c.h.b16 %v539
    %v638 = vunpack.c.l.b16 %v540
    %v639 = vunpack.c.h.b16 %v540
    %v640 = vunpack.c.l.b16 %v541
    %v641 = vunpack.c.h.b16 %v541
    %v642 = vunpack.c.l.b16 %v542
    %v643 = vunpack.c.h.b16 %v542
    %v644 = vunpack.c.l.b16 %v543
    %v645 = vunpack.c.h.b16 %v543
    %v646 = vpack.c.b16 %v586, %v582
    %v647 = vpack.c.b16 %v587, %v583
    %v648 = vpack.c.b16 %v588, %v584
    %v649 = vpack.c.b16 %v589, %v585
    %v650 = vpack.c.b16 %v594, %v590
    %v651 = vpack.c.b16 %v595, %v591
    %v652 = vpack.c.b16 %v596, %v592
    %v653 = vpack.c.b16 %v597, %v593
    %v654 = vpack.c.b16 %v602, %v598
    %v655 = vpack.c.b16 %v603, %v599
    %v656 = vpack.c.b16 %v604, %v600
    %v657 = vpack.c.b16 %v605, %v601
    %v658 = vpack.c.b16 %v610, %v606
    %v659 = vpack.c.b16 %v611, %v607
    %v660 = vpack.c.b16 %v612, %v608
    %v661 = vpack.c.b16 %v613, %v609
    %v662 = vpack.c.b16 %v618, %v614
    %v663 = vpack.c.b16 %v619, %v615
    %v664 = vpack.c.b16 %v620, %v616
    %v665 = vpack.c.b16 %v621, %v617
    %v666 = vpack.c.b16 %v626, %v622
    %v667 = vpack.c.b16 %v627, %v623
    %v668 = vpack.c.b16 %v628, %v624
    %v669 = vpack.c.b16 %v629, %v625
    %v670 = vpack.c.b16 %v634, %v630
    %v671 = vpack.c.b16 %v635, %v631
    %v672 = vpack.c.b16 %v636, %v632
    %v673 = vpack.c.b16 %v637, %v633
    %v674 = vpack.c.b16 %v642, %v638
    %v675 = vpack.c.b16 %v643, %v639
    %v676 = vpack.c.b16 %v644, %v640
    %v677 = vpack.c.b16 %v645, %v641
    %710 = vmatprep.subr.bf16.mxu0 %v675
    %711 = vmatpush1.bf16.msra.mxu0 %v674
    %712 = vmatprep.subr.bf16.mxu0 %v671
    %713 = vmatpush1.bf16.msra.mxu0 %v670
    %714 = vmatprep.subr.bf16.mxu0 %v667
    %715 = vmatpush1.bf16.msra.mxu0 %v666
    %716 = vmatprep.subr.bf16.mxu0 %v663
    %717 = vmatpush1.bf16.msra.mxu0 %v662
    %718 = vmatprep.subr.bf16.mxu0 %v659
    %719 = vmatpush1.bf16.msra.mxu0 %v658
    %720 = vmatprep.subr.bf16.mxu0 %v655
    %721 = vmatpush1.bf16.msra.mxu0 %v654
    %722 = vmatprep.subr.bf16.mxu0 %v651
    %723 = vmatpush1.bf16.msra.mxu0 %v650
    %724 = vmatprep.subr.bf16.mxu0 %v647
    %725 = vmatpush1.bf16.msra.mxu0 %v646
    %726 = vmatprep.subr.bf16.mxu0 0
    %727 = vmatpush2.bf16.msra.mxu0 0
    %728 = vmatprep.subr.bf16.mxu0 0
    %729 = vmatpush2.bf16.msra.mxu0 0
    %730 = vmatprep.subr.bf16.mxu0 0
    %731 = vmatpush2.bf16.msra.mxu0 0
    %732 = vmatprep.subr.bf16.mxu0 0
    %733 = vmatpush2.bf16.msra.mxu0 0
    %734 = vmatprep.subr.bf16.mxu0 0
    %735 = vmatpush2.bf16.msra.mxu0 0
    %736 = vmatprep.subr.bf16.mxu0 0
    %737 = vmatpush2.bf16.msra.mxu0 0
    %738 = vmatprep.subr.bf16.mxu0 0
    %739 = vmatpush2.bf16.msra.mxu0 0
    %740 = vmatprep.subr.bf16.mxu0 0
    %741 = vmatpush2.bf16.msra.mxu0 0
    %742 = vmatprep.mubr.bf16.mxu0 0
    %743 = vmatmul.mubr.bf16.gmra.mxu0 0
    %v744 = vpop.f32.mrf.mxu0
    %v745 = vadd.f32 0.0, %v744
    %v746 = vpop.f32.mrf.mxu0
    %v747 = vadd.f32 0.0, %v746
    %v748 = vpop.f32.mrf.mxu0
    %v749 = vpop.f32.mrf.mxu0
    %750 = vdwg.mxu0
    %751 = vmatprep.subr.bf16.mxu0 %v677
    %752 = vmatpush1.bf16.msra.mxu0 %v676
    %753 = vmatprep.subr.bf16.mxu0 %v673
    %754 = vmatpush1.bf16.msra.mxu0 %v672
    %755 = vmatprep.subr.bf16.mxu0 %v669
    %756 = vmatpush1.bf16.msra.mxu0 %v668
    %757 = vmatprep.subr.bf16.mxu0 %v665
    %758 = vmatpush1.bf16.msra.mxu0 %v664
    %759 = vmatprep.subr.bf16.mxu0 %v661
    %760 = vmatpush1.bf16.msra.mxu0 %v660
    %761 = vmatprep.subr.bf16.mxu0 %v657
    %762 = vmatpush1.bf16.msra.mxu0 %v656
    %763 = vmatprep.subr.bf16.mxu0 %v653
    %764 = vmatpush1.bf16.msra.mxu0 %v652
    %765 = vmatprep.subr.bf16.mxu0 %v649
    %766 = vmatpush1.bf16.msra.mxu0 %v648
    %767 = vmatprep.subr.bf16.mxu0 0
    %768 = vmatpush2.bf16.msra.mxu0 0
    %769 = vmatprep.subr.bf16.mxu0 0
    %770 = vmatpush2.bf16.msra.mxu0 0
    %771 = vmatprep.subr.bf16.mxu0 0
    %772 = vmatpush2.bf16.msra.mxu0 0
    %773 = vmatprep.subr.bf16.mxu0 0
    %774 = vmatpush2.bf16.msra.mxu0 0
    %775 = vmatprep.subr.bf16.mxu0 0
    %776 = vmatpush2.bf16.msra.mxu0 0
    %777 = vmatprep.subr.bf16.mxu0 0
    %778 = vmatpush2.bf16.msra.mxu0 0
    %779 = vmatprep.subr.bf16.mxu0 0
    %780 = vmatpush2.bf16.msra.mxu0 0
    %781 = vmatprep.subr.bf16.mxu0 0
    %782 = vmatpush2.bf16.msra.mxu0 0
    %783 = vmatprep.mubr.bf16.mxu0 0
    %784 = vmatmul.mubr.bf16.gmra.mxu0 0
    %v785 = vpop.f32.mrf.mxu0
    %v786 = vadd.f32 0.0, %v785
    %v787 = vpop.f32.mrf.mxu0
    %v788 = vadd.f32 0.0, %v787
    %v789 = vpop.f32.mrf.mxu0
    %v790 = vpop.f32.mrf.mxu0
    %791 = vdwg.mxu0
    %v792 = vadd.f32 %v546, %v745
    %v793 = vadd.f32 %v547, %v747
    %v794 = vadd.f32 %v548, %v786
    %v795 = vadd.f32 %v549, %v788
    %v796 = vxor.u32 %v792, 2147483648
    %v797 = vxor.u32 %v793, 2147483648
    %v798 = vxor.u32 %v794, 2147483648
    %v799 = vmul.f32 %v796, 1.442695
    %v800 = vpow.pop %v799
    %v801 = vmul.f32 %v797, 1.442695
    %v802 = vpow.pop %v801
    %v803 = vmul.f32 %v798, 1.442695
    %v804 = vpow.pop %v803
    %v805 = vadd.f32 %v800, 1.0
    %v806 = vadd.f32 %v802, 1.0
    %v807 = vadd.f32 %v804, 1.0
    %v808 = vrcp.pop %v805
    %v809 = vmul.f32 1.0, %v808
    %v810 = vrcp.pop %v806
    %v811 = vmul.f32 1.0, %v810
    %v812 = vrcp.pop %v807
    %v813 = vmul.f32 1.0, %v812
    %v814 = vtanh.pop %v795
    %v815 = vmul.f32 %v811, 0.0
    %v816 = vmul.f32 %v809, %v814
    %v817 = vadd.f32 %v815, %v816
    %v818 = vtanh.pop %v817
    %v819 = vmul.f32 %v813, %v818
    %v820 = vpack.c.bf16 %v819, %v819
    %821 = vst [vmem:[%s4] sm:$0xf] %v820
    %v822 = vld [vmem:[%s504] sm:$0xff]
    %v823 = vld [vmem:[%s504 + $0x8] sm:$0xff]
    %v824 = vunpack.c.l.bf16 %v822
    %v825 = vunpack.c.h.bf16 %v822
    %v826 = vunpack.c.l.bf16 %v823
    %v827 = vunpack.c.h.bf16 %v823
    %828 = vmatprep.subr.bf16.mxu0 %v675
    %829 = vmatpush1.bf16.msra.mxu0 %v674
    %830 = vmatprep.subr.bf16.mxu0 %v671
    %831 = vmatpush1.bf16.msra.mxu0 %v670
    %832 = vmatprep.subr.bf16.mxu0 %v667
    %833 = vmatpush1.bf16.msra.mxu0 %v666
    %834 = vmatprep.subr.bf16.mxu0 %v663
    %835 = vmatpush1.bf16.msra.mxu0 %v662
    %836 = vmatprep.subr.bf16.mxu0 %v659
    %837 = vmatpush1.bf16.msra.mxu0 %v658
    %838 = vmatprep.subr.bf16.mxu0 %v655
    %839 = vmatpush1.bf16.msra.mxu0 %v654
    %840 = vmatprep.subr.bf16.mxu0 %v651
    %841 = vmatpush1.bf16.msra.mxu0 %v650
    %842 = vmatprep.subr.bf16.mxu0 %v647
    %843 = vmatpush1.bf16.msra.mxu0 %v646
    %844 = vmatprep.subr.bf16.mxu0 0
    %845 = vmatpush2.bf16.msra.mxu0 0
    %846 = vmatprep.subr.bf16.mxu0 0
    %847 = vmatpush2.bf16.msra.mxu0 0
    %848 = vmatprep.subr.bf16.mxu0 0
    %849 = vmatpush2.bf16.msra.mxu0 0
    %850 = vmatprep.subr.bf16.mxu0 0
    %851 = vmatpush2.bf16.msra.mxu0 0
    %852 = vmatprep.subr.bf16.mxu0 0
    %853 = vmatpush2.bf16.msra.mxu0 0
    %854 = vmatprep.subr.bf16.mxu0 0
    %855 = vmatpush2.bf16.msra.mxu0 0
    %856 = vmatprep.subr.bf16.mxu0 0
    %857 = vmatpush2.bf16.msra.mxu0 0
    %858 = vmatprep.subr.bf16.mxu0 0
    %859 = vmatpush2.bf16.msra.mxu0 0
    %860 = vmatprep.mubr.bf16.mxu0 0
    %861 = vmatmul.mubr.bf16.gmra.mxu0 %v820
    %v862 = vpop.f32.mrf.mxu0
    %v863 = vadd.f32 0.0, %v862
    %v864 = vpop.f32.mrf.mxu0
    %v865 = vadd.f32 0.0, %v864
    %v866 = vpop.f32.mrf.mxu0
    %v867 = vpop.f32.mrf.mxu0
    %868 = vdwg.mxu0
    %869 = vmatprep.subr.bf16.mxu0 %v677
    %870 = vmatpush1.bf16.msra.mxu0 %v676
    %871 = vmatprep.subr.bf16.mxu0 %v673
    %872 = vmatpush1.bf16.msra.mxu0 %v672
    %873 = vmatprep.subr.bf16.mxu0 %v669
    %874 = vmatpush1.bf16.msra.mxu0 %v668
    %875 = vmatprep.subr.bf16.mxu0 %v665
    %876 = vmatpush1.bf16.msra.mxu0 %v664
    %877 = vmatprep.subr.bf16.mxu0 %v661
    %878 = vmatpush1.bf16.msra.mxu0 %v660
    %879 = vmatprep.subr.bf16.mxu0 %v657
    %880 = vmatpush1.bf16.msra.mxu0 %v656
    %881 = vmatprep.subr.bf16.mxu0 %v653
    %882 = vmatpush1.bf16.msra.mxu0 %v652
    %883 = vmatprep.subr.bf16.mxu0 %v649
    %884 = vmatpush1.bf16.msra.mxu0 %v648
    %885 = vmatprep.subr.bf16.mxu0 0
    %886 = vmatpush2.bf16.msra.mxu0 0
    %887 = vmatprep.subr.bf16.mxu0 0
    %888 = vmatpush2.bf16.msra.mxu0 0
    %889 = vmatprep.subr.bf16.mxu0 0
    %890 = vmatpush2.bf16.msra.mxu0 0
    %891 = vmatprep.subr.bf16.mxu0 0
    %892 = vmatpush2.bf16.msra.mxu0 0
    %893 = vmatprep.subr.bf16.mxu0 0
    %894 = vmatpush2.bf16.msra.mxu0 0
    %895 = vmatprep.subr.bf16.mxu0 0
    %896 = vmatpush2.bf16.msra.mxu0 0
    %897 = vmatprep.subr.bf16.mxu0 0
    %898 = vmatpush2.bf16.msra.mxu0 0
    %899 = vmatprep.subr.bf16.mxu0 0
    %900 = vmatpush2.bf16.msra.mxu0 0
    %901 = vmatprep.mubr.bf16.mxu0 0
    %902 = vmatmul.mubr.bf16.gmra.mxu0 %v820
    %v903 = vpop.f32.mrf.mxu0
    %v904 = vadd.f32 0.0, %v903
    %v905 = vpop.f32.mrf.mxu0
    %v906 = vadd.f32 0.0, %v905
    %v907 = vpop.f32.mrf.mxu0
    %v908 = vpop.f32.mrf.mxu0
    %909 = vdwg.mxu0
    %v910 = vadd.f32 %v824, %v863
    %v911 = vadd.f32 %v825, %v865
    %v912 = vadd.f32 %v826, %v904
    %v913 = vadd.f32 %v827, %v906
    %v914 = vxor.u32 %v910, 2147483648
    %v915 = vxor.u32 %v911, 2147483648
    %v916 = vxor.u32 %v912, 2147483648
    %v917 = vmul.f32 %v914, 1.442695
    %v918 = vpow.pop %v917
    %v919 = vmul.f32 %v915, 1.442695
    %v920 = vpow.pop %v919
    %v921 = vmul.f32 %v916, 1.442695
    %v922 = vpow.pop %v921
    %v923 = vadd.f32 %v918, 1.0
    %v924 = vadd.f32 %v920, 1.0
    %v925 = vadd.f32 %v922, 1.0
    %v926 = vrcp.pop %v923
    %v927 = vmul.f32 1.0, %v926
    %v928 = vrcp.pop %v924
    %v929 = vmul.f32 1.0, %v928
    %v930 = vrcp.pop %v925
    %v931 = vmul.f32 1.0, %v930
    %v932 = vtanh.pop %v913
    %v933 = vmul.f32 %v929, %v817
    %v934 = vmul.f32 %v927, %v932
    %v935 = vadd.f32 %v933, %v934
    %v936 = vtanh.pop %v935
    %v937 = vmul.f32 %v931, %v936
    %v938 = vpack.c.bf16 %v937, %v937
    %s939 = scalar_lea.vmem %s4, 4
    %940 = vst [vmem:[%s939] sm:$0xf] %v938
    %s941 = scalar_lea.vmem [#allocation2], 32
    %v942 = vld [vmem:[%s941] sm:$0xff]
    %v943 = vld [vmem:[%s941 + $0x8] sm:$0xff]
    %v944 = vunpack.c.l.bf16 %v942
    %v945 = vunpack.c.h.bf16 %v942
    %v946 = vunpack.c.l.bf16 %v943
    %v947 = vunpack.c.h.bf16 %v943
    %948 = vmatprep.subr.bf16.mxu0 %v675
    %949 = vmatpush1.bf16.msra.mxu0 %v674
    %950 = vmatprep.subr.bf16.mxu0 %v671
    %951 = vmatpush1.bf16.msra.mxu0 %v670
    %952 = vmatprep.subr.bf16.mxu0 %v667
    %953 = vmatpush1.bf16.msra.mxu0 %v666
    %954 = vmatprep.subr.bf16.mxu0 %v663
    %955 = vmatpush1.bf16.msra.mxu0 %v662
    %956 = vmatprep.subr.bf16.mxu0 %v659
    %957 = vmatpush1.bf16.msra.mxu0 %v658
    %958 = vmatprep.subr.bf16.mxu0 %v655
    %959 = vmatpush1.bf16.msra.mxu0 %v654
    %960 = vmatprep.subr.bf16.mxu0 %v651
    %961 = vmatpush1.bf16.msra.mxu0 %v650
    %962 = vmatprep.subr.bf16.mxu0 %v647
    %963 = vmatpush1.bf16.msra.mxu0 %v646
    %964 = vmatprep.subr.bf16.mxu0 0
    %965 = vmatpush2.bf16.msra.mxu0 0
    %966 = vmatprep.subr.bf16.mxu0 0
    %967 = vmatpush2.bf16.msra.mxu0 0
    %968 = vmatprep.subr.bf16.mxu0 0
    %969 = vmatpush2.bf16.msra.mxu0 0
    %970 = vmatprep.subr.bf16.mxu0 0
    %971 = vmatpush2.bf16.msra.mxu0 0
    %972 = vmatprep.subr.bf16.mxu0 0
    %973 = vmatpush2.bf16.msra.mxu0 0
    %974 = vmatprep.subr.bf16.mxu0 0
    %975 = vmatpush2.bf16.msra.mxu0 0
    %976 = vmatprep.subr.bf16.mxu0 0
    %977 = vmatpush2.bf16.msra.mxu0 0
    %978 = vmatprep.subr.bf16.mxu0 0
    %979 = vmatpush2.bf16.msra.mxu0 0
    %980 = vmatprep.mubr.bf16.mxu0 0
    %981 = vmatmul.mubr.bf16.gmra.mxu0 %v938
    %v982 = vpop.f32.mrf.mxu0
    %v983 = vadd.f32 0.0, %v982
    %v984 = vpop.f32.mrf.mxu0
    %v985 = vadd.f32 0.0, %v984
    %v986 = vpop.f32.mrf.mxu0
    %v987 = vpop.f32.mrf.mxu0
    %988 = vdwg.mxu0
    %989 = vmatprep.subr.bf16.mxu0 %v677
    %990 = vmatpush1.bf16.msra.mxu0 %v676
    %991 = vmatprep.subr.bf16.mxu0 %v673
    %992 = vmatpush1.bf16.msra.mxu0 %v672
    %993 = vmatprep.subr.bf16.mxu0 %v669
    %994 = vmatpush1.bf16.msra.mxu0 %v668
    %995 = vmatprep.subr.bf16.mxu0 %v665
    %996 = vmatpush1.bf16.msra.mxu0 %v664
    %997 = vmatprep.subr.bf16.mxu0 %v661
    %998 = vmatpush1.bf16.msra.mxu0 %v660
    %999 = vmatprep.subr.bf16.mxu0 %v657
    %1000 = vmatpush1.bf16.msra.mxu0 %v656
    %1001 = vmatprep.subr.bf16.mxu0 %v653
    %1002 = vmatpush1.bf16.msra.mxu0 %v652
    %1003 = vmatprep.subr.bf16.mxu0 %v649
    %1004 = vmatpush1.bf16.msra.mxu0 %v648
    %1005 = vmatprep.subr.bf16.mxu0 0
    %1006 = vmatpush2.bf16.msra.mxu0 0
    %1007 = vmatprep.subr.bf16.mxu0 0
    %1008 = vmatpush2.bf16.msra.mxu0 0
    %1009 = vmatprep.subr.bf16.mxu0 0
    %1010 = vmatpush2.bf16.msra.mxu0 0
    %1011 = vmatprep.subr.bf16.mxu0 0
    %1012 = vmatpush2.bf16.msra.mxu0 0
    %1013 = vmatprep.subr.bf16.mxu0 0
    %1014 = vmatpush2.bf16.msra.mxu0 0
    %1015 = vmatprep.subr.bf16.mxu0 0
    %1016 = vmatpush2.bf16.msra.mxu0 0
    %1017 = vmatprep.subr.bf16.mxu0 0
    %1018 = vmatpush2.bf16.msra.mxu0 0
    %1019 = vmatprep.subr.bf16.mxu0 0
    %1020 = vmatpush2.bf16.msra.mxu0 0
    %1021 = vmatprep.mubr.bf16.mxu0 0
    %1022 = vmatmul.mubr.bf16.gmra.mxu0 %v938
    %v1023 = vpop.f32.mrf.mxu0
    %v1024 = vadd.f32 0.0, %v1023
    %v1025 = vpop.f32.mrf.mxu0
    %v1026 = vadd.f32 0.0, %v1025
    %v1027 = vpop.f32.mrf.mxu0
    %v1028 = vpop.f32.mrf.mxu0
    %1029 = vdwg.mxu0
    %v1030 = vadd.f32 %v944, %v983
    %v1031 = vadd.f32 %v945, %v985
    %v1032 = vadd.f32 %v946, %v1024
    %v1033 = vadd.f32 %v947, %v1026
    %v1034 = vxor.u32 %v1030, 2147483648
    %v1035 = vxor.u32 %v1031, 2147483648
    %v1036 = vxor.u32 %v1032, 2147483648
    %v1037 = vmul.f32 %v1034, 1.442695
    %v1038 = vpow.pop %v1037
    %v1039 = vmul.f32 %v1035, 1.442695
    %v1040 = vpow.pop %v1039
    %v1041 = vmul.f32 %v1036, 1.442695
    %v1042 = vpow.pop %v1041
    %v1043 = vadd.f32 %v1038, 1.0
    %v1044 = vadd.f32 %v1040, 1.0
    %v1045 = vadd.f32 %v1042, 1.0
    %v1046 = vrcp.pop %v1043
    %v1047 = vmul.f32 1.0, %v1046
    %v1048 = vrcp.pop %v1044
    %v1049 = vmul.f32 1.0, %v1048
    %v1050 = vrcp.pop %v1045
    %v1051 = vmul.f32 1.0, %v1050
    %v1052 = vtanh.pop %v1033
    %v1053 = vmul.f32 %v1049, %v935
    %v1054 = vmul.f32 %v1047, %v1052
    %v1055 = vadd.f32 %v1053, %v1054
    %v1056 = vtanh.pop %v1055
    %v1057 = vmul.f32 %v1051, %v1056
    %v1058 = vpack.c.bf16 %v1057, %v1057
    %s1059 = scalar_lea.vmem %s4, 8
    %1060 = vst [vmem:[%s1059] sm:$0xf] %v1058
    %s1061 = scalar_lea.vmem [#allocation2], 48
    %v1062 = vld [vmem:[%s1061] sm:$0xff]
    %v1063 = vld [vmem:[%s1061 + $0x8] sm:$0xff]
    %v1064 = vunpack.c.l.bf16 %v1062
    %v1065 = vunpack.c.h.bf16 %v1062
    %v1066 = vunpack.c.l.bf16 %v1063
    %v1067 = vunpack.c.h.bf16 %v1063
    %1068 = vmatprep.subr.bf16.mxu0 %v675
    %1069 = vmatpush1.bf16.msra.mxu0 %v674
    %1070 = vmatprep.subr.bf16.mxu0 %v671
    %1071 = vmatpush1.bf16.msra.mxu0 %v670
    %1072 = vmatprep.subr.bf16.mxu0 %v667
    %1073 = vmatpush1.bf16.msra.mxu0 %v666
    %1074 = vmatprep.subr.bf16.mxu0 %v663
    %1075 = vmatpush1.bf16.msra.mxu0 %v662
    %1076 = vmatprep.subr.bf16.mxu0 %v659
    %1077 = vmatpush1.bf16.msra.mxu0 %v658
    %1078 = vmatprep.subr.bf16.mxu0 %v655
    %1079 = vmatpush1.bf16.msra.mxu0 %v654
    %1080 = vmatprep.subr.bf16.mxu0 %v651
    %1081 = vmatpush1.bf16.msra.mxu0 %v650
    %1082 = vmatprep.subr.bf16.mxu0 %v647
    %1083 = vmatpush1.bf16.msra.mxu0 %v646
    %1084 = vmatprep.subr.bf16.mxu0 0
    %1085 = vmatpush2.bf16.msra.mxu0 0
    %1086 = vmatprep.subr.bf16.mxu0 0
    %1087 = vmatpush2.bf16.msra.mxu0 0
    %1088 = vmatprep.subr.bf16.mxu0 0
    %1089 = vmatpush2.bf16.msra.mxu0 0
    %1090 = vmatprep.subr.bf16.mxu0 0
    %1091 = vmatpush2.bf16.msra.mxu0 0
    %1092 = vmatprep.subr.bf16.mxu0 0
    %1093 = vmatpush2.bf16.msra.mxu0 0
    %1094 = vmatprep.subr.bf16.mxu0 0
    %1095 = vmatpush2.bf16.msra.mxu0 0
    %1096 = vmatprep.subr.bf16.mxu0 0
    %1097 = vmatpush2.bf16.msra.mxu0 0
    %1098 = vmatprep.subr.bf16.mxu0 0
    %1099 = vmatpush2.bf16.msra.mxu0 0
    %1100 = vmatprep.mubr.bf16.mxu0 0
    %1101 = vmatmul.mubr.bf16.gmra.mxu0 %v1058
    %v1102 = vpop.f32.mrf.mxu0
    %v1103 = vadd.f32 0.0, %v1102
    %v1104 = vpop.f32.mrf.mxu0
    %v1105 = vadd.f32 0.0, %v1104
    %v1106 = vpop.f32.mrf.mxu0
    %v1107 = vpop.f32.mrf.mxu0
    %1108 = vdwg.mxu0
    %1109 = vmatprep.subr.bf16.mxu0 %v677
    %1110 = vmatpush1.bf16.msra.mxu0 %v676
    %1111 = vmatprep.subr.bf16.mxu0 %v673
    %1112 = vmatpush1.bf16.msra.mxu0 %v672
    %1113 = vmatprep.subr.bf16.mxu0 %v669
    %1114 = vmatpush1.bf16.msra.mxu0 %v668
    %1115 = vmatprep.subr.bf16.mxu0 %v665
    %1116 = vmatpush1.bf16.msra.mxu0 %v664
    %1117 = vmatprep.subr.bf16.mxu0 %v661
    %1118 = vmatpush1.bf16.msra.mxu0 %v660
    %1119 = vmatprep.subr.bf16.mxu0 %v657
    %1120 = vmatpush1.bf16.msra.mxu0 %v656
    %1121 = vmatprep.subr.bf16.mxu0 %v653
    %1122 = vmatpush1.bf16.msra.mxu0 %v652
    %1123 = vmatprep.subr.bf16.mxu0 %v649
    %1124 = vmatpush1.bf16.msra.mxu0 %v648
    %1125 = vmatprep.subr.bf16.mxu0 0
    %1126 = vmatpush2.bf16.msra.mxu0 0
    %1127 = vmatprep.subr.bf16.mxu0 0
    %1128 = vmatpush2.bf16.msra.mxu0 0
    %1129 = vmatprep.subr.bf16.mxu0 0
    %1130 = vmatpush2.bf16.msra.mxu0 0
    %1131 = vmatprep.subr.bf16.mxu0 0
    %1132 = vmatpush2.bf16.msra.mxu0 0
    %1133 = vmatprep.subr.bf16.mxu0 0
    %1134 = vmatpush2.bf16.msra.mxu0 0
    %1135 = vmatprep.subr.bf16.mxu0 0
    %1136 = vmatpush2.bf16.msra.mxu0 0
    %1137 = vmatprep.subr.bf16.mxu0 0
    %1138 = vmatpush2.bf16.msra.mxu0 0
    %1139 = vmatprep.subr.bf16.mxu0 0
    %1140 = vmatpush2.bf16.msra.mxu0 0
    %1141 = vmatprep.mubr.bf16.mxu0 0
    %1142 = vmatmul.mubr.bf16.gmra.mxu0 %v1058
    %v1143 = vpop.f32.mrf.mxu0
    %v1144 = vadd.f32 0.0, %v1143
    %v1145 = vpop.f32.mrf.mxu0
    %v1146 = vadd.f32 0.0, %v1145
    %v1147 = vpop.f32.mrf.mxu0
    %v1148 = vpop.f32.mrf.mxu0
    %1149 = vdwg.mxu0
    %v1150 = vadd.f32 %v1064, %v1103
    %v1151 = vadd.f32 %v1065, %v1105
    %v1152 = vadd.f32 %v1066, %v1144
    %v1153 = vadd.f32 %v1067, %v1146
    %v1154 = vxor.u32 %v1150, 2147483648
    %v1155 = vxor.u32 %v1151, 2147483648
    %v1156 = vxor.u32 %v1152, 2147483648
    %v1157 = vmul.f32 %v1154, 1.442695
    %v1158 = vpow.pop %v1157
    %v1159 = vmul.f32 %v1155, 1.442695
    %v1160 = vpow.pop %v1159
    %v1161 = vmul.f32 %v1156, 1.442695
    %v1162 = vpow.pop %v1161
    %v1163 = vadd.f32 %v1158, 1.0
    %v1164 = vadd.f32 %v1160, 1.0
    %v1165 = vadd.f32 %v1162, 1.0
    %v1166 = vrcp.pop %v1163
    %v1167 = vmul.f32 1.0, %v1166
    %v1168 = vrcp.pop %v1164
    %v1169 = vmul.f32 1.0, %v1168
    %v1170 = vrcp.pop %v1165
    %v1171 = vmul.f32 1.0, %v1170
    %v1172 = vtanh.pop %v1153
    %v1173 = vmul.f32 %v1169, %v1055
    %v1174 = vmul.f32 %v1167, %v1172
    %v1175 = vadd.f32 %v1173, %v1174
    %v1176 = vtanh.pop %v1175
    %v1177 = vmul.f32 %v1171, %v1176
    %v1178 = vpack.c.bf16 %v1177, %v1177
    %s1179 = scalar_lea.vmem %s4, 12
    %1180 = vst [vmem:[%s1179] sm:$0xf] %v1178
    %s1181 = scalar_lea.vmem [#allocation2], 64
    %v1182 = vld [vmem:[%s1181] sm:$0xff]
    %v1183 = vld [vmem:[%s1181 + $0x8] sm:$0xff]
    %v1184 = vunpack.c.l.bf16 %v1182
    %v1185 = vunpack.c.h.bf16 %v1182
    %v1186 = vunpack.c.l.bf16 %v1183
    %v1187 = vunpack.c.h.bf16 %v1183
    %1188 = vmatprep.subr.bf16.mxu0 %v675
    %1189 = vmatpush1.bf16.msra.mxu0 %v674
    %1190 = vmatprep.subr.bf16.mxu0 %v671
    %1191 = vmatpush1.bf16.msra.mxu0 %v670
    %1192 = vmatprep.subr.bf16.mxu0 %v667
    %1193 = vmatpush1.bf16.msra.mxu0 %v666
    %1194 = vmatprep.subr.bf16.mxu0 %v663
    %1195 = vmatpush1.bf16.msra.mxu0 %v662
    %1196 = vmatprep.subr.bf16.mxu0 %v659
    %1197 = vmatpush1.bf16.msra.mxu0 %v658
    %1198 = vmatprep.subr.bf16.mxu0 %v655
    %1199 = vmatpush1.bf16.msra.mxu0 %v654
    %1200 = vmatprep.subr.bf16.mxu0 %v651
    %1201 = vmatpush1.bf16.msra.mxu0 %v650
    %1202 = vmatprep.subr.bf16.mxu0 %v647
    %1203 = vmatpush1.bf16.msra.mxu0 %v646
    %1204 = vmatprep.subr.bf16.mxu0 0
    %1205 = vmatpush2.bf16.msra.mxu0 0
    %1206 = vmatprep.subr.bf16.mxu0 0
    %1207 = vmatpush2.bf16.msra.mxu0 0
    %1208 = vmatprep.subr.bf16.mxu0 0
    %1209 = vmatpush2.bf16.msra.mxu0 0
    %1210 = vmatprep.subr.bf16.mxu0 0
    %1211 = vmatpush2.bf16.msra.mxu0 0
    %1212 = vmatprep.subr.bf16.mxu0 0
    %1213 = vmatpush2.bf16.msra.mxu0 0
    %1214 = vmatprep.subr.bf16.mxu0 0
    %1215 = vmatpush2.bf16.msra.mxu0 0
    %1216 = vmatprep.subr.bf16.mxu0 0
    %1217 = vmatpush2.bf16.msra.mxu0 0
    %1218 = vmatprep.subr.bf16.mxu0 0
    %1219 = vmatpush2.bf16.msra.mxu0 0
    %1220 = vmatprep.mubr.bf16.mxu0 0
    %1221 = vmatmul.mubr.bf16.gmra.mxu0 %v1178
    %v1222 = vpop.f32.mrf.mxu0
    %v1223 = vadd.f32 0.0, %v1222
    %v1224 = vpop.f32.mrf.mxu0
    %v1225 = vadd.f32 0.0, %v1224
    %v1226 = vpop.f32.mrf.mxu0
    %v1227 = vpop.f32.mrf.mxu0
    %1228 = vdwg.mxu0
    %1229 = vmatprep.subr.bf16.mxu0 %v677
    %1230 = vmatpush1.bf16.msra.mxu0 %v676
    %1231 = vmatprep.subr.bf16.mxu0 %v673
    %1232 = vmatpush1.bf16.msra.mxu0 %v672
    %1233 = vmatprep.subr.bf16.mxu0 %v669
    %1234 = vmatpush1.bf16.msra.mxu0 %v668
    %1235 = vmatprep.subr.bf16.mxu0 %v665
    %1236 = vmatpush1.bf16.msra.mxu0 %v664
    %1237 = vmatprep.subr.bf16.mxu0 %v661
    %1238 = vmatpush1.bf16.msra.mxu0 %v660
    %1239 = vmatprep.subr.bf16.mxu0 %v657
    %1240 = vmatpush1.bf16.msra.mxu0 %v656
    %1241 = vmatprep.subr.bf16.mxu0 %v653
    %1242 = vmatpush1.bf16.msra.mxu0 %v652
    %1243 = vmatprep.subr.bf16.mxu0 %v649
    %1244 = vmatpush1.bf16.msra.mxu0 %v648
    %1245 = vmatprep.subr.bf16.mxu0 0
    %1246 = vmatpush2.bf16.msra.mxu0 0
    %1247 = vmatprep.subr.bf16.mxu0 0
    %1248 = vmatpush2.bf16.msra.mxu0 0
    %1249 = vmatprep.subr.bf16.mxu0 0
    %1250 = vmatpush2.bf16.msra.mxu0 0
    %1251 = vmatprep.subr.bf16.mxu0 0
    %1252 = vmatpush2.bf16.msra.mxu0 0
    %1253 = vmatprep.subr.bf16.mxu0 0
    %1254 = vmatpush2.bf16.msra.mxu0 0
    %1255 = vmatprep.subr.bf16.mxu0 0
    %1256 = vmatpush2.bf16.msra.mxu0 0
    %1257 = vmatprep.subr.bf16.mxu0 0
    %1258 = vmatpush2.bf16.msra.mxu0 0
    %1259 = vmatprep.subr.bf16.mxu0 0
    %1260 = vmatpush2.bf16.msra.mxu0 0
    %1261 = vmatprep.mubr.bf16.mxu0 0
    %1262 = vmatmul.mubr.bf16.gmra.mxu0 %v1178
    %v1263 = vpop.f32.mrf.mxu0
    %v1264 = vadd.f32 0.0, %v1263
    %v1265 = vpop.f32.mrf.mxu0
    %v1266 = vadd.f32 0.0, %v1265
    %v1267 = vpop.f32.mrf.mxu0
    %v1268 = vpop.f32.mrf.mxu0
    %1269 = vdwg.mxu0
    %v1270 = vadd.f32 %v1184, %v1223
    %v1271 = vadd.f32 %v1185, %v1225
    %v1272 = vadd.f32 %v1186, %v1264
    %v1273 = vadd.f32 %v1187, %v1266
    %v1274 = vxor.u32 %v1270, 2147483648
    %v1275 = vxor.u32 %v1271, 2147483648
    %v1276 = vxor.u32 %v1272, 2147483648
    %v1277 = vmul.f32 %v1274, 1.442695
    %v1278 = vpow.pop %v1277
    %v1279 = vmul.f32 %v1275, 1.442695
    %v1280 = vpow.pop %v1279
    %v1281 = vmul.f32 %v1276, 1.442695
    %v1282 = vpow.pop %v1281
    %v1283 = vadd.f32 %v1278, 1.0
    %v1284 = vadd.f32 %v1280, 1.0
    %v1285 = vadd.f32 %v1282, 1.0
    %v1286 = vrcp.pop %v1283
    %v1287 = vmul.f32 1.0, %v1286
    %v1288 = vrcp.pop %v1284
    %v1289 = vmul.f32 1.0, %v1288
    %v1290 = vrcp.pop %v1285
    %v1291 = vmul.f32 1.0, %v1290
    %v1292 = vtanh.pop %v1273
    %v1293 = vmul.f32 %v1289, %v1175
    %v1294 = vmul.f32 %v1287, %v1292
    %v1295 = vadd.f32 %v1293, %v1294
    %v1296 = vtanh.pop %v1295
    %v1297 = vmul.f32 %v1291, %v1296
    %v1298 = vpack.c.bf16 %v1297, %v1297
    %s1299 = scalar_lea.vmem %s4, 16
    %1300 = vst [vmem:[%s1299] sm:$0xf] %v1298
    %s1301 = scalar_lea.vmem [#allocation2], 80
    %v1302 = vld [vmem:[%s1301] sm:$0xff]
    %v1303 = vld [vmem:[%s1301 + $0x8] sm:$0xff]
    %v1304 = vunpack.c.l.bf16 %v1302
    %v1305 = vunpack.c.h.bf16 %v1302
    %v1306 = vunpack.c.l.bf16 %v1303
    %v1307 = vunpack.c.h.bf16 %v1303
    %1308 = vmatprep.subr.bf16.mxu0 %v675
    %1309 = vmatpush1.bf16.msra.mxu0 %v674
    %1310 = vmatprep.subr.bf16.mxu0 %v671
    %1311 = vmatpush1.bf16.msra.mxu0 %v670
    %1312 = vmatprep.subr.bf16.mxu0 %v667
    %1313 = vmatpush1.bf16.msra.mxu0 %v666
    %1314 = vmatprep.subr.bf16.mxu0 %v663
    %1315 = vmatpush1.bf16.msra.mxu0 %v662
    %1316 = vmatprep.subr.bf16.mxu0 %v659
    %1317 = vmatpush1.bf16.msra.mxu0 %v658
    %1318 = vmatprep.subr.bf16.mxu0 %v655
    %1319 = vmatpush1.bf16.msra.mxu0 %v654
    %1320 = vmatprep.subr.bf16.mxu0 %v651
    %1321 = vmatpush1.bf16.msra.mxu0 %v650
    %1322 = vmatprep.subr.bf16.mxu0 %v647
    %1323 = vmatpush1.bf16.msra.mxu0 %v646
    %1324 = vmatprep.subr.bf16.mxu0 0
    %1325 = vmatpush2.bf16.msra.mxu0 0
    %1326 = vmatprep.subr.bf16.mxu0 0
    %1327 = vmatpush2.bf16.msra.mxu0 0
    %1328 = vmatprep.subr.bf16.mxu0 0
    %1329 = vmatpush2.bf16.msra.mxu0 0
    %1330 = vmatprep.subr.bf16.mxu0 0
    %1331 = vmatpush2.bf16.msra.mxu0 0
    %1332 = vmatprep.subr.bf16.mxu0 0
    %1333 = vmatpush2.bf16.msra.mxu0 0
    %1334 = vmatprep.subr.bf16.mxu0 0
    %1335 = vmatpush2.bf16.msra.mxu0 0
    %1336 = vmatprep.subr.bf16.mxu0 0
    %1337 = vmatpush2.bf16.msra.mxu0 0
    %1338 = vmatprep.subr.bf16.mxu0 0
    %1339 = vmatpush2.bf16.msra.mxu0 0
    %1340 = vmatprep.mubr.bf16.mxu0 0
    %1341 = vmatmul.mubr.bf16.gmra.mxu0 %v1298
    %v1342 = vpop.f32.mrf.mxu0
    %v1343 = vadd.f32 0.0, %v1342
    %v1344 = vpop.f32.mrf.mxu0
    %v1345 = vadd.f32 0.0, %v1344
    %v1346 = vpop.f32.mrf.mxu0
    %v1347 = vpop.f32.mrf.mxu0
    %1348 = vdwg.mxu0
    %1349 = vmatprep.subr.bf16.mxu0 %v677
    %1350 = vmatpush1.bf16.msra.mxu0 %v676
    %1351 = vmatprep.subr.bf16.mxu0 %v673
    %1352 = vmatpush1.bf16.msra.mxu0 %v672
    %1353 = vmatprep.subr.bf16.mxu0 %v669
    %1354 = vmatpush1.bf16.msra.mxu0 %v668
    %1355 = vmatprep.subr.bf16.mxu0 %v665
    %1356 = vmatpush1.bf16.msra.mxu0 %v664
    %1357 = vmatprep.subr.bf16.mxu0 %v661
    %1358 = vmatpush1.bf16.msra.mxu0 %v660
    %1359 = vmatprep.subr.bf16.mxu0 %v657
    %1360 = vmatpush1.bf16.msra.mxu0 %v656
    %1361 = vmatprep.subr.bf16.mxu0 %v653
    %1362 = vmatpush1.bf16.msra.mxu0 %v652
    %1363 = vmatprep.subr.bf16.mxu0 %v649
    %1364 = vmatpush1.bf16.msra.mxu0 %v648
    %1365 = vmatprep.subr.bf16.mxu0 0
    %1366 = vmatpush2.bf16.msra.mxu0 0
    %1367 = vmatprep.subr.bf16.mxu0 0
    %1368 = vmatpush2.bf16.msra.mxu0 0
    %1369 = vmatprep.subr.bf16.mxu0 0
    %1370 = vmatpush2.bf16.msra.mxu0 0
    %1371 = vmatprep.subr.bf16.mxu0 0
    %1372 = vmatpush2.bf16.msra.mxu0 0
    %1373 = vmatprep.subr.bf16.mxu0 0
    %1374 = vmatpush2.bf16.msra.mxu0 0
    %1375 = vmatprep.subr.bf16.mxu0 0
    %1376 = vmatpush2.bf16.msra.mxu0 0
    %1377 = vmatprep.subr.bf16.mxu0 0
    %1378 = vmatpush2.bf16.msra.mxu0 0
    %1379 = vmatprep.subr.bf16.mxu0 0
    %1380 = vmatpush2.bf16.msra.mxu0 0
    %1381 = vmatprep.mubr.bf16.mxu0 0
    %1382 = vmatmul.mubr.bf16.gmra.mxu0 %v1298
    %v1383 = vpop.f32.mrf.mxu0
    %v1384 = vadd.f32 0.0, %v1383
    %v1385 = vpop.f32.mrf.mxu0
    %v1386 = vadd.f32 0.0, %v1385
    %v1387 = vpop.f32.mrf.mxu0
    %v1388 = vpop.f32.mrf.mxu0
    %1389 = vdwg.mxu0
    %v1390 = vadd.f32 %v1304, %v1343
    %v1391 = vadd.f32 %v1305, %v1345
    %v1392 = vadd.f32 %v1306, %v1384
    %v1393 = vadd.f32 %v1307, %v1386
    %v1394 = vxor.u32 %v1390, 2147483648
    %v1395 = vxor.u32 %v1391, 2147483648
    %v1396 = vxor.u32 %v1392, 2147483648
    %v1397 = vmul.f32 %v1394, 1.442695
    %v1398 = vpow.pop %v1397
    %v1399 = vmul.f32 %v1395, 1.442695
    %v1400 = vpow.pop %v1399
    %v1401 = vmul.f32 %v1396, 1.442695
    %v1402 = vpow.pop %v1401
    %v1403 = vadd.f32 %v1398, 1.0
    %v1404 = vadd.f32 %v1400, 1.0
    %v1405 = vadd.f32 %v1402, 1.0
    %v1406 = vrcp.pop %v1403
    %v1407 = vmul.f32 1.0, %v1406
    %v1408 = vrcp.pop %v1404
    %v1409 = vmul.f32 1.0, %v1408
    %v1410 = vrcp.pop %v1405
    %v1411 = vmul.f32 1.0, %v1410
    %v1412 = vtanh.pop %v1393
    %v1413 = vmul.f32 %v1409, %v1295
    %v1414 = vmul.f32 %v1407, %v1412
    %v1415 = vadd.f32 %v1413, %v1414
    %v1416 = vtanh.pop %v1415
    %v1417 = vmul.f32 %v1411, %v1416
    %v1418 = vpack.c.bf16 %v1417, %v1417
    %s1419 = scalar_lea.vmem %s4, 20
    %1420 = vst [vmem:[%s1419] sm:$0xf] %v1418
    %s1421 = scalar_lea.vmem [#allocation2], 96
    %v1422 = vld [vmem:[%s1421] sm:$0xff]
    %v1423 = vld [vmem:[%s1421 + $0x8] sm:$0xff]
    %v1424 = vunpack.c.l.bf16 %v1422
    %v1425 = vunpack.c.h.bf16 %v1422
    %v1426 = vunpack.c.l.bf16 %v1423
    %v1427 = vunpack.c.h.bf16 %v1423
    %1428 = vmatprep.subr.bf16.mxu0 %v675
    %1429 = vmatpush1.bf16.msra.mxu0 %v674
    %1430 = vmatprep.subr.bf16.mxu0 %v671
    %1431 = vmatpush1.bf16.msra.mxu0 %v670
    %1432 = vmatprep.subr.bf16.mxu0 %v667
    %1433 = vmatpush1.bf16.msra.mxu0 %v666
    %1434 = vmatprep.subr.bf16.mxu0 %v663
    %1435 = vmatpush1.bf16.msra.mxu0 %v662
    %1436 = vmatprep.subr.bf16.mxu0 %v659
    %1437 = vmatpush1.bf16.msra.mxu0 %v658
    %1438 = vmatprep.subr.bf16.mxu0 %v655
    %1439 = vmatpush1.bf16.msra.mxu0 %v654
    %1440 = vmatprep.subr.bf16.mxu0 %v651
    %1441 = vmatpush1.bf16.msra.mxu0 %v650
    %1442 = vmatprep.subr.bf16.mxu0 %v647
    %1443 = vmatpush1.bf16.msra.mxu0 %v646
    %1444 = vmatprep.subr.bf16.mxu0 0
    %1445 = vmatpush2.bf16.msra.mxu0 0
    %1446 = vmatprep.subr.bf16.mxu0 0
    %1447 = vmatpush2.bf16.msra.mxu0 0
    %1448 = vmatprep.subr.bf16.mxu0 0
    %1449 = vmatpush2.bf16.msra.mxu0 0
    %1450 = vmatprep.subr.bf16.mxu0 0
    %1451 = vmatpush2.bf16.msra.mxu0 0
    %1452 = vmatprep.subr.bf16.mxu0 0
    %1453 = vmatpush2.bf16.msra.mxu0 0
    %1454 = vmatprep.subr.bf16.mxu0 0
    %1455 = vmatpush2.bf16.msra.mxu0 0
    %1456 = vmatprep.subr.bf16.mxu0 0
    %1457 = vmatpush2.bf16.msra.mxu0 0
    %1458 = vmatprep.subr.bf16.mxu0 0
    %1459 = vmatpush2.bf16.msra.mxu0 0
    %1460 = vmatprep.mubr.bf16.mxu0 0
    %1461 = vmatmul.mubr.bf16.gmra.mxu0 %v1418
    %v1462 = vpop.f32.mrf.mxu0
    %v1463 = vadd.f32 0.0, %v1462
    %v1464 = vpop.f32.mrf.mxu0
    %v1465 = vadd.f32 0.0, %v1464
    %v1466 = vpop.f32.mrf.mxu0
    %v1467 = vpop.f32.mrf.mxu0
    %1468 = vdwg.mxu0
    %1469 = vmatprep.subr.bf16.mxu0 %v677
    %1470 = vmatpush1.bf16.msra.mxu0 %v676
    %1471 = vmatprep.subr.bf16.mxu0 %v673
    %1472 = vmatpush1.bf16.msra.mxu0 %v672
    %1473 = vmatprep.subr.bf16.mxu0 %v669
    %1474 = vmatpush1.bf16.msra.mxu0 %v668
    %1475 = vmatprep.subr.bf16.mxu0 %v665
    %1476 = vmatpush1.bf16.msra.mxu0 %v664
    %1477 = vmatprep.subr.bf16.mxu0 %v661
    %1478 = vmatpush1.bf16.msra.mxu0 %v660
    %1479 = vmatprep.subr.bf16.mxu0 %v657
    %1480 = vmatpush1.bf16.msra.mxu0 %v656
    %1481 = vmatprep.subr.bf16.mxu0 %v653
    %1482 = vmatpush1.bf16.msra.mxu0 %v652
    %1483 = vmatprep.subr.bf16.mxu0 %v649
    %1484 = vmatpush1.bf16.msra.mxu0 %v648
    %1485 = vmatprep.subr.bf16.mxu0 0
    %1486 = vmatpush2.bf16.msra.mxu0 0
    %1487 = vmatprep.subr.bf16.mxu0 0
    %1488 = vmatpush2.bf16.msra.mxu0 0
    %1489 = vmatprep.subr.bf16.mxu0 0
    %1490 = vmatpush2.bf16.msra.mxu0 0
    %1491 = vmatprep.subr.bf16.mxu0 0
    %1492 = vmatpush2.bf16.msra.mxu0 0
    %1493 = vmatprep.subr.bf16.mxu0 0
    %1494 = vmatpush2.bf16.msra.mxu0 0
    %1495 = vmatprep.subr.bf16.mxu0 0
    %1496 = vmatpush2.bf16.msra.mxu0 0
    %1497 = vmatprep.subr.bf16.mxu0 0
    %1498 = vmatpush2.bf16.msra.mxu0 0
    %1499 = vmatprep.subr.bf16.mxu0 0
    %1500 = vmatpush2.bf16.msra.mxu0 0
    %1501 = vmatprep.mubr.bf16.mxu0 0
    %1502 = vmatmul.mubr.bf16.gmra.mxu0 %v1418
    %v1503 = vpop.f32.mrf.mxu0
    %v1504 = vadd.f32 0.0, %v1503
    %v1505 = vpop.f32.mrf.mxu0
    %v1506 = vadd.f32 0.0, %v1505
    %v1507 = vpop.f32.mrf.mxu0
    %v1508 = vpop.f32.mrf.mxu0
    %1509 = vdwg.mxu0
    %v1510 = vadd.f32 %v1424, %v1463
    %v1511 = vadd.f32 %v1425, %v1465
    %v1512 = vadd.f32 %v1426, %v1504
    %v1513 = vadd.f32 %v1427, %v1506
    %v1514 = vxor.u32 %v1510, 2147483648
    %v1515 = vxor.u32 %v1511, 2147483648
    %v1516 = vxor.u32 %v1512, 2147483648
    %v1517 = vmul.f32 %v1514, 1.442695
    %v1518 = vpow.pop %v1517
    %v1519 = vmul.f32 %v1515, 1.442695
    %v1520 = vpow.pop %v1519
    %v1521 = vmul.f32 %v1516, 1.442695
    %v1522 = vpow.pop %v1521
    %v1523 = vadd.f32 %v1518, 1.0
    %v1524 = vadd.f32 %v1520, 1.0
    %v1525 = vadd.f32 %v1522, 1.0
    %v1526 = vrcp.pop %v1523
    %v1527 = vmul.f32 1.0, %v1526
    %v1528 = vrcp.pop %v1524
    %v1529 = vmul.f32 1.0, %v1528
    %v1530 = vrcp.pop %v1525
    %v1531 = vmul.f32 1.0, %v1530
    %v1532 = vtanh.pop %v1513
    %v1533 = vmul.f32 %v1529, %v1415
    %v1534 = vmul.f32 %v1527, %v1532
    %v1535 = vadd.f32 %v1533, %v1534
    %v1536 = vtanh.pop %v1535
    %v1537 = vmul.f32 %v1531, %v1536
    %v1538 = vpack.c.bf16 %v1537, %v1537
    %s1539 = scalar_lea.vmem %s4, 24
    %1540 = vst [vmem:[%s1539] sm:$0xf] %v1538
    %s1541 = scalar_lea.vmem [#allocation2], 112
    %v1542 = vld [vmem:[%s1541] sm:$0xff]
    %v1543 = vld [vmem:[%s1541 + $0x8] sm:$0xff]
    %v1544 = vunpack.c.l.bf16 %v1542
    %v1545 = vunpack.c.h.bf16 %v1542
    %v1546 = vunpack.c.l.bf16 %v1543
    %v1547 = vunpack.c.h.bf16 %v1543
    %1548 = vmatprep.subr.bf16.mxu0 %v675
    %1549 = vmatpush1.bf16.msra.mxu0 %v674
    %1550 = vmatprep.subr.bf16.mxu0 %v671
    %1551 = vmatpush1.bf16.msra.mxu0 %v670
    %1552 = vmatprep.subr.bf16.mxu0 %v667
    %1553 = vmatpush1.bf16.msra.mxu0 %v666
    %1554 = vmatprep.subr.bf16.mxu0 %v663
    %1555 = vmatpush1.bf16.msra.mxu0 %v662
    %1556 = vmatprep.subr.bf16.mxu0 %v659
    %1557 = vmatpush1.bf16.msra.mxu0 %v658
    %1558 = vmatprep.subr.bf16.mxu0 %v655
    %1559 = vmatpush1.bf16.msra.mxu0 %v654
    %1560 = vmatprep.subr.bf16.mxu0 %v651
    %1561 = vmatpush1.bf16.msra.mxu0 %v650
    %1562 = vmatprep.subr.bf16.mxu0 %v647
    %1563 = vmatpush1.bf16.msra.mxu0 %v646
    %1564 = vmatprep.subr.bf16.mxu0 0
    %1565 = vmatpush2.bf16.msra.mxu0 0
    %1566 = vmatprep.subr.bf16.mxu0 0
    %1567 = vmatpush2.bf16.msra.mxu0 0
    %1568 = vmatprep.subr.bf16.mxu0 0
    %1569 = vmatpush2.bf16.msra.mxu0 0
    %1570 = vmatprep.subr.bf16.mxu0 0
    %1571 = vmatpush2.bf16.msra.mxu0 0
    %1572 = vmatprep.subr.bf16.mxu0 0
    %1573 = vmatpush2.bf16.msra.mxu0 0
    %1574 = vmatprep.subr.bf16.mxu0 0
    %1575 = vmatpush2.bf16.msra.mxu0 0
    %1576 = vmatprep.subr.bf16.mxu0 0
    %1577 = vmatpush2.bf16.msra.mxu0 0
    %1578 = vmatprep.subr.bf16.mxu0 0
    %1579 = vmatpush2.bf16.msra.mxu0 0
    %1580 = vmatprep.mubr.bf16.mxu0 0
    %1581 = vmatmul.mubr.bf16.gmra.mxu0 %v1538
    %v1582 = vpop.f32.mrf.mxu0
    %v1583 = vadd.f32 0.0, %v1582
    %v1584 = vpop.f32.mrf.mxu0
    %v1585 = vadd.f32 0.0, %v1584
    %v1586 = vpop.f32.mrf.mxu0
    %v1587 = vpop.f32.mrf.mxu0
    %1588 = vdwg.mxu0
    %1589 = vmatprep.subr.bf16.mxu0 %v677
    %1590 = vmatpush1.bf16.msra.mxu0 %v676
    %1591 = vmatprep.subr.bf16.mxu0 %v673
    %1592 = vmatpush1.bf16.msra.mxu0 %v672
    %1593 = vmatprep.subr.bf16.mxu0 %v669
    %1594 = vmatpush1.bf16.msra.mxu0 %v668
    %1595 = vmatprep.subr.bf16.mxu0 %v665
    %1596 = vmatpush1.bf16.msra.mxu0 %v664
    %1597 = vmatprep.subr.bf16.mxu0 %v661
    %1598 = vmatpush1.bf16.msra.mxu0 %v660
    %1599 = vmatprep.subr.bf16.mxu0 %v657
    %1600 = vmatpush1.bf16.msra.mxu0 %v656
    %1601 = vmatprep.subr.bf16.mxu0 %v653
    %1602 = vmatpush1.bf16.msra.mxu0 %v652
    %1603 = vmatprep.subr.bf16.mxu0 %v649
    %1604 = vmatpush1.bf16.msra.mxu0 %v648
    %1605 = vmatprep.subr.bf16.mxu0 0
    %1606 = vmatpush2.bf16.msra.mxu0 0
    %1607 = vmatprep.subr.bf16.mxu0 0
    %1608 = vmatpush2.bf16.msra.mxu0 0
    %1609 = vmatprep.subr.bf16.mxu0 0
    %1610 = vmatpush2.bf16.msra.mxu0 0
    %1611 = vmatprep.subr.bf16.mxu0 0
    %1612 = vmatpush2.bf16.msra.mxu0 0
    %1613 = vmatprep.subr.bf16.mxu0 0
    %1614 = vmatpush2.bf16.msra.mxu0 0
    %1615 = vmatprep.subr.bf16.mxu0 0
    %1616 = vmatpush2.bf16.msra.mxu0 0
    %1617 = vmatprep.subr.bf16.mxu0 0
    %1618 = vmatpush2.bf16.msra.mxu0 0
    %1619 = vmatprep.subr.bf16.mxu0 0
    %1620 = vmatpush2.bf16.msra.mxu0 0
    %1621 = vmatprep.mubr.bf16.mxu0 0
    %1622 = vmatmul.mubr.bf16.gmra.mxu0 %v1538
    %v1623 = vpop.f32.mrf.mxu0
    %v1624 = vadd.f32 0.0, %v1623
    %v1625 = vpop.f32.mrf.mxu0
    %v1626 = vadd.f32 0.0, %v1625
    %v1627 = vpop.f32.mrf.mxu0
    %v1628 = vpop.f32.mrf.mxu0
    %1629 = vdwg.mxu0
    %v1630 = vadd.f32 %v1544, %v1583
    %v1631 = vadd.f32 %v1545, %v1585
    %v1632 = vadd.f32 %v1546, %v1624
    %v1633 = vadd.f32 %v1547, %v1626
    %v1634 = vxor.u32 %v1630, 2147483648
    %v1635 = vxor.u32 %v1631, 2147483648
    %v1636 = vxor.u32 %v1632, 2147483648
    %v1637 = vmul.f32 %v1634, 1.442695
    %v1638 = vpow.pop %v1637
    %v1639 = vmul.f32 %v1635, 1.442695
    %v1640 = vpow.pop %v1639
    %v1641 = vmul.f32 %v1636, 1.442695
    %v1642 = vpow.pop %v1641
    %v1643 = vadd.f32 %v1638, 1.0
    %v1644 = vadd.f32 %v1640, 1.0
    %v1645 = vadd.f32 %v1642, 1.0
    %v1646 = vrcp.pop %v1643
    %v1647 = vmul.f32 1.0, %v1646
    %v1648 = vrcp.pop %v1644
    %v1649 = vmul.f32 1.0, %v1648
    %v1650 = vrcp.pop %v1645
    %v1651 = vmul.f32 1.0, %v1650
    %v1652 = vtanh.pop %v1633
    %v1653 = vmul.f32 %v1649, %v1535
    %v1654 = vmul.f32 %v1647, %v1652
    %v1655 = vadd.f32 %v1653, %v1654
    %v1656 = vtanh.pop %v1655
    %v1657 = vmul.f32 %v1651, %v1656
    %v1658 = vpack.c.bf16 %v1657, %v1657
    %s1659 = scalar_lea.vmem %s4, 28
    %1660 = vst [vmem:[%s1659] sm:$0xf] %v1658
    // Predicated region
    $region30: #{model_forward.2} parent=1 // pred_check
      _
    $region31: #{model_forward.2} parent=1 // pred_check_branch
      %1662 = sbr.rel (0) target = $region33
    $region32: #{model_forward.2} parent=1 // pred_region
      _
    $region33: #{model_forward.2} parent=1 // pred_fallthru
      _
    // Predicated region
    $region34: #{model_forward.2} parent=1 // pred_check
      _
    $region35: #{model_forward.2} parent=1 // pred_check_branch
      %1664 = sbr.rel (0) target = $region37
    $region36: #{model_forward.2} parent=1 // pred_region
      _
    $region37: #{model_forward.2} parent=1 // pred_fallthru
      _
    %1665 = vsyncpa [#allocation4], 1
    %1666 = vsyncpa [#allocation6], 1

// kernel: model_forward.3
$region0: #{model_forward.3}
  #allocation0 [shape = 'u32[]', space=smem, size = 0x4, offset = 0x4, fixed_abs, tag = 'smem constant byte address 0x4 - core index']
  #allocation1 [shape = 'u32[144,128]{1,0:T(1,128)}', space=vmem, size = 0x12000, scoped, tag = 'internal scratch']
  #allocation2 [shape = 'bf16[8,8,128]{2,1,0:T(8,128)(2,1)}', space=vmem, size = 0x4000, scoped, tag = 'scratch operand']
  #allocation3 [shape = 'bf16[8,8,512]{2,1,0:T(8,128)(2,1)}', space=vmem, size = 0x10000, scoped, tag = 'scratch operand']
  #allocation4 [shape = 'f32[1,1]{1,0:T(1,128)S(1)}', space=vmem, size = 0x200, scoped, tag = 'scoped memory for model_forward.3']
  %s0 = inlined_call_operand.vmem [shape: bf16[8,8,128], index: 0, kind: input, shape index: {}]
  %s1 = inlined_call_operand.vmem [shape: bf16[128,640], index: 1, kind: input, shape index: {}]
  %s2 = inlined_call_operand.hbm [shape: bf16[128,512], index: 2, kind: input, shape index: {}]
  %s3 = inlined_call_operand.vmem [shape: f32[1,512], index: 3, kind: input, shape index: {}]
  %s4 = inlined_call_operand.vmem [shape: bf16[128,1], index: 4, kind: input, shape index: {}]
  %s5 = inlined_call_operand.<no memory space> [shape: f32[1,1], index: 5, kind: input, shape index: {}]
  %s6 = inlined_call_operand.vmem [shape: f32[8,8,1], index: 6, kind: output, shape index: {}]
  %s7 = sld [smem:[#allocation0]]
  $region38: #{model_forward.3} parent=0
    _
  %s9 = ssub.s32 1, %s7
  %s10 = scalar_select 0, %s9, %s7
  %v11 = vstv %s5
  %12 = vst [vmem:[#allocation4] sm:$0x1] %v11
  $region1: #{model_forward.3} parent=0
    #allocation5 [shape = 'u8[131072]{0}', space=vmem, size = 0x20000, scoped, tag = 'input window, operand 2, single buffered']
    #allocation6 [shape = 's32[1]{0}', space=sflag, size = 0x4, scoped, tag = 'scoped memory for model_forward.3']
    %13 = vsyncpa [#allocation6], 0
    // Predicated region
    $region2: #{model_forward.3} parent=1 // pred_check
      _
    $region3: #{model_forward.3} parent=1 // pred_check_branch
      %15 = sbr.rel (0) target = $region5
    $region4: #{model_forward.3} parent=1 // pred_region
      _
    $region5: #{model_forward.3} parent=1 // pred_fallthru
      _
    // Predicated region
    $region6: #{model_forward.3} parent=1 // pred_check
      _
    $region7: #{model_forward.3} parent=1 // pred_check_branch
      %17 = sbr.rel (0) target = $region9
    $region8: #{model_forward.3} parent=1 // pred_region
      _
    $region9: #{model_forward.3} parent=1 // pred_fallthru
      _
    // Predicated region
    $region10: #{model_forward.3} parent=1 // pred_check
      _
    $region11: #{model_forward.3} parent=1 // pred_check_branch
      %19 = sbr.rel (0) target = $region13
    $region12: #{model_forward.3} parent=1 // pred_region
      %s21 = ssub.s32 4096, 4096
      %22 = vsyncadd [#allocation6], %s21
      %s23 = sshll.u32 [#allocation5], 4
      %s24 = int_to_ptr.vmem [resolvable:$true] %s23
      %29 = dma.hbm_to_vmem [thread:$0]  %s2, 4096, %s24, [#allocation6], 256, 256, 16
    $region13: #{model_forward.3} parent=1 // pred_fallthru
      _
    // Predicated region
    $region14: #{model_forward.3} parent=1 // pred_check
      _
    $region15: #{model_forward.3} parent=1 // pred_check_branch
      %31 = sbr.rel (0) target = $region17
    $region16: #{model_forward.3} parent=1 // pred_region
      _
    $region17: #{model_forward.3} parent=1 // pred_fallthru
      _
    // Predicated region
    $region18: #{model_forward.3} parent=1 // pred_check
      _
    $region19: #{model_forward.3} parent=1 // pred_check_branch
      %33 = sbr.rel (0) target = $region21
    $region20: #{model_forward.3} parent=1 // pred_region
      _
    $region21: #{model_forward.3} parent=1 // pred_fallthru
      _
    // Predicated region
    $region22: #{model_forward.3} parent=1 // pred_check
      _
    $region23: #{model_forward.3} parent=1 // pred_check_branch
      %35 = sbr.rel (0) target = $region25
    $region24: #{model_forward.3} parent=1 // pred_region
      _
    $region25: #{model_forward.3} parent=1 // pred_fallthru
      _
    // Predicated region
    $region26: #{model_forward.3} parent=1 // pred_check
      _
    $region27: #{model_forward.3} parent=1 // pred_check_branch
      %37 = sbr.rel (0) target = $region29
    $region28: #{model_forward.3} parent=1 // pred_region
      %38 = dma.done [#allocation6], 4096
    $region29: #{model_forward.3} parent=1 // pred_fallthru
      _
    %v40 = vld [vmem:[%s0] sm:$0xf]
    %v41 = vld [vmem:[%s0 + $0x4] sm:$0xf]
    %v42 = vld [vmem:[%s0 + $0x8] sm:$0xf]
    %v43 = vld [vmem:[%s0 + $0xc] sm:$0xf]
    %v44 = vld [vmem:[%s0 + $0x10] sm:$0xf]
    %v45 = vld [vmem:[%s0 + $0x14] sm:$0xf]
    %v46 = vld [vmem:[%s0 + $0x18] sm:$0xf]
    %v47 = vld [vmem:[%s0 + $0x1c] sm:$0xf]
    %v48 = vld [vmem:[%s1] sm:$0xff]
    %v49 = vld [vmem:[%s1 + $0x8] sm:$0xff]
    %v50 = vld [vmem:[%s1 + $0x10] sm:$0xf]
    %v51 = vld [vmem:[%s1 + $0x14] sm:$0xff]
    %v52 = vld [vmem:[%s1 + $0x1c] sm:$0xff]
    %v53 = vld [vmem:[%s1 + $0x24] sm:$0xf]
    %v54 = vld [vmem:[%s1 + $0x28] sm:$0xff]
    %v55 = vld [vmem:[%s1 + $0x30] sm:$0xff]
    %v56 = vld [vmem:[%s1 + $0x38] sm:$0xf]
    %v57 = vld [vmem:[%s1 + $0x3c] sm:$0xff]
    %v58 = vld [vmem:[%s1 + $0x44] sm:$0xff]
    %v59 = vld [vmem:[%s1 + $0x4c] sm:$0xf]
    %v60 = vld [vmem:[%s1 + $0x50] sm:$0xff]
    %v61 = vld [vmem:[%s1 + $0x58] sm:$0xff]
    %v62 = vld [vmem:[%s1 + $0x60] sm:$0xf]
    %v63 = vld [vmem:[%s1 + $0x64] sm:$0xff]
    %v64 = vld [vmem:[%s1 + $0x6c] sm:$0xff]
    %v65 = vld [vmem:[%s1 + $0x74] sm:$0xf]
    %v66 = vld [vmem:[%s1 + $0x78] sm:$0xff]
    %v67 = vld [vmem:[%s1 + $0x80] sm:$0xff]
    %v68 = vld [vmem:[%s1 + $0x88] sm:$0xf]
    %v69 = vld [vmem:[%s1 + $0x8c] sm:$0xff]
    %v70 = vld [vmem:[%s1 + $0x94] sm:$0xff]
    %v71 = vld [vmem:[%s1 + $0x9c] sm:$0xf]
    %v72 = vld [vmem:[%s1 + $0xa0] sm:$0xff]
    %v73 = vld [vmem:[%s1 + $0xa8] sm:$0xff]
    %v74 = vld [vmem:[%s1 + $0xb0] sm:$0xf]
    %v75 = vld [vmem:[%s1 + $0xb4] sm:$0xff]
    %v76 = vld [vmem:[%s1 + $0xbc] sm:$0xff]
    %v77 = vld [vmem:[%s1 + $0xc4] sm:$0xf]
    %v78 = vld [vmem:[%s1 + $0xc8] sm:$0xff]
    %v79 = vld [vmem:[%s1 + $0xd0] sm:$0xff]
    %v80 = vld [vmem:[%s1 + $0xd8] sm:$0xf]
    %v81 = vld [vmem:[%s1 + $0xdc] sm:$0xff]
    %v82 = vld [vmem:[%s1 + $0xe4] sm:$0xff]
    %v83 = vld [vmem:[%s1 + $0xec] sm:$0xf]
    %v84 = vld [vmem:[%s1 + $0xf0] sm:$0xff]
    %v85 = vld [vmem:[%s1 + $0xf8] sm:$0xff]
    %v86 = vld [vmem:[%s1 + $0x100] sm:$0xf]
    %v87 = vld [vmem:[%s1 + $0x104] sm:$0xff]
    %v88 = vld [vmem:[%s1 + $0x10c] sm:$0xff]
    %v89 = vld [vmem:[%s1 + $0x114] sm:$0xf]
    %v90 = vld [vmem:[%s1 + $0x118] sm:$0xff]
    %v91 = vld [vmem:[%s1 + $0x120] sm:$0xff]
    %v92 = vld [vmem:[%s1 + $0x128] sm:$0xf]
    %v93 = vld [vmem:[%s1 + $0x12c] sm:$0xff]
    %v94 = vld [vmem:[%s1 + $0x134] sm:$0xff]
    %v95 = vld [vmem:[%s1 + $0x13c] sm:$0xf]
    %v104 = vunpack.c.l.b16 %v40
    %v105 = vunpack.c.l.b16 %v41
    %v106 = vunpack.c.l.b16 %v42
    %v107 = vunpack.c.l.b16 %v43
    %v108 = vunpack.c.l.b16 %v44
    %v109 = vunpack.c.l.b16 %v45
    %v110 = vunpack.c.l.b16 %v46
    %v111 = vunpack.c.l.b16 %v47
    %v112 = vpack.c.b16 %v105, %v104
    %v113 = vpack.c.b16 %v107, %v106
    %v114 = vpack.c.b16 %v109, %v108
    %v115 = vpack.c.b16 %v111, %v110
    %v168 = vunpack.c.l.b16 %v48
    %v169 = vunpack.c.h.b16 %v48
    %v170 = vunpack.c.l.b16 %v49
    %v171 = vunpack.c.h.b16 %v49
    %v172 = vunpack.c.l.b16 %v50
    %v173 = vunpack.c.l.b16 %v51
    %v174 = vunpack.c.h.b16 %v51
    %v175 = vunpack.c.l.b16 %v52
    %v176 = vunpack.c.h.b16 %v52
    %v177 = vunpack.c.l.b16 %v53
    %v178 = vunpack.c.l.b16 %v54
    %v179 = vunpack.c.h.b16 %v54
    %v180 = vunpack.c.l.b16 %v55
    %v181 = vunpack.c.h.b16 %v55
    %v182 = vunpack.c.l.b16 %v56
    %v183 = vunpack.c.l.b16 %v57
    %v184 = vunpack.c.h.b16 %v57
    %v185 = vunpack.c.l.b16 %v58
    %v186 = vunpack.c.h.b16 %v58
    %v187 = vunpack.c.l.b16 %v59
    %v188 = vunpack.c.l.b16 %v60
    %v189 = vunpack.c.h.b16 %v60
    %v190 = vunpack.c.l.b16 %v61
    %v191 = vunpack.c.h.b16 %v61
    %v192 = vunpack.c.l.b16 %v62
    %v193 = vunpack.c.l.b16 %v63
    %v194 = vunpack.c.h.b16 %v63
    %v195 = vunpack.c.l.b16 %v64
    %v196 = vunpack.c.h.b16 %v64
    %v197 = vunpack.c.l.b16 %v65
    %v198 = vunpack.c.l.b16 %v66
    %v199 = vunpack.c.h.b16 %v66
    %v200 = vunpack.c.l.b16 %v67
    %v201 = vunpack.c.h.b16 %v67
    %v202 = vunpack.c.l.b16 %v68
    %v203 = vunpack.c.l.b16 %v69
    %v204 = vunpack.c.h.b16 %v69
    %v205 = vunpack.c.l.b16 %v70
    %v206 = vunpack.c.h.b16 %v70
    %v207 = vunpack.c.l.b16 %v71
    %v208 = vunpack.c.l.b16 %v72
    %v209 = vunpack.c.h.b16 %v72
    %v210 = vunpack.c.l.b16 %v73
    %v211 = vunpack.c.h.b16 %v73
    %v212 = vunpack.c.l.b16 %v74
    %v213 = vunpack.c.l.b16 %v75
    %v214 = vunpack.c.h.b16 %v75
    %v215 = vunpack.c.l.b16 %v76
    %v216 = vunpack.c.h.b16 %v76
    %v217 = vunpack.c.l.b16 %v77
    %v218 = vunpack.c.l.b16 %v78
    %v219 = vunpack.c.h.b16 %v78
    %v220 = vunpack.c.l.b16 %v79
    %v221 = vunpack.c.h.b16 %v79
    %v222 = vunpack.c.l.b16 %v80
    %v223 = vunpack.c.l.b16 %v81
    %v224 = vunpack.c.h.b16 %v81
    %v225 = vunpack.c.l.b16 %v82
    %v226 = vunpack.c.h.b16 %v82
    %v227 = vunpack.c.l.b16 %v83
    %v228 = vunpack.c.l.b16 %v84
    %v229 = vunpack.c.h.b16 %v84
    %v230 = vunpack.c.l.b16 %v85
    %v231 = vunpack.c.h.b16 %v85
    %v232 = vunpack.c.l.b16 %v86
    %v233 = vunpack.c.l.b16 %v87
    %v234 = vunpack.c.h.b16 %v87
    %v235 = vunpack.c.l.b16 %v88
    %v236 = vunpack.c.h.b16 %v88
    %v237 = vunpack.c.l.b16 %v89
    %v238 = vunpack.c.l.b16 %v90
    %v239 = vunpack.c.h.b16 %v90
    %v240 = vunpack.c.l.b16 %v91
    %v241 = vunpack.c.h.b16 %v91
    %v242 = vunpack.c.l.b16 %v92
    %v243 = vunpack.c.l.b16 %v93
    %v244 = vunpack.c.h.b16 %v93
    %v245 = vunpack.c.l.b16 %v94
    %v246 = vunpack.c.h.b16 %v94
    %v247 = vunpack.c.l.b16 %v95
    %v248 = vpack.c.b16 %v173, %v168
    %v249 = vpack.c.b16 %v174, %v169
    %v250 = vpack.c.b16 %v175, %v170
    %v251 = vpack.c.b16 %v176, %v171
    %v252 = vpack.c.b16 %v177, %v172
    %v253 = vpack.c.b16 %v183, %v178
    %v254 = vpack.c.b16 %v184, %v179
    %v255 = vpack.c.b16 %v185, %v180
    %v256 = vpack.c.b16 %v186, %v181
    %v257 = vpack.c.b16 %v187, %v182
    %v258 = vpack.c.b16 %v193, %v188
    %v259 = vpack.c.b16 %v194, %v189
    %v260 = vpack.c.b16 %v195, %v190
    %v261 = vpack.c.b16 %v196, %v191
    %v262 = vpack.c.b16 %v197, %v192
    %v263 = vpack.c.b16 %v203, %v198
    %v264 = vpack.c.b16 %v204, %v199
    %v265 = vpack.c.b16 %v205, %v200
    %v266 = vpack.c.b16 %v206, %v201
    %v267 = vpack.c.b16 %v207, %v202
    %v268 = vpack.c.b16 %v213, %v208
    %v269 = vpack.c.b16 %v214, %v209
    %v270 = vpack.c.b16 %v215, %v210
    %v271 = vpack.c.b16 %v216, %v211
    %v272 = vpack.c.b16 %v217, %v212
    %v273 = vpack.c.b16 %v223, %v218
    %v274 = vpack.c.b16 %v224, %v219
    %v275 = vpack.c.b16 %v225, %v220
    %v276 = vpack.c.b16 %v226, %v221
    %v277 = vpack.c.b16 %v227, %v222
    %v278 = vpack.c.b16 %v233, %v228
    %v279 = vpack.c.b16 %v234, %v229
    %v280 = vpack.c.b16 %v235, %v230
    %v281 = vpack.c.b16 %v236, %v231
    %v282 = vpack.c.b16 %v237, %v232
    %v283 = vpack.c.b16 %v243, %v238
    %v284 = vpack.c.b16 %v244, %v239
    %v285 = vpack.c.b16 %v245, %v240
    %v286 = vpack.c.b16 %v246, %v241
    %v287 = vpack.c.b16 %v247, %v242
    %328 = vmatprep.subr.bf16.mxu0 %v284
    %329 = vmatpush1.bf16.msra.mxu0 %v283
    %330 = vmatprep.subr.bf16.mxu0 %v279
    %331 = vmatpush1.bf16.msra.mxu0 %v278
    %332 = vmatprep.subr.bf16.mxu0 %v274
    %333 = vmatpush1.bf16.msra.mxu0 %v273
    %334 = vmatprep.subr.bf16.mxu0 %v269
    %335 = vmatpush1.bf16.msra.mxu0 %v268
    %336 = vmatprep.subr.bf16.mxu0 %v264
    %337 = vmatpush1.bf16.msra.mxu0 %v263
    %338 = vmatprep.subr.bf16.mxu0 %v259
    %339 = vmatpush1.bf16.msra.mxu0 %v258
    %340 = vmatprep.subr.bf16.mxu0 %v254
    %341 = vmatpush1.bf16.msra.mxu0 %v253
    %342 = vmatprep.subr.bf16.mxu0 %v249
    %343 = vmatpush1.bf16.msra.mxu0 %v248
    %344 = vmatprep.subr.bf16.mxu0 0
    %345 = vmatpush2.bf16.msra.mxu0 0
    %346 = vmatprep.subr.bf16.mxu0 0
    %347 = vmatpush2.bf16.msra.mxu0 0
    %348 = vmatprep.subr.bf16.mxu0 0
    %349 = vmatpush2.bf16.msra.mxu0 0
    %350 = vmatprep.subr.bf16.mxu0 0
    %351 = vmatpush2.bf16.msra.mxu0 0
    %352 = vmatprep.subr.bf16.mxu0 0
    %353 = vmatpush2.bf16.msra.mxu0 0
    %354 = vmatprep.subr.bf16.mxu0 0
    %355 = vmatpush2.bf16.msra.mxu0 0
    %356 = vmatprep.subr.bf16.mxu0 0
    %357 = vmatpush2.bf16.msra.mxu0 0
    %358 = vmatprep.subr.bf16.mxu0 0
    %359 = vmatpush2.bf16.msra.mxu0 0
    %360 = vmatprep.mubr.bf16.mxu0 0
    %361 = vmatmul.mubr.bf16.gmra.mxu0 %v112
    %v362 = vpop.f32.mrf.mxu0
    %v363 = vadd.f32 0.0, %v362
    %v364 = vpop.f32.mrf.mxu0
    %v365 = vadd.f32 0.0, %v364
    %v366 = vpop.f32.mrf.mxu0
    %v367 = vadd.f32 0.0, %v366
    %v368 = vpop.f32.mrf.mxu0
    %v369 = vadd.f32 0.0, %v368
    %370 = vmatprep.mubr.bf16.mxu0 0
    %371 = vmatmul.mubr.bf16.gmra.mxu0 %v113
    %v372 = vpop.f32.mrf.mxu0
    %v373 = vadd.f32 0.0, %v372
    %v374 = vpop.f32.mrf.mxu0
    %v375 = vadd.f32 0.0, %v374
    %v376 = vpop.f32.mrf.mxu0
    %v377 = vadd.f32 0.0, %v376
    %v378 = vpop.f32.mrf.mxu0
    %v379 = vadd.f32 0.0, %v378
    %380 = vmatprep.mubr.bf16.mxu0 0
    %381 = vmatmul.mubr.bf16.gmra.mxu0 %v114
    %v382 = vpop.f32.mrf.mxu0
    %v383 = vadd.f32 0.0, %v382
    %v384 = vpop.f32.mrf.mxu0
    %v385 = vadd.f32 0.0, %v384
    %v386 = vpop.f32.mrf.mxu0
    %v387 = vadd.f32 0.0, %v386
    %v388 = vpop.f32.mrf.mxu0
    %v389 = vadd.f32 0.0, %v388
    %390 = vmatprep.mubr.bf16.mxu0 0
    %391 = vmatmul.mubr.bf16.gmra.mxu0 %v115
    %v392 = vpop.f32.mrf.mxu0
    %v393 = vadd.f32 0.0, %v392
    %v394 = vpop.f32.mrf.mxu0
    %v395 = vadd.f32 0.0, %v394
    %v396 = vpop.f32.mrf.mxu0
    %v397 = vadd.f32 0.0, %v396
    %v398 = vpop.f32.mrf.mxu0
    %v399 = vadd.f32 0.0, %v398
    %400 = vdwg.mxu0
    %401 = vmatprep.subr.bf16.mxu0 %v286
    %402 = vmatpush1.bf16.msra.mxu0 %v285
    %403 = vmatprep.subr.bf16.mxu0 %v281
    %404 = vmatpush1.bf16.msra.mxu0 %v280
    %405 = vmatprep.subr.bf16.mxu0 %v276
    %406 = vmatpush1.bf16.msra.mxu0 %v275
    %407 = vmatprep.subr.bf16.mxu0 %v271
    %408 = vmatpush1.bf16.msra.mxu0 %v270
    %409 = vmatprep.subr.bf16.mxu0 %v266
    %410 = vmatpush1.bf16.msra.mxu0 %v265
    %411 = vmatprep.subr.bf16.mxu0 %v261
    %412 = vmatpush1.bf16.msra.mxu0 %v260
    %413 = vmatprep.subr.bf16.mxu0 %v256
    %414 = vmatpush1.bf16.msra.mxu0 %v255
    %415 = vmatprep.subr.bf16.mxu0 %v251
    %416 = vmatpush1.bf16.msra.mxu0 %v250
    %417 = vmatprep.subr.bf16.mxu0 0
    %418 = vmatpush2.bf16.msra.mxu0 0
    %419 = vmatprep.subr.bf16.mxu0 0
    %420 = vmatpush2.bf16.msra.mxu0 0
    %421 = vmatprep.subr.bf16.mxu0 0
    %422 = vmatpush2.bf16.msra.mxu0 0
    %423 = vmatprep.subr.bf16.mxu0 0
    %424 = vmatpush2.bf16.msra.mxu0 0
    %425 = vmatprep.subr.bf16.mxu0 0
    %426 = vmatpush2.bf16.msra.mxu0 0
    %427 = vmatprep.subr.bf16.mxu0 0
    %428 = vmatpush2.bf16.msra.mxu0 0
    %429 = vmatprep.subr.bf16.mxu0 0
    %430 = vmatpush2.bf16.msra.mxu0 0
    %431 = vmatprep.subr.bf16.mxu0 0
    %432 = vmatpush2.bf16.msra.mxu0 0
    %433 = vmatprep.mubr.bf16.mxu0 0
    %434 = vmatmul.mubr.bf16.gmra.mxu0 %v112
    %v435 = vpop.f32.mrf.mxu0
    %v436 = vadd.f32 0.0, %v435
    %v437 = vpop.f32.mrf.mxu0
    %v438 = vadd.f32 0.0, %v437
    %v439 = vpop.f32.mrf.mxu0
    %v440 = vadd.f32 0.0, %v439
    %v441 = vpop.f32.mrf.mxu0
    %v442 = vadd.f32 0.0, %v441
    %443 = vmatprep.mubr.bf16.mxu0 0
    %444 = vmatmul.mubr.bf16.gmra.mxu0 %v113
    %v445 = vpop.f32.mrf.mxu0
    %v446 = vadd.f32 0.0, %v445
    %v447 = vpop.f32.mrf.mxu0
    %v448 = vadd.f32 0.0, %v447
    %v449 = vpop.f32.mrf.mxu0
    %v450 = vadd.f32 0.0, %v449
    %v451 = vpop.f32.mrf.mxu0
    %v452 = vadd.f32 0.0, %v451
    %453 = vmatprep.mubr.bf16.mxu0 0
    %454 = vmatmul.mubr.bf16.gmra.mxu0 %v114
    %v455 = vpop.f32.mrf.mxu0
    %v456 = vadd.f32 0.0, %v455
    %v457 = vpop.f32.mrf.mxu0
    %v458 = vadd.f32 0.0, %v457
    %v459 = vpop.f32.mrf.mxu0
    %v460 = vadd.f32 0.0, %v459
    %v461 = vpop.f32.mrf.mxu0
    %v462 = vadd.f32 0.0, %v461
    %463 = vmatprep.mubr.bf16.mxu0 0
    %464 = vmatmul.mubr.bf16.gmra.mxu0 %v115
    %v465 = vpop.f32.mrf.mxu0
    %v466 = vadd.f32 0.0, %v465
    %v467 = vpop.f32.mrf.mxu0
    %v468 = vadd.f32 0.0, %v467
    %v469 = vpop.f32.mrf.mxu0
    %v470 = vadd.f32 0.0, %v469
    %v471 = vpop.f32.mrf.mxu0
    %v472 = vadd.f32 0.0, %v471
    %473 = vdwg.mxu0
    %474 = vmatprep.subr.bf16.mxu0 0
    %475 = vmatpush1.bf16.msra.mxu0 %v287
    %476 = vmatprep.subr.bf16.mxu0 0
    %477 = vmatpush1.bf16.msra.mxu0 %v282
    %478 = vmatprep.subr.bf16.mxu0 0
    %479 = vmatpush1.bf16.msra.mxu0 %v277
    %480 = vmatprep.subr.bf16.mxu0 0
    %481 = vmatpush1.bf16.msra.mxu0 %v272
    %482 = vmatprep.subr.bf16.mxu0 0
    %483 = vmatpush1.bf16.msra.mxu0 %v267
    %484 = vmatprep.subr.bf16.mxu0 0
    %485 = vmatpush1.bf16.msra.mxu0 %v262
    %486 = vmatprep.subr.bf16.mxu0 0
    %487 = vmatpush1.bf16.msra.mxu0 %v257
    %488 = vmatprep.subr.bf16.mxu0 0
    %489 = vmatpush1.bf16.msra.mxu0 %v252
    %490 = vmatprep.subr.bf16.mxu0 0
    %491 = vmatpush2.bf16.msra.mxu0 0
    %492 = vmatprep.subr.bf16.mxu0 0
    %493 = vmatpush2.bf16.msra.mxu0 0
    %494 = vmatprep.subr.bf16.mxu0 0
    %495 = vmatpush2.bf16.msra.mxu0 0
    %496 = vmatprep.subr.bf16.mxu0 0
    %497 = vmatpush2.bf16.msra.mxu0 0
    %498 = vmatprep.subr.bf16.mxu0 0
    %499 = vmatpush2.bf16.msra.mxu0 0
    %500 = vmatprep.subr.bf16.mxu0 0
    %501 = vmatpush2.bf16.msra.mxu0 0
    %502 = vmatprep.subr.bf16.mxu0 0
    %503 = vmatpush2.bf16.msra.mxu0 0
    %504 = vmatprep.subr.bf16.mxu0 0
    %505 = vmatpush2.bf16.msra.mxu0 0
    %506 = vmatprep.mubr.bf16.mxu0 0
    %507 = vmatmul.mubr.bf16.gmra.mxu0 %v112
    %v508 = vpop.f32.mrf.mxu0
    %v509 = vadd.f32 0.0, %v508
    %v510 = vpop.f32.mrf.mxu0
    %v511 = vpop.f32.mrf.mxu0
    %v512 = vadd.f32 0.0, %v511
    %v513 = vpop.f32.mrf.mxu0
    %514 = vmatprep.mubr.bf16.mxu0 0
    %515 = vmatmul.mubr.bf16.gmra.mxu0 %v113
    %v516 = vpop.f32.mrf.mxu0
    %v517 = vadd.f32 0.0, %v516
    %v518 = vpop.f32.mrf.mxu0
    %v519 = vpop.f32.mrf.mxu0
    %v520 = vadd.f32 0.0, %v519
    %v521 = vpop.f32.mrf.mxu0
    %522 = vmatprep.mubr.bf16.mxu0 0
    %523 = vmatmul.mubr.bf16.gmra.mxu0 %v114
    %v524 = vpop.f32.mrf.mxu0
    %v525 = vadd.f32 0.0, %v524
    %v526 = vpop.f32.mrf.mxu0
    %v527 = vpop.f32.mrf.mxu0
    %v528 = vadd.f32 0.0, %v527
    %v529 = vpop.f32.mrf.mxu0
    %530 = vmatprep.mubr.bf16.mxu0 0
    %531 = vmatmul.mubr.bf16.gmra.mxu0 %v115
    %v532 = vpop.f32.mrf.mxu0
    %v533 = vadd.f32 0.0, %v532
    %v534 = vpop.f32.mrf.mxu0
    %v535 = vpop.f32.mrf.mxu0
    %v536 = vadd.f32 0.0, %v535
    %v537 = vpop.f32.mrf.mxu0
    %538 = vdwg.mxu0
    %v539 = vld [vmem:[%s3] sm:$0xf]
    %v541 = vlaneseq
    %v542 = vshrl.u32 %v541, 7
    %v543 = vsub.s32 0, %v542
    %v544 = vrot.slane %v539, %v543
    %v545 = vlaneseq
    %v546 = vshrl.u32 %v545, 7
    %v547 = vsub.s32 1, %v546
    %v548 = vrot.slane %v539, %v547
    %v549 = vlaneseq
    %v550 = vshrl.u32 %v549, 7
    %v551 = vsub.s32 2, %v550
    %v552 = vrot.slane %v539, %v551
    %v553 = vlaneseq
    %v554 = vshrl.u32 %v553, 7
    %v555 = vsub.s32 3, %v554
    %v556 = vrot.slane %v539, %v555
    %v561 = vadd.f32 %v363, %v544
    %v562 = vadd.f32 %v365, %v548
    %v563 = vadd.f32 %v436, %v552
    %v564 = vadd.f32 %v438, %v556
    %v565 = vadd.f32 %v367, %v544
    %v566 = vadd.f32 %v369, %v548
    %v567 = vadd.f32 %v440, %v552
    %v568 = vadd.f32 %v442, %v556
    %v569 = vadd.f32 %v373, %v544
    %v570 = vadd.f32 %v375, %v548
    %v571 = vadd.f32 %v446, %v552
    %v572 = vadd.f32 %v448, %v556
    %v573 = vadd.f32 %v377, %v544
    %v574 = vadd.f32 %v379, %v548
    %v575 = vadd.f32 %v450, %v552
    %v576 = vadd.f32 %v452, %v556
    %v577 = vadd.f32 %v383, %v544
    %v578 = vadd.f32 %v385, %v548
    %v579 = vadd.f32 %v456, %v552
    %v580 = vadd.f32 %v458, %v556
    %v581 = vadd.f32 %v387, %v544
    %v582 = vadd.f32 %v389, %v548
    %v583 = vadd.f32 %v460, %v552
    %v584 = vadd.f32 %v462, %v556
    %v585 = vadd.f32 %v393, %v544
    %v586 = vadd.f32 %v395, %v548
    %v587 = vadd.f32 %v466, %v552
    %v588 = vadd.f32 %v468, %v556
    %v589 = vadd.f32 %v397, %v544
    %v590 = vadd.f32 %v399, %v548
    %v591 = vadd.f32 %v470, %v552
    %v592 = vadd.f32 %v472, %v556
    %v593 = vpack.c.bf16 %v561, %v561
    %v594 = vpack.c.bf16 %v562, %v562
    %v595 = vpack.c.bf16 %v565, %v565
    %v596 = vpack.c.bf16 %v566, %v566
    %v597 = vpack.c.bf16 %v569, %v569
    %v598 = vpack.c.bf16 %v570, %v570
    %v599 = vpack.c.bf16 %v573, %v573
    %v600 = vpack.c.bf16 %v574, %v574
    %v601 = vpack.c.bf16 %v577, %v577
    %v602 = vpack.c.bf16 %v578, %v578
    %v603 = vpack.c.bf16 %v581, %v581
    %v604 = vpack.c.bf16 %v582, %v582
    %v605 = vpack.c.bf16 %v585, %v585
    %v606 = vpack.c.bf16 %v586, %v586
    %v607 = vpack.c.bf16 %v589, %v589
    %v608 = vpack.c.bf16 %v590, %v590
    %v625 = vunpack.c.l.b16 %v593
    %v626 = vunpack.c.l.b16 %v594
    %v627 = vunpack.c.l.b16 %v595
    %v628 = vunpack.c.l.b16 %v596
    %v629 = vunpack.c.l.b16 %v597
    %v630 = vunpack.c.l.b16 %v598
    %v631 = vunpack.c.l.b16 %v599
    %v632 = vunpack.c.l.b16 %v600
    %v633 = vunpack.c.l.b16 %v601
    %v634 = vunpack.c.l.b16 %v602
    %v635 = vunpack.c.l.b16 %v603
    %v636 = vunpack.c.l.b16 %v604
    %v637 = vunpack.c.l.b16 %v605
    %v638 = vunpack.c.l.b16 %v606
    %v639 = vunpack.c.l.b16 %v607
    %v640 = vunpack.c.l.b16 %v608
    %v641 = vpack.c.b16 %v626, %v625
    %v642 = vpack.c.b16 %v628, %v627
    %v643 = vpack.c.b16 %v630, %v629
    %v644 = vpack.c.b16 %v632, %v631
    %v645 = vpack.c.b16 %v634, %v633
    %v646 = vpack.c.b16 %v636, %v635
    %v647 = vpack.c.b16 %v638, %v637
    %v648 = vpack.c.b16 %v640, %v639
    %657 = vst [vmem:[#allocation3] sm:$0xff] %v641
    %658 = vst [vmem:[#allocation3 + $0x10] sm:$0xff] %v642
    %659 = vst [vmem:[#allocation3 + $0x20] sm:$0xff] %v643
    %660 = vst [vmem:[#allocation3 + $0x30] sm:$0xff] %v644
    %661 = vst [vmem:[#allocation3 + $0x40] sm:$0xff] %v645
    %662 = vst [vmem:[#allocation3 + $0x50] sm:$0xff] %v646
    %663 = vst [vmem:[#allocation3 + $0x60] sm:$0xff] %v647
    %664 = vst [vmem:[#allocation3 + $0x70] sm:$0xff] %v648
    %v665 = vpack.c.bf16 %v564, %v564
    %v666 = vpack.c.bf16 %v568, %v568
    %v667 = vpack.c.bf16 %v572, %v572
    %v668 = vpack.c.bf16 %v576, %v576
    %v669 = vpack.c.bf16 %v580, %v580
    %v670 = vpack.c.bf16 %v584, %v584
    %v671 = vpack.c.bf16 %v588, %v588
    %v672 = vpack.c.bf16 %v592, %v592
    %673 = vst [vmem:[#allocation3 + $0xc] sm:$0xf] %v665
    %674 = vst [vmem:[#allocation3 + $0x1c] sm:$0xf] %v666
    %675 = vst [vmem:[#allocation3 + $0x2c] sm:$0xf] %v667
    %676 = vst [vmem:[#allocation3 + $0x3c] sm:$0xf] %v668
    %677 = vst [vmem:[#allocation3 + $0x4c] sm:$0xf] %v669
    %678 = vst [vmem:[#allocation3 + $0x5c] sm:$0xf] %v670
    %679 = vst [vmem:[#allocation3 + $0x6c] sm:$0xf] %v671
    %680 = vst [vmem:[#allocation3 + $0x7c] sm:$0xf] %v672
    %v681 = vpack.c.bf16 %v563, %v563
    %682 = vst [vmem:[#allocation3 + $0x8] sm:$0xf] %v681
    %v683 = vsub.f32 %v512, %v509
    %v684 = vsub.f32 %v517, %v512
    %v685 = vsub.f32 %v520, %v517
    %v686 = vsub.f32 %v525, %v520
    %v687 = vsub.f32 %v528, %v525
    %v688 = vsub.f32 %v533, %v528
    %v689 = vsub.f32 %v536, %v533
    %v690 = vadd.f32 %v567, %v683
    %v691 = vadd.f32 %v571, %v684
    %v692 = vadd.f32 %v575, %v685
    %v693 = vadd.f32 %v579, %v686
    %v694 = vadd.f32 %v583, %v687
    %v695 = vadd.f32 %v587, %v688
    %v696 = vadd.f32 %v591, %v689
    %v697 = vpack.c.bf16 %v690, %v690
    %v698 = vpack.c.bf16 %v691, %v691
    %v699 = vpack.c.bf16 %v692, %v692
    %v700 = vpack.c.bf16 %v693, %v693
    %v701 = vpack.c.bf16 %v694, %v694
    %v702 = vpack.c.bf16 %v695, %v695
    %v703 = vpack.c.bf16 %v696, %v696
    %s704 = scalar_lea.vmem [#allocation3], 16
    %705 = vst [vmem:[%s704 + $0x8] sm:$0xf] %v697
    %706 = vst [vmem:[%s704 + $0x18] sm:$0xf] %v698
    %707 = vst [vmem:[%s704 + $0x28] sm:$0xf] %v699
    %708 = vst [vmem:[%s704 + $0x38] sm:$0xf] %v700
    %709 = vst [vmem:[%s704 + $0x48] sm:$0xf] %v701
    %710 = vst [vmem:[%s704 + $0x58] sm:$0xf] %v702
    %711 = vst [vmem:[%s704 + $0x68] sm:$0xf] %v703
    %v712 = vld [vmem:[#allocation5] sm:$0xff]
    %v713 = vld [vmem:[#allocation5 + $0x8] sm:$0xff]
    %v714 = vld [vmem:[#allocation5 + $0x10] sm:$0xff]
    %v715 = vld [vmem:[#allocation5 + $0x18] sm:$0xff]
    %v716 = vld [vmem:[#allocation5 + $0x20] sm:$0xff]
    %v717 = vld [vmem:[#allocation5 + $0x28] sm:$0xff]
    %v718 = vld [vmem:[#allocation5 + $0x30] sm:$0xff]
    %v719 = vld [vmem:[#allocation5 + $0x38] sm:$0xff]
    %v720 = vld [vmem:[#allocation5 + $0x40] sm:$0xff]
    %v721 = vld [vmem:[#allocation5 + $0x48] sm:$0xff]
    %v722 = vld [vmem:[#allocation5 + $0x50] sm:$0xff]
    %v723 = vld [vmem:[#allocation5 + $0x58] sm:$0xff]
    %v724 = vld [vmem:[#allocation5 + $0x60] sm:$0xff]
    %v725 = vld [vmem:[#allocation5 + $0x68] sm:$0xff]
    %v726 = vld [vmem:[#allocation5 + $0x70] sm:$0xff]
    %v727 = vld [vmem:[#allocation5 + $0x78] sm:$0xff]
    %v728 = vld [vmem:[#allocation5 + $0x80] sm:$0xff]
    %v729 = vld [vmem:[#allocation5 + $0x88] sm:$0xff]
    %v730 = vld [vmem:[#allocation5 + $0x90] sm:$0xff]
    %v731 = vld [vmem:[#allocation5 + $0x98] sm:$0xff]
    %v732 = vld [vmem:[#allocation5 + $0xa0] sm:$0xff]
    %v733 = vld [vmem:[#allocation5 + $0xa8] sm:$0xff]
    %v734 = vld [vmem:[#allocation5 + $0xb0] sm:$0xff]
    %v735 = vld [vmem:[#allocation5 + $0xb8] sm:$0xff]
    %v736 = vld [vmem:[#allocation5 + $0xc0] sm:$0xff]
    %v737 = vld [vmem:[#allocation5 + $0xc8] sm:$0xff]
    %v738 = vld [vmem:[#allocation5 + $0xd0] sm:$0xff]
    %v739 = vld [vmem:[#allocation5 + $0xd8] sm:$0xff]
    %v740 = vld [vmem:[#allocation5 + $0xe0] sm:$0xff]
    %v741 = vld [vmem:[#allocation5 + $0xe8] sm:$0xff]
    %v742 = vld [vmem:[#allocation5 + $0xf0] sm:$0xff]
    %v743 = vld [vmem:[#allocation5 + $0xf8] sm:$0xff]
    %v744 = vld [vmem:[#allocation3] sm:$0xff]
    %v745 = vld [vmem:[#allocation3 + $0x8] sm:$0xff]
    %v746 = vunpack.c.l.bf16 %v744
    %v747 = vunpack.c.h.bf16 %v744
    %v748 = vunpack.c.l.bf16 %v745
    %v749 = vunpack.c.h.bf16 %v745
    %v782 = vunpack.c.l.b16 %v712
    %v783 = vunpack.c.h.b16 %v712
    %v784 = vunpack.c.l.b16 %v713
    %v785 = vunpack.c.h.b16 %v713
    %v786 = vunpack.c.l.b16 %v714
    %v787 = vunpack.c.h.b16 %v714
    %v788 = vunpack.c.l.b16 %v715
    %v789 = vunpack.c.h.b16 %v715
    %v790 = vunpack.c.l.b16 %v716
    %v791 = vunpack.c.h.b16 %v716
    %v792 = vunpack.c.l.b16 %v717
    %v793 = vunpack.c.h.b16 %v717
    %v794 = vunpack.c.l.b16 %v718
    %v795 = vunpack.c.h.b16 %v718
    %v796 = vunpack.c.l.b16 %v719
    %v797 = vunpack.c.h.b16 %v719
    %v798 = vunpack.c.l.b16 %v720
    %v799 = vunpack.c.h.b16 %v720
    %v800 = vunpack.c.l.b16 %v721
    %v801 = vunpack.c.h.b16 %v721
    %v802 = vunpack.c.l.b16 %v722
    %v803 = vunpack.c.h.b16 %v722
    %v804 = vunpack.c.l.b16 %v723
    %v805 = vunpack.c.h.b16 %v723
    %v806 = vunpack.c.l.b16 %v724
    %v807 = vunpack.c.h.b16 %v724
    %v808 = vunpack.c.l.b16 %v725
    %v809 = vunpack.c.h.b16 %v725
    %v810 = vunpack.c.l.b16 %v726
    %v811 = vunpack.c.h.b16 %v726
    %v812 = vunpack.c.l.b16 %v727
    %v813 = vunpack.c.h.b16 %v727
    %v814 = vunpack.c.l.b16 %v728
    %v815 = vunpack.c.h.b16 %v728
    %v816 = vunpack.c.l.b16 %v729
    %v817 = vunpack.c.h.b16 %v729
    %v818 = vunpack.c.l.b16 %v730
    %v819 = vunpack.c.h.b16 %v730
    %v820 = vunpack.c.l.b16 %v731
    %v821 = vunpack.c.h.b16 %v731
    %v822 = vunpack.c.l.b16 %v732
    %v823 = vunpack.c.h.b16 %v732
    %v824 = vunpack.c.l.b16 %v733
    %v825 = vunpack.c.h.b16 %v733
    %v826 = vunpack.c.l.b16 %v734
    %v827 = vunpack.c.h.b16 %v734
    %v828 = vunpack.c.l.b16 %v735
    %v829 = vunpack.c.h.b16 %v735
    %v830 = vunpack.c.l.b16 %v736
    %v831 = vunpack.c.h.b16 %v736
    %v832 = vunpack.c.l.b16 %v737
    %v833 = vunpack.c.h.b16 %v737
    %v834 = vunpack.c.l.b16 %v738
    %v835 = vunpack.c.h.b16 %v738
    %v836 = vunpack.c.l.b16 %v739
    %v837 = vunpack.c.h.b16 %v739
    %v838 = vunpack.c.l.b16 %v740
    %v839 = vunpack.c.h.b16 %v740
    %v840 = vunpack.c.l.b16 %v741
    %v841 = vunpack.c.h.b16 %v741
    %v842 = vunpack.c.l.b16 %v742
    %v843 = vunpack.c.h.b16 %v742
    %v844 = vunpack.c.l.b16 %v743
    %v845 = vunpack.c.h.b16 %v743
    %v846 = vpack.c.b16 %v786, %v782
    %v847 = vpack.c.b16 %v787, %v783
    %v848 = vpack.c.b16 %v788, %v784
    %v849 = vpack.c.b16 %v789, %v785
    %v850 = vpack.c.b16 %v794, %v790
    %v851 = vpack.c.b16 %v795, %v791
    %v852 = vpack.c.b16 %v796, %v792
    %v853 = vpack.c.b16 %v797, %v793
    %v854 = vpack.c.b16 %v802, %v798
    %v855 = vpack.c.b16 %v803, %v799
    %v856 = vpack.c.b16 %v804, %v800
    %v857 = vpack.c.b16 %v805, %v801
    %v858 = vpack.c.b16 %v810, %v806
    %v859 = vpack.c.b16 %v811, %v807
    %v860 = vpack.c.b16 %v812, %v808
    %v861 = vpack.c.b16 %v813, %v809
    %v862 = vpack.c.b16 %v818, %v814
    %v863 = vpack.c.b16 %v819, %v815
    %v864 = vpack.c.b16 %v820, %v816
    %v865 = vpack.c.b16 %v821, %v817
    %v866 = vpack.c.b16 %v826, %v822
    %v867 = vpack.c.b16 %v827, %v823
    %v868 = vpack.c.b16 %v828, %v824
    %v869 = vpack.c.b16 %v829, %v825
    %v870 = vpack.c.b16 %v834, %v830
    %v871 = vpack.c.b16 %v835, %v831
    %v872 = vpack.c.b16 %v836, %v832
    %v873 = vpack.c.b16 %v837, %v833
    %v874 = vpack.c.b16 %v842, %v838
    %v875 = vpack.c.b16 %v843, %v839
    %v876 = vpack.c.b16 %v844, %v840
    %v877 = vpack.c.b16 %v845, %v841
    %910 = vmatprep.subr.bf16.mxu0 %v875
    %911 = vmatpush1.bf16.msra.mxu0 %v874
    %912 = vmatprep.subr.bf16.mxu0 %v871
    %913 = vmatpush1.bf16.msra.mxu0 %v870
    %914 = vmatprep.subr.bf16.mxu0 %v867
    %915 = vmatpush1.bf16.msra.mxu0 %v866
    %916 = vmatprep.subr.bf16.mxu0 %v863
    %917 = vmatpush1.bf16.msra.mxu0 %v862
    %918 = vmatprep.subr.bf16.mxu0 %v859
    %919 = vmatpush1.bf16.msra.mxu0 %v858
    %920 = vmatprep.subr.bf16.mxu0 %v855
    %921 = vmatpush1.bf16.msra.mxu0 %v854
    %922 = vmatprep.subr.bf16.mxu0 %v851
    %923 = vmatpush1.bf16.msra.mxu0 %v850
    %924 = vmatprep.subr.bf16.mxu0 %v847
    %925 = vmatpush1.bf16.msra.mxu0 %v846
    %926 = vmatprep.subr.bf16.mxu0 0
    %927 = vmatpush2.bf16.msra.mxu0 0
    %928 = vmatprep.subr.bf16.mxu0 0
    %929 = vmatpush2.bf16.msra.mxu0 0
    %930 = vmatprep.subr.bf16.mxu0 0
    %931 = vmatpush2.bf16.msra.mxu0 0
    %932 = vmatprep.subr.bf16.mxu0 0
    %933 = vmatpush2.bf16.msra.mxu0 0
    %934 = vmatprep.subr.bf16.mxu0 0
    %935 = vmatpush2.bf16.msra.mxu0 0
    %936 = vmatprep.subr.bf16.mxu0 0
    %937 = vmatpush2.bf16.msra.mxu0 0
    %938 = vmatprep.subr.bf16.mxu0 0
    %939 = vmatpush2.bf16.msra.mxu0 0
    %940 = vmatprep.subr.bf16.mxu0 0
    %941 = vmatpush2.bf16.msra.mxu0 0
    %942 = vmatprep.mubr.bf16.mxu0 0
    %943 = vmatmul.mubr.bf16.gmra.mxu0 0
    %v944 = vpop.f32.mrf.mxu0
    %v945 = vadd.f32 0.0, %v944
    %v946 = vpop.f32.mrf.mxu0
    %v947 = vadd.f32 0.0, %v946
    %v948 = vpop.f32.mrf.mxu0
    %v949 = vpop.f32.mrf.mxu0
    %950 = vdwg.mxu0
    %951 = vmatprep.subr.bf16.mxu0 %v877
    %952 = vmatpush1.bf16.msra.mxu0 %v876
    %953 = vmatprep.subr.bf16.mxu0 %v873
    %954 = vmatpush1.bf16.msra.mxu0 %v872
    %955 = vmatprep.subr.bf16.mxu0 %v869
    %956 = vmatpush1.bf16.msra.mxu0 %v868
    %957 = vmatprep.subr.bf16.mxu0 %v865
    %958 = vmatpush1.bf16.msra.mxu0 %v864
    %959 = vmatprep.subr.bf16.mxu0 %v861
    %960 = vmatpush1.bf16.msra.mxu0 %v860
    %961 = vmatprep.subr.bf16.mxu0 %v857
    %962 = vmatpush1.bf16.msra.mxu0 %v856
    %963 = vmatprep.subr.bf16.mxu0 %v853
    %964 = vmatpush1.bf16.msra.mxu0 %v852
    %965 = vmatprep.subr.bf16.mxu0 %v849
    %966 = vmatpush1.bf16.msra.mxu0 %v848
    %967 = vmatprep.subr.bf16.mxu0 0
    %968 = vmatpush2.bf16.msra.mxu0 0
    %969 = vmatprep.subr.bf16.mxu0 0
    %970 = vmatpush2.bf16.msra.mxu0 0
    %971 = vmatprep.subr.bf16.mxu0 0
    %972 = vmatpush2.bf16.msra.mxu0 0
    %973 = vmatprep.subr.bf16.mxu0 0
    %974 = vmatpush2.bf16.msra.mxu0 0
    %975 = vmatprep.subr.bf16.mxu0 0
    %976 = vmatpush2.bf16.msra.mxu0 0
    %977 = vmatprep.subr.bf16.mxu0 0
    %978 = vmatpush2.bf16.msra.mxu0 0
    %979 = vmatprep.subr.bf16.mxu0 0
    %980 = vmatpush2.bf16.msra.mxu0 0
    %981 = vmatprep.subr.bf16.mxu0 0
    %982 = vmatpush2.bf16.msra.mxu0 0
    %983 = vmatprep.mubr.bf16.mxu0 0
    %984 = vmatmul.mubr.bf16.gmra.mxu0 0
    %v985 = vpop.f32.mrf.mxu0
    %v986 = vadd.f32 0.0, %v985
    %v987 = vpop.f32.mrf.mxu0
    %v988 = vadd.f32 0.0, %v987
    %v989 = vpop.f32.mrf.mxu0
    %v990 = vpop.f32.mrf.mxu0
    %991 = vdwg.mxu0
    %v992 = vadd.f32 %v746, %v945
    %v993 = vadd.f32 %v747, %v947
    %v994 = vadd.f32 %v748, %v986
    %v995 = vadd.f32 %v749, %v988
    %v996 = vxor.u32 %v992, 2147483648
    %v997 = vxor.u32 %v993, 2147483648
    %v998 = vxor.u32 %v994, 2147483648
    %v999 = vmul.f32 %v996, 1.442695
    %v1000 = vpow.pop %v999
    %v1001 = vmul.f32 %v997, 1.442695
    %v1002 = vpow.pop %v1001
    %v1003 = vmul.f32 %v998, 1.442695
    %v1004 = vpow.pop %v1003
    %v1005 = vadd.f32 %v1000, 1.0
    %v1006 = vadd.f32 %v1002, 1.0
    %v1007 = vadd.f32 %v1004, 1.0
    %v1008 = vrcp.pop %v1005
    %v1009 = vmul.f32 1.0, %v1008
    %v1010 = vrcp.pop %v1006
    %v1011 = vmul.f32 1.0, %v1010
    %v1012 = vrcp.pop %v1007
    %v1013 = vmul.f32 1.0, %v1012
    %v1014 = vtanh.pop %v995
    %v1015 = vmul.f32 %v1011, 0.0
    %v1016 = vmul.f32 %v1009, %v1014
    %v1017 = vadd.f32 %v1015, %v1016
    %v1018 = vtanh.pop %v1017
    %v1019 = vmul.f32 %v1013, %v1018
    %v1020 = vpack.c.bf16 %v1019, %v1019
    %1021 = vst [vmem:[#allocation2] sm:$0xf] %v1020
    %v1022 = vld [vmem:[%s704] sm:$0xff]
    %v1023 = vld [vmem:[%s704 + $0x8] sm:$0xff]
    %v1024 = vunpack.c.l.bf16 %v1022
    %v1025 = vunpack.c.h.bf16 %v1022
    %v1026 = vunpack.c.l.bf16 %v1023
    %v1027 = vunpack.c.h.bf16 %v1023
    %1028 = vmatprep.subr.bf16.mxu0 %v875
    %1029 = vmatpush1.bf16.msra.mxu0 %v874
    %1030 = vmatprep.subr.bf16.mxu0 %v871
    %1031 = vmatpush1.bf16.msra.mxu0 %v870
    %1032 = vmatprep.subr.bf16.mxu0 %v867
    %1033 = vmatpush1.bf16.msra.mxu0 %v866
    %1034 = vmatprep.subr.bf16.mxu0 %v863
    %1035 = vmatpush1.bf16.msra.mxu0 %v862
    %1036 = vmatprep.subr.bf16.mxu0 %v859
    %1037 = vmatpush1.bf16.msra.mxu0 %v858
    %1038 = vmatprep.subr.bf16.mxu0 %v855
    %1039 = vmatpush1.bf16.msra.mxu0 %v854
    %1040 = vmatprep.subr.bf16.mxu0 %v851
    %1041 = vmatpush1.bf16.msra.mxu0 %v850
    %1042 = vmatprep.subr.bf16.mxu0 %v847
    %1043 = vmatpush1.bf16.msra.mxu0 %v846
    %1044 = vmatprep.subr.bf16.mxu0 0
    %1045 = vmatpush2.bf16.msra.mxu0 0
    %1046 = vmatprep.subr.bf16.mxu0 0
    %1047 = vmatpush2.bf16.msra.mxu0 0
    %1048 = vmatprep.subr.bf16.mxu0 0
    %1049 = vmatpush2.bf16.msra.mxu0 0
    %1050 = vmatprep.subr.bf16.mxu0 0
    %1051 = vmatpush2.bf16.msra.mxu0 0
    %1052 = vmatprep.subr.bf16.mxu0 0
    %1053 = vmatpush2.bf16.msra.mxu0 0
    %1054 = vmatprep.subr.bf16.mxu0 0
    %1055 = vmatpush2.bf16.msra.mxu0 0
    %1056 = vmatprep.subr.bf16.mxu0 0
    %1057 = vmatpush2.bf16.msra.mxu0 0
    %1058 = vmatprep.subr.bf16.mxu0 0
    %1059 = vmatpush2.bf16.msra.mxu0 0
    %1060 = vmatprep.mubr.bf16.mxu0 0
    %1061 = vmatmul.mubr.bf16.gmra.mxu0 %v1020
    %v1062 = vpop.f32.mrf.mxu0
    %v1063 = vadd.f32 0.0, %v1062
    %v1064 = vpop.f32.mrf.mxu0
    %v1065 = vadd.f32 0.0, %v1064
    %v1066 = vpop.f32.mrf.mxu0
    %v1067 = vpop.f32.mrf.mxu0
    %1068 = vdwg.mxu0
    %1069 = vmatprep.subr.bf16.mxu0 %v877
    %1070 = vmatpush1.bf16.msra.mxu0 %v876
    %1071 = vmatprep.subr.bf16.mxu0 %v873
    %1072 = vmatpush1.bf16.msra.mxu0 %v872
    %1073 = vmatprep.subr.bf16.mxu0 %v869
    %1074 = vmatpush1.bf16.msra.mxu0 %v868
    %1075 = vmatprep.subr.bf16.mxu0 %v865
    %1076 = vmatpush1.bf16.msra.mxu0 %v864
    %1077 = vmatprep.subr.bf16.mxu0 %v861
    %1078 = vmatpush1.bf16.msra.mxu0 %v860
    %1079 = vmatprep.subr.bf16.mxu0 %v857
    %1080 = vmatpush1.bf16.msra.mxu0 %v856
    %1081 = vmatprep.subr.bf16.mxu0 %v853
    %1082 = vmatpush1.bf16.msra.mxu0 %v852
    %1083 = vmatprep.subr.bf16.mxu0 %v849
    %1084 = vmatpush1.bf16.msra.mxu0 %v848
    %1085 = vmatprep.subr.bf16.mxu0 0
    %1086 = vmatpush2.bf16.msra.mxu0 0
    %1087 = vmatprep.subr.bf16.mxu0 0
    %1088 = vmatpush2.bf16.msra.mxu0 0
    %1089 = vmatprep.subr.bf16.mxu0 0
    %1090 = vmatpush2.bf16.msra.mxu0 0
    %1091 = vmatprep.subr.bf16.mxu0 0
    %1092 = vmatpush2.bf16.msra.mxu0 0
    %1093 = vmatprep.subr.bf16.mxu0 0
    %1094 = vmatpush2.bf16.msra.mxu0 0
    %1095 = vmatprep.subr.bf16.mxu0 0
    %1096 = vmatpush2.bf16.msra.mxu0 0
    %1097 = vmatprep.subr.bf16.mxu0 0
    %1098 = vmatpush2.bf16.msra.mxu0 0
    %1099 = vmatprep.subr.bf16.mxu0 0
    %1100 = vmatpush2.bf16.msra.mxu0 0
    %1101 = vmatprep.mubr.bf16.mxu0 0
    %1102 = vmatmul.mubr.bf16.gmra.mxu0 %v1020
    %v1103 = vpop.f32.mrf.mxu0
    %v1104 = vadd.f32 0.0, %v1103
    %v1105 = vpop.f32.mrf.mxu0
    %v1106 = vadd.f32 0.0, %v1105
    %v1107 = vpop.f32.mrf.mxu0
    %v1108 = vpop.f32.mrf.mxu0
    %1109 = vdwg.mxu0
    %v1110 = vadd.f32 %v1024, %v1063
    %v1111 = vadd.f32 %v1025, %v1065
    %v1112 = vadd.f32 %v1026, %v1104
    %v1113 = vadd.f32 %v1027, %v1106
    %v1114 = vxor.u32 %v1110, 2147483648
    %v1115 = vxor.u32 %v1111, 2147483648
    %v1116 = vxor.u32 %v1112, 2147483648
    %v1117 = vmul.f32 %v1114, 1.442695
    %v1118 = vpow.pop %v1117
    %v1119 = vmul.f32 %v1115, 1.442695
    %v1120 = vpow.pop %v1119
    %v1121 = vmul.f32 %v1116, 1.442695
    %v1122 = vpow.pop %v1121
    %v1123 = vadd.f32 %v1118, 1.0
    %v1124 = vadd.f32 %v1120, 1.0
    %v1125 = vadd.f32 %v1122, 1.0
    %v1126 = vrcp.pop %v1123
    %v1127 = vmul.f32 1.0, %v1126
    %v1128 = vrcp.pop %v1124
    %v1129 = vmul.f32 1.0, %v1128
    %v1130 = vrcp.pop %v1125
    %v1131 = vmul.f32 1.0, %v1130
    %v1132 = vtanh.pop %v1113
    %v1133 = vmul.f32 %v1129, %v1017
    %v1134 = vmul.f32 %v1127, %v1132
    %v1135 = vadd.f32 %v1133, %v1134
    %v1136 = vtanh.pop %v1135
    %v1137 = vmul.f32 %v1131, %v1136
    %v1138 = vpack.c.bf16 %v1137, %v1137
    %s1139 = scalar_lea.vmem [#allocation2], 4
    %1140 = vst [vmem:[%s1139] sm:$0xf] %v1138
    %s1141 = scalar_lea.vmem [#allocation3], 32
    %v1142 = vld [vmem:[%s1141] sm:$0xff]
    %v1143 = vld [vmem:[%s1141 + $0x8] sm:$0xff]
    %v1144 = vunpack.c.l.bf16 %v1142
    %v1145 = vunpack.c.h.bf16 %v1142
    %v1146 = vunpack.c.l.bf16 %v1143
    %v1147 = vunpack.c.h.bf16 %v1143
    %1148 = vmatprep.subr.bf16.mxu0 %v875
    %1149 = vmatpush1.bf16.msra.mxu0 %v874
    %1150 = vmatprep.subr.bf16.mxu0 %v871
    %1151 = vmatpush1.bf16.msra.mxu0 %v870
    %1152 = vmatprep.subr.bf16.mxu0 %v867
    %1153 = vmatpush1.bf16.msra.mxu0 %v866
    %1154 = vmatprep.subr.bf16.mxu0 %v863
    %1155 = vmatpush1.bf16.msra.mxu0 %v862
    %1156 = vmatprep.subr.bf16.mxu0 %v859
    %1157 = vmatpush1.bf16.msra.mxu0 %v858
    %1158 = vmatprep.subr.bf16.mxu0 %v855
    %1159 = vmatpush1.bf16.msra.mxu0 %v854
    %1160 = vmatprep.subr.bf16.mxu0 %v851
    %1161 = vmatpush1.bf16.msra.mxu0 %v850
    %1162 = vmatprep.subr.bf16.mxu0 %v847
    %1163 = vmatpush1.bf16.msra.mxu0 %v846
    %1164 = vmatprep.subr.bf16.mxu0 0
    %1165 = vmatpush2.bf16.msra.mxu0 0
    %1166 = vmatprep.subr.bf16.mxu0 0
    %1167 = vmatpush2.bf16.msra.mxu0 0
    %1168 = vmatprep.subr.bf16.mxu0 0
    %1169 = vmatpush2.bf16.msra.mxu0 0
    %1170 = vmatprep.subr.bf16.mxu0 0
    %1171 = vmatpush2.bf16.msra.mxu0 0
    %1172 = vmatprep.subr.bf16.mxu0 0
    %1173 = vmatpush2.bf16.msra.mxu0 0
    %1174 = vmatprep.subr.bf16.mxu0 0
    %1175 = vmatpush2.bf16.msra.mxu0 0
    %1176 = vmatprep.subr.bf16.mxu0 0
    %1177 = vmatpush2.bf16.msra.mxu0 0
    %1178 = vmatprep.subr.bf16.mxu0 0
    %1179 = vmatpush2.bf16.msra.mxu0 0
    %1180 = vmatprep.mubr.bf16.mxu0 0
    %1181 = vmatmul.mubr.bf16.gmra.mxu0 %v1138
    %v1182 = vpop.f32.mrf.mxu0
    %v1183 = vadd.f32 0.0, %v1182
    %v1184 = vpop.f32.mrf.mxu0
    %v1185 = vadd.f32 0.0, %v1184
    %v1186 = vpop.f32.mrf.mxu0
    %v1187 = vpop.f32.mrf.mxu0
    %1188 = vdwg.mxu0
    %1189 = vmatprep.subr.bf16.mxu0 %v877
    %1190 = vmatpush1.bf16.msra.mxu0 %v876
    %1191 = vmatprep.subr.bf16.mxu0 %v873
    %1192 = vmatpush1.bf16.msra.mxu0 %v872
    %1193 = vmatprep.subr.bf16.mxu0 %v869
    %1194 = vmatpush1.bf16.msra.mxu0 %v868
    %1195 = vmatprep.subr.bf16.mxu0 %v865
    %1196 = vmatpush1.bf16.msra.mxu0 %v864
    %1197 = vmatprep.subr.bf16.mxu0 %v861
    %1198 = vmatpush1.bf16.msra.mxu0 %v860
    %1199 = vmatprep.subr.bf16.mxu0 %v857
    %1200 = vmatpush1.bf16.msra.mxu0 %v856
    %1201 = vmatprep.subr.bf16.mxu0 %v853
    %1202 = vmatpush1.bf16.msra.mxu0 %v852
    %1203 = vmatprep.subr.bf16.mxu0 %v849
    %1204 = vmatpush1.bf16.msra.mxu0 %v848
    %1205 = vmatprep.subr.bf16.mxu0 0
    %1206 = vmatpush2.bf16.msra.mxu0 0
    %1207 = vmatprep.subr.bf16.mxu0 0
    %1208 = vmatpush2.bf16.msra.mxu0 0
    %1209 = vmatprep.subr.bf16.mxu0 0
    %1210 = vmatpush2.bf16.msra.mxu0 0
    %1211 = vmatprep.subr.bf16.mxu0 0
    %1212 = vmatpush2.bf16.msra.mxu0 0
    %1213 = vmatprep.subr.bf16.mxu0 0
    %1214 = vmatpush2.bf16.msra.mxu0 0
    %1215 = vmatprep.subr.bf16.mxu0 0
    %1216 = vmatpush2.bf16.msra.mxu0 0
    %1217 = vmatprep.subr.bf16.mxu0 0
    %1218 = vmatpush2.bf16.msra.mxu0 0
    %1219 = vmatprep.subr.bf16.mxu0 0
    %1220 = vmatpush2.bf16.msra.mxu0 0
    %1221 = vmatprep.mubr.bf16.mxu0 0
    %1222 = vmatmul.mubr.bf16.gmra.mxu0 %v1138
    %v1223 = vpop.f32.mrf.mxu0
    %v1224 = vadd.f32 0.0, %v1223
    %v1225 = vpop.f32.mrf.mxu0
    %v1226 = vadd.f32 0.0, %v1225
    %v1227 = vpop.f32.mrf.mxu0
    %v1228 = vpop.f32.mrf.mxu0
    %1229 = vdwg.mxu0
    %v1230 = vadd.f32 %v1144, %v1183
    %v1231 = vadd.f32 %v1145, %v1185
    %v1232 = vadd.f32 %v1146, %v1224
    %v1233 = vadd.f32 %v1147, %v1226
    %v1234 = vxor.u32 %v1230, 2147483648
    %v1235 = vxor.u32 %v1231, 2147483648
    %v1236 = vxor.u32 %v1232, 2147483648
    %v1237 = vmul.f32 %v1234, 1.442695
    %v1238 = vpow.pop %v1237
    %v1239 = vmul.f32 %v1235, 1.442695
    %v1240 = vpow.pop %v1239
    %v1241 = vmul.f32 %v1236, 1.442695
    %v1242 = vpow.pop %v1241
    %v1243 = vadd.f32 %v1238, 1.0
    %v1244 = vadd.f32 %v1240, 1.0
    %v1245 = vadd.f32 %v1242, 1.0
    %v1246 = vrcp.pop %v1243
    %v1247 = vmul.f32 1.0, %v1246
    %v1248 = vrcp.pop %v1244
    %v1249 = vmul.f32 1.0, %v1248
    %v1250 = vrcp.pop %v1245
    %v1251 = vmul.f32 1.0, %v1250
    %v1252 = vtanh.pop %v1233
    %v1253 = vmul.f32 %v1249, %v1135
    %v1254 = vmul.f32 %v1247, %v1252
    %v1255 = vadd.f32 %v1253, %v1254
    %v1256 = vtanh.pop %v1255
    %v1257 = vmul.f32 %v1251, %v1256
    %v1258 = vpack.c.bf16 %v1257, %v1257
    %s1259 = scalar_lea.vmem [#allocation2], 8
    %1260 = vst [vmem:[%s1259] sm:$0xf] %v1258
    %s1261 = scalar_lea.vmem [#allocation3], 48
    %v1262 = vld [vmem:[%s1261] sm:$0xff]
    %v1263 = vld [vmem:[%s1261 + $0x8] sm:$0xff]
    %v1264 = vunpack.c.l.bf16 %v1262
    %v1265 = vunpack.c.h.bf16 %v1262
    %v1266 = vunpack.c.l.bf16 %v1263
    %v1267 = vunpack.c.h.bf16 %v1263
    %1268 = vmatprep.subr.bf16.mxu0 %v875
    %1269 = vmatpush1.bf16.msra.mxu0 %v874
    %1270 = vmatprep.subr.bf16.mxu0 %v871
    %1271 = vmatpush1.bf16.msra.mxu0 %v870
    %1272 = vmatprep.subr.bf16.mxu0 %v867
    %1273 = vmatpush1.bf16.msra.mxu0 %v866
    %1274 = vmatprep.subr.bf16.mxu0 %v863
    %1275 = vmatpush1.bf16.msra.mxu0 %v862
    %1276 = vmatprep.subr.bf16.mxu0 %v859
    %1277 = vmatpush1.bf16.msra.mxu0 %v858
    %1278 = vmatprep.subr.bf16.mxu0 %v855
    %1279 = vmatpush1.bf16.msra.mxu0 %v854
    %1280 = vmatprep.subr.bf16.mxu0 %v851
    %1281 = vmatpush1.bf16.msra.mxu0 %v850
    %1282 = vmatprep.subr.bf16.mxu0 %v847
    %1283 = vmatpush1.bf16.msra.mxu0 %v846
    %1284 = vmatprep.subr.bf16.mxu0 0
    %1285 = vmatpush2.bf16.msra.mxu0 0
    %1286 = vmatprep.subr.bf16.mxu0 0
    %1287 = vmatpush2.bf16.msra.mxu0 0
    %1288 = vmatprep.subr.bf16.mxu0 0
    %1289 = vmatpush2.bf16.msra.mxu0 0
    %1290 = vmatprep.subr.bf16.mxu0 0
    %1291 = vmatpush2.bf16.msra.mxu0 0
    %1292 = vmatprep.subr.bf16.mxu0 0
    %1293 = vmatpush2.bf16.msra.mxu0 0
    %1294 = vmatprep.subr.bf16.mxu0 0
    %1295 = vmatpush2.bf16.msra.mxu0 0
    %1296 = vmatprep.subr.bf16.mxu0 0
    %1297 = vmatpush2.bf16.msra.mxu0 0
    %1298 = vmatprep.subr.bf16.mxu0 0
    %1299 = vmatpush2.bf16.msra.mxu0 0
    %1300 = vmatprep.mubr.bf16.mxu0 0
    %1301 = vmatmul.mubr.bf16.gmra.mxu0 %v1258
    %v1302 = vpop.f32.mrf.mxu0
    %v1303 = vadd.f32 0.0, %v1302
    %v1304 = vpop.f32.mrf.mxu0
    %v1305 = vadd.f32 0.0, %v1304
    %v1306 = vpop.f32.mrf.mxu0
    %v1307 = vpop.f32.mrf.mxu0
    %1308 = vdwg.mxu0
    %1309 = vmatprep.subr.bf16.mxu0 %v877
    %1310 = vmatpush1.bf16.msra.mxu0 %v876
    %1311 = vmatprep.subr.bf16.mxu0 %v873
    %1312 = vmatpush1.bf16.msra.mxu0 %v872
    %1313 = vmatprep.subr.bf16.mxu0 %v869
    %1314 = vmatpush1.bf16.msra.mxu0 %v868
    %1315 = vmatprep.subr.bf16.mxu0 %v865
    %1316 = vmatpush1.bf16.msra.mxu0 %v864
    %1317 = vmatprep.subr.bf16.mxu0 %v861
    %1318 = vmatpush1.bf16.msra.mxu0 %v860
    %1319 = vmatprep.subr.bf16.mxu0 %v857
    %1320 = vmatpush1.bf16.msra.mxu0 %v856
    %1321 = vmatprep.subr.bf16.mxu0 %v853
    %1322 = vmatpush1.bf16.msra.mxu0 %v852
    %1323 = vmatprep.subr.bf16.mxu0 %v849
    %1324 = vmatpush1.bf16.msra.mxu0 %v848
    %1325 = vmatprep.subr.bf16.mxu0 0
    %1326 = vmatpush2.bf16.msra.mxu0 0
    %1327 = vmatprep.subr.bf16.mxu0 0
    %1328 = vmatpush2.bf16.msra.mxu0 0
    %1329 = vmatprep.subr.bf16.mxu0 0
    %1330 = vmatpush2.bf16.msra.mxu0 0
    %1331 = vmatprep.subr.bf16.mxu0 0
    %1332 = vmatpush2.bf16.msra.mxu0 0
    %1333 = vmatprep.subr.bf16.mxu0 0
    %1334 = vmatpush2.bf16.msra.mxu0 0
    %1335 = vmatprep.subr.bf16.mxu0 0
    %1336 = vmatpush2.bf16.msra.mxu0 0
    %1337 = vmatprep.subr.bf16.mxu0 0
    %1338 = vmatpush2.bf16.msra.mxu0 0
    %1339 = vmatprep.subr.bf16.mxu0 0
    %1340 = vmatpush2.bf16.msra.mxu0 0
    %1341 = vmatprep.mubr.bf16.mxu0 0
    %1342 = vmatmul.mubr.bf16.gmra.mxu0 %v1258
    %v1343 = vpop.f32.mrf.mxu0
    %v1344 = vadd.f32 0.0, %v1343
    %v1345 = vpop.f32.mrf.mxu0
    %v1346 = vadd.f32 0.0, %v1345
    %v1347 = vpop.f32.mrf.mxu0
    %v1348 = vpop.f32.mrf.mxu0
    %1349 = vdwg.mxu0
    %v1350 = vadd.f32 %v1264, %v1303
    %v1351 = vadd.f32 %v1265, %v1305
    %v1352 = vadd.f32 %v1266, %v1344
    %v1353 = vadd.f32 %v1267, %v1346
    %v1354 = vxor.u32 %v1350, 2147483648
    %v1355 = vxor.u32 %v1351, 2147483648
    %v1356 = vxor.u32 %v1352, 2147483648
    %v1357 = vmul.f32 %v1354, 1.442695
    %v1358 = vpow.pop %v1357
    %v1359 = vmul.f32 %v1355, 1.442695
    %v1360 = vpow.pop %v1359
    %v1361 = vmul.f32 %v1356, 1.442695
    %v1362 = vpow.pop %v1361
    %v1363 = vadd.f32 %v1358, 1.0
    %v1364 = vadd.f32 %v1360, 1.0
    %v1365 = vadd.f32 %v1362, 1.0
    %v1366 = vrcp.pop %v1363
    %v1367 = vmul.f32 1.0, %v1366
    %v1368 = vrcp.pop %v1364
    %v1369 = vmul.f32 1.0, %v1368
    %v1370 = vrcp.pop %v1365
    %v1371 = vmul.f32 1.0, %v1370
    %v1372 = vtanh.pop %v1353
    %v1373 = vmul.f32 %v1369, %v1255
    %v1374 = vmul.f32 %v1367, %v1372
    %v1375 = vadd.f32 %v1373, %v1374
    %v1376 = vtanh.pop %v1375
    %v1377 = vmul.f32 %v1371, %v1376
    %v1378 = vpack.c.bf16 %v1377, %v1377
    %s1379 = scalar_lea.vmem [#allocation2], 12
    %1380 = vst [vmem:[%s1379] sm:$0xf] %v1378
    %s1381 = scalar_lea.vmem [#allocation3], 64
    %v1382 = vld [vmem:[%s1381] sm:$0xff]
    %v1383 = vld [vmem:[%s1381 + $0x8] sm:$0xff]
    %v1384 = vunpack.c.l.bf16 %v1382
    %v1385 = vunpack.c.h.bf16 %v1382
    %v1386 = vunpack.c.l.bf16 %v1383
    %v1387 = vunpack.c.h.bf16 %v1383
    %1388 = vmatprep.subr.bf16.mxu0 %v875
    %1389 = vmatpush1.bf16.msra.mxu0 %v874
    %1390 = vmatprep.subr.bf16.mxu0 %v871
    %1391 = vmatpush1.bf16.msra.mxu0 %v870
    %1392 = vmatprep.subr.bf16.mxu0 %v867
    %1393 = vmatpush1.bf16.msra.mxu0 %v866
    %1394 = vmatprep.subr.bf16.mxu0 %v863
    %1395 = vmatpush1.bf16.msra.mxu0 %v862
    %1396 = vmatprep.subr.bf16.mxu0 %v859
    %1397 = vmatpush1.bf16.msra.mxu0 %v858
    %1398 = vmatprep.subr.bf16.mxu0 %v855
    %1399 = vmatpush1.bf16.msra.mxu0 %v854
    %1400 = vmatprep.subr.bf16.mxu0 %v851
    %1401 = vmatpush1.bf16.msra.mxu0 %v850
    %1402 = vmatprep.subr.bf16.mxu0 %v847
    %1403 = vmatpush1.bf16.msra.mxu0 %v846
    %1404 = vmatprep.subr.bf16.mxu0 0
    %1405 = vmatpush2.bf16.msra.mxu0 0
    %1406 = vmatprep.subr.bf16.mxu0 0
    %1407 = vmatpush2.bf16.msra.mxu0 0
    %1408 = vmatprep.subr.bf16.mxu0 0
    %1409 = vmatpush2.bf16.msra.mxu0 0
    %1410 = vmatprep.subr.bf16.mxu0 0
    %1411 = vmatpush2.bf16.msra.mxu0 0
    %1412 = vmatprep.subr.bf16.mxu0 0
    %1413 = vmatpush2.bf16.msra.mxu0 0
    %1414 = vmatprep.subr.bf16.mxu0 0
    %1415 = vmatpush2.bf16.msra.mxu0 0
    %1416 = vmatprep.subr.bf16.mxu0 0
    %1417 = vmatpush2.bf16.msra.mxu0 0
    %1418 = vmatprep.subr.bf16.mxu0 0
    %1419 = vmatpush2.bf16.msra.mxu0 0
    %1420 = vmatprep.mubr.bf16.mxu0 0
    %1421 = vmatmul.mubr.bf16.gmra.mxu0 %v1378
    %v1422 = vpop.f32.mrf.mxu0
    %v1423 = vadd.f32 0.0, %v1422
    %v1424 = vpop.f32.mrf.mxu0
    %v1425 = vadd.f32 0.0, %v1424
    %v1426 = vpop.f32.mrf.mxu0
    %v1427 = vpop.f32.mrf.mxu0
    %1428 = vdwg.mxu0
    %1429 = vmatprep.subr.bf16.mxu0 %v877
    %1430 = vmatpush1.bf16.msra.mxu0 %v876
    %1431 = vmatprep.subr.bf16.mxu0 %v873
    %1432 = vmatpush1.bf16.msra.mxu0 %v872
    %1433 = vmatprep.subr.bf16.mxu0 %v869
    %1434 = vmatpush1.bf16.msra.mxu0 %v868
    %1435 = vmatprep.subr.bf16.mxu0 %v865
    %1436 = vmatpush1.bf16.msra.mxu0 %v864
    %1437 = vmatprep.subr.bf16.mxu0 %v861
    %1438 = vmatpush1.bf16.msra.mxu0 %v860
    %1439 = vmatprep.subr.bf16.mxu0 %v857
    %1440 = vmatpush1.bf16.msra.mxu0 %v856
    %1441 = vmatprep.subr.bf16.mxu0 %v853
    %1442 = vmatpush1.bf16.msra.mxu0 %v852
    %1443 = vmatprep.subr.bf16.mxu0 %v849
    %1444 = vmatpush1.bf16.msra.mxu0 %v848
    %1445 = vmatprep.subr.bf16.mxu0 0
    %1446 = vmatpush2.bf16.msra.mxu0 0
    %1447 = vmatprep.subr.bf16.mxu0 0
    %1448 = vmatpush2.bf16.msra.mxu0 0
    %1449 = vmatprep.subr.bf16.mxu0 0
    %1450 = vmatpush2.bf16.msra.mxu0 0
    %1451 = vmatprep.subr.bf16.mxu0 0
    %1452 = vmatpush2.bf16.msra.mxu0 0
    %1453 = vmatprep.subr.bf16.mxu0 0
    %1454 = vmatpush2.bf16.msra.mxu0 0
    %1455 = vmatprep.subr.bf16.mxu0 0
    %1456 = vmatpush2.bf16.msra.mxu0 0
    %1457 = vmatprep.subr.bf16.mxu0 0
    %1458 = vmatpush2.bf16.msra.mxu0 0
    %1459 = vmatprep.subr.bf16.mxu0 0
    %1460 = vmatpush2.bf16.msra.mxu0 0
    %1461 = vmatprep.mubr.bf16.mxu0 0
    %1462 = vmatmul.mubr.bf16.gmra.mxu0 %v1378
    %v1463 = vpop.f32.mrf.mxu0
    %v1464 = vadd.f32 0.0, %v1463
    %v1465 = vpop.f32.mrf.mxu0
    %v1466 = vadd.f32 0.0, %v1465
    %v1467 = vpop.f32.mrf.mxu0
    %v1468 = vpop.f32.mrf.mxu0
    %1469 = vdwg.mxu0
    %v1470 = vadd.f32 %v1384, %v1423
    %v1471 = vadd.f32 %v1385, %v1425
    %v1472 = vadd.f32 %v1386, %v1464
    %v1473 = vadd.f32 %v1387, %v1466
    %v1474 = vxor.u32 %v1470, 2147483648
    %v1475 = vxor.u32 %v1471, 2147483648
    %v1476 = vxor.u32 %v1472, 2147483648
    %v1477 = vmul.f32 %v1474, 1.442695
    %v1478 = vpow.pop %v1477
    %v1479 = vmul.f32 %v1475, 1.442695
    %v1480 = vpow.pop %v1479
    %v1481 = vmul.f32 %v1476, 1.442695
    %v1482 = vpow.pop %v1481
    %v1483 = vadd.f32 %v1478, 1.0
    %v1484 = vadd.f32 %v1480, 1.0
    %v1485 = vadd.f32 %v1482, 1.0
    %v1486 = vrcp.pop %v1483
    %v1487 = vmul.f32 1.0, %v1486
    %v1488 = vrcp.pop %v1484
    %v1489 = vmul.f32 1.0, %v1488
    %v1490 = vrcp.pop %v1485
    %v1491 = vmul.f32 1.0, %v1490
    %v1492 = vtanh.pop %v1473
    %v1493 = vmul.f32 %v1489, %v1375
    %v1494 = vmul.f32 %v1487, %v1492
    %v1495 = vadd.f32 %v1493, %v1494
    %v1496 = vtanh.pop %v1495
    %v1497 = vmul.f32 %v1491, %v1496
    %v1498 = vpack.c.bf16 %v1497, %v1497
    %s1499 = scalar_lea.vmem [#allocation2], 16
    %1500 = vst [vmem:[%s1499] sm:$0xf] %v1498
    %s1501 = scalar_lea.vmem [#allocation3], 80
    %v1502 = vld [vmem:[%s1501] sm:$0xff]
    %v1503 = vld [vmem:[%s1501 + $0x8] sm:$0xff]
    %v1504 = vunpack.c.l.bf16 %v1502
    %v1505 = vunpack.c.h.bf16 %v1502
    %v1506 = vunpack.c.l.bf16 %v1503
    %v1507 = vunpack.c.h.bf16 %v1503
    %1508 = vmatprep.subr.bf16.mxu0 %v875
    %1509 = vmatpush1.bf16.msra.mxu0 %v874
    %1510 = vmatprep.subr.bf16.mxu0 %v871
    %1511 = vmatpush1.bf16.msra.mxu0 %v870
    %1512 = vmatprep.subr.bf16.mxu0 %v867
    %1513 = vmatpush1.bf16.msra.mxu0 %v866
    %1514 = vmatprep.subr.bf16.mxu0 %v863
    %1515 = vmatpush1.bf16.msra.mxu0 %v862
    %1516 = vmatprep.subr.bf16.mxu0 %v859
    %1517 = vmatpush1.bf16.msra.mxu0 %v858
    %1518 = vmatprep.subr.bf16.mxu0 %v855
    %1519 = vmatpush1.bf16.msra.mxu0 %v854
    %1520 = vmatprep.subr.bf16.mxu0 %v851
    %1521 = vmatpush1.bf16.msra.mxu0 %v850
    %1522 = vmatprep.subr.bf16.mxu0 %v847
    %1523 = vmatpush1.bf16.msra.mxu0 %v846
    %1524 = vmatprep.subr.bf16.mxu0 0
    %1525 = vmatpush2.bf16.msra.mxu0 0
    %1526 = vmatprep.subr.bf16.mxu0 0
    %1527 = vmatpush2.bf16.msra.mxu0 0
    %1528 = vmatprep.subr.bf16.mxu0 0
    %1529 = vmatpush2.bf16.msra.mxu0 0
    %1530 = vmatprep.subr.bf16.mxu0 0
    %1531 = vmatpush2.bf16.msra.mxu0 0
    %1532 = vmatprep.subr.bf16.mxu0 0
    %1533 = vmatpush2.bf16.msra.mxu0 0
    %1534 = vmatprep.subr.bf16.mxu0 0
    %1535 = vmatpush2.bf16.msra.mxu0 0
    %1536 = vmatprep.subr.bf16.mxu0 0
    %1537 = vmatpush2.bf16.msra.mxu0 0
    %1538 = vmatprep.subr.bf16.mxu0 0
    %1539 = vmatpush2.bf16.msra.mxu0 0
    %1540 = vmatprep.mubr.bf16.mxu0 0
    %1541 = vmatmul.mubr.bf16.gmra.mxu0 %v1498
    %v1542 = vpop.f32.mrf.mxu0
    %v1543 = vadd.f32 0.0, %v1542
    %v1544 = vpop.f32.mrf.mxu0
    %v1545 = vadd.f32 0.0, %v1544
    %v1546 = vpop.f32.mrf.mxu0
    %v1547 = vpop.f32.mrf.mxu0
    %1548 = vdwg.mxu0
    %1549 = vmatprep.subr.bf16.mxu0 %v877
    %1550 = vmatpush1.bf16.msra.mxu0 %v876
    %1551 = vmatprep.subr.bf16.mxu0 %v873
    %1552 = vmatpush1.bf16.msra.mxu0 %v872
    %1553 = vmatprep.subr.bf16.mxu0 %v869
    %1554 = vmatpush1.bf16.msra.mxu0 %v868
    %1555 = vmatprep.subr.bf16.mxu0 %v865
    %1556 = vmatpush1.bf16.msra.mxu0 %v864
    %1557 = vmatprep.subr.bf16.mxu0 %v861
    %1558 = vmatpush1.bf16.msra.mxu0 %v860
    %1559 = vmatprep.subr.bf16.mxu0 %v857
    %1560 = vmatpush1.bf16.msra.mxu0 %v856
    %1561 = vmatprep.subr.bf16.mxu0 %v853
    %1562 = vmatpush1.bf16.msra.mxu0 %v852
    %1563 = vmatprep.subr.bf16.mxu0 %v849
    %1564 = vmatpush1.bf16.msra.mxu0 %v848
    %1565 = vmatprep.subr.bf16.mxu0 0
    %1566 = vmatpush2.bf16.msra.mxu0 0
    %1567 = vmatprep.subr.bf16.mxu0 0
    %1568 = vmatpush2.bf16.msra.mxu0 0
    %1569 = vmatprep.subr.bf16.mxu0 0
    %1570 = vmatpush2.bf16.msra.mxu0 0
    %1571 = vmatprep.subr.bf16.mxu0 0
    %1572 = vmatpush2.bf16.msra.mxu0 0
    %1573 = vmatprep.subr.bf16.mxu0 0
    %1574 = vmatpush2.bf16.msra.mxu0 0
    %1575 = vmatprep.subr.bf16.mxu0 0
    %1576 = vmatpush2.bf16.msra.mxu0 0
    %1577 = vmatprep.subr.bf16.mxu0 0
    %1578 = vmatpush2.bf16.msra.mxu0 0
    %1579 = vmatprep.subr.bf16.mxu0 0
    %1580 = vmatpush2.bf16.msra.mxu0 0
    %1581 = vmatprep.mubr.bf16.mxu0 0
    %1582 = vmatmul.mubr.bf16.gmra.mxu0 %v1498
    %v1583 = vpop.f32.mrf.mxu0
    %v1584 = vadd.f32 0.0, %v1583
    %v1585 = vpop.f32.mrf.mxu0
    %v1586 = vadd.f32 0.0, %v1585
    %v1587 = vpop.f32.mrf.mxu0
    %v1588 = vpop.f32.mrf.mxu0
    %1589 = vdwg.mxu0
    %v1590 = vadd.f32 %v1504, %v1543
    %v1591 = vadd.f32 %v1505, %v1545
    %v1592 = vadd.f32 %v1506, %v1584
    %v1593 = vadd.f32 %v1507, %v1586
    %v1594 = vxor.u32 %v1590, 2147483648
    %v1595 = vxor.u32 %v1591, 2147483648
    %v1596 = vxor.u32 %v1592, 2147483648
    %v1597 = vmul.f32 %v1594, 1.442695
    %v1598 = vpow.pop %v1597
    %v1599 = vmul.f32 %v1595, 1.442695
    %v1600 = vpow.pop %v1599
    %v1601 = vmul.f32 %v1596, 1.442695
    %v1602 = vpow.pop %v1601
    %v1603 = vadd.f32 %v1598, 1.0
    %v1604 = vadd.f32 %v1600, 1.0
    %v1605 = vadd.f32 %v1602, 1.0
    %v1606 = vrcp.pop %v1603
    %v1607 = vmul.f32 1.0, %v1606
    %v1608 = vrcp.pop %v1604
    %v1609 = vmul.f32 1.0, %v1608
    %v1610 = vrcp.pop %v1605
    %v1611 = vmul.f32 1.0, %v1610
    %v1612 = vtanh.pop %v1593
    %v1613 = vmul.f32 %v1609, %v1495
    %v1614 = vmul.f32 %v1607, %v1612
    %v1615 = vadd.f32 %v1613, %v1614
    %v1616 = vtanh.pop %v1615
    %v1617 = vmul.f32 %v1611, %v1616
    %v1618 = vpack.c.bf16 %v1617, %v1617
    %s1619 = scalar_lea.vmem [#allocation2], 20
    %1620 = vst [vmem:[%s1619] sm:$0xf] %v1618
    %s1621 = scalar_lea.vmem [#allocation3], 96
    %v1622 = vld [vmem:[%s1621] sm:$0xff]
    %v1623 = vld [vmem:[%s1621 + $0x8] sm:$0xff]
    %v1624 = vunpack.c.l.bf16 %v1622
    %v1625 = vunpack.c.h.bf16 %v1622
    %v1626 = vunpack.c.l.bf16 %v1623
    %v1627 = vunpack.c.h.bf16 %v1623
    %1628 = vmatprep.subr.bf16.mxu0 %v875
    %1629 = vmatpush1.bf16.msra.mxu0 %v874
    %1630 = vmatprep.subr.bf16.mxu0 %v871
    %1631 = vmatpush1.bf16.msra.mxu0 %v870
    %1632 = vmatprep.subr.bf16.mxu0 %v867
    %1633 = vmatpush1.bf16.msra.mxu0 %v866
    %1634 = vmatprep.subr.bf16.mxu0 %v863
    %1635 = vmatpush1.bf16.msra.mxu0 %v862
    %1636 = vmatprep.subr.bf16.mxu0 %v859
    %1637 = vmatpush1.bf16.msra.mxu0 %v858
    %1638 = vmatprep.subr.bf16.mxu0 %v855
    %1639 = vmatpush1.bf16.msra.mxu0 %v854
    %1640 = vmatprep.subr.bf16.mxu0 %v851
    %1641 = vmatpush1.bf16.msra.mxu0 %v850
    %1642 = vmatprep.subr.bf16.mxu0 %v847
    %1643 = vmatpush1.bf16.msra.mxu0 %v846
    %1644 = vmatprep.subr.bf16.mxu0 0
    %1645 = vmatpush2.bf16.msra.mxu0 0
    %1646 = vmatprep.subr.bf16.mxu0 0
    %1647 = vmatpush2.bf16.msra.mxu0 0
    %1648 = vmatprep.subr.bf16.mxu0 0
    %1649 = vmatpush2.bf16.msra.mxu0 0
    %1650 = vmatprep.subr.bf16.mxu0 0
    %1651 = vmatpush2.bf16.msra.mxu0 0
    %1652 = vmatprep.subr.bf16.mxu0 0
    %1653 = vmatpush2.bf16.msra.mxu0 0
    %1654 = vmatprep.subr.bf16.mxu0 0
    %1655 = vmatpush2.bf16.msra.mxu0 0
    %1656 = vmatprep.subr.bf16.mxu0 0
    %1657 = vmatpush2.bf16.msra.mxu0 0
    %1658 = vmatprep.subr.bf16.mxu0 0
    %1659 = vmatpush2.bf16.msra.mxu0 0
    %1660 = vmatprep.mubr.bf16.mxu0 0
    %1661 = vmatmul.mubr.bf16.gmra.mxu0 %v1618
    %v1662 = vpop.f32.mrf.mxu0
    %v1663 = vadd.f32 0.0, %v1662
    %v1664 = vpop.f32.mrf.mxu0
    %v1665 = vadd.f32 0.0, %v1664
    %v1666 = vpop.f32.mrf.mxu0
    %v1667 = vpop.f32.mrf.mxu0
    %1668 = vdwg.mxu0
    %1669 = vmatprep.subr.bf16.mxu0 %v877
    %1670 = vmatpush1.bf16.msra.mxu0 %v876
    %1671 = vmatprep.subr.bf16.mxu0 %v873
    %1672 = vmatpush1.bf16.msra.mxu0 %v872
    %1673 = vmatprep.subr.bf16.mxu0 %v869
    %1674 = vmatpush1.bf16.msra.mxu0 %v868
    %1675 = vmatprep.subr.bf16.mxu0 %v865
    %1676 = vmatpush1.bf16.msra.mxu0 %v864
    %1677 = vmatprep.subr.bf16.mxu0 %v861
    %1678 = vmatpush1.bf16.msra.mxu0 %v860
    %1679 = vmatprep.subr.bf16.mxu0 %v857
    %1680 = vmatpush1.bf16.msra.mxu0 %v856
    %1681 = vmatprep.subr.bf16.mxu0 %v853
    %1682 = vmatpush1.bf16.msra.mxu0 %v852
    %1683 = vmatprep.subr.bf16.mxu0 %v849
    %1684 = vmatpush1.bf16.msra.mxu0 %v848
    %1685 = vmatprep.subr.bf16.mxu0 0
    %1686 = vmatpush2.bf16.msra.mxu0 0
    %1687 = vmatprep.subr.bf16.mxu0 0
    %1688 = vmatpush2.bf16.msra.mxu0 0
    %1689 = vmatprep.subr.bf16.mxu0 0
    %1690 = vmatpush2.bf16.msra.mxu0 0
    %1691 = vmatprep.subr.bf16.mxu0 0
    %1692 = vmatpush2.bf16.msra.mxu0 0
    %1693 = vmatprep.subr.bf16.mxu0 0
    %1694 = vmatpush2.bf16.msra.mxu0 0
    %1695 = vmatprep.subr.bf16.mxu0 0
    %1696 = vmatpush2.bf16.msra.mxu0 0
    %1697 = vmatprep.subr.bf16.mxu0 0
    %1698 = vmatpush2.bf16.msra.mxu0 0
    %1699 = vmatprep.subr.bf16.mxu0 0
    %1700 = vmatpush2.bf16.msra.mxu0 0
    %1701 = vmatprep.mubr.bf16.mxu0 0
    %1702 = vmatmul.mubr.bf16.gmra.mxu0 %v1618
    %v1703 = vpop.f32.mrf.mxu0
    %v1704 = vadd.f32 0.0, %v1703
    %v1705 = vpop.f32.mrf.mxu0
    %v1706 = vadd.f32 0.0, %v1705
    %v1707 = vpop.f32.mrf.mxu0
    %v1708 = vpop.f32.mrf.mxu0
    %1709 = vdwg.mxu0
    %v1710 = vadd.f32 %v1624, %v1663
    %v1711 = vadd.f32 %v1625, %v1665
    %v1712 = vadd.f32 %v1626, %v1704
    %v1713 = vadd.f32 %v1627, %v1706
    %v1714 = vxor.u32 %v1710, 2147483648
    %v1715 = vxor.u32 %v1711, 2147483648
    %v1716 = vxor.u32 %v1712, 2147483648
    %v1717 = vmul.f32 %v1714, 1.442695
    %v1718 = vpow.pop %v1717
    %v1719 = vmul.f32 %v1715, 1.442695
    %v1720 = vpow.pop %v1719
    %v1721 = vmul.f32 %v1716, 1.442695
    %v1722 = vpow.pop %v1721
    %v1723 = vadd.f32 %v1718, 1.0
    %v1724 = vadd.f32 %v1720, 1.0
    %v1725 = vadd.f32 %v1722, 1.0
    %v1726 = vrcp.pop %v1723
    %v1727 = vmul.f32 1.0, %v1726
    %v1728 = vrcp.pop %v1724
    %v1729 = vmul.f32 1.0, %v1728
    %v1730 = vrcp.pop %v1725
    %v1731 = vmul.f32 1.0, %v1730
    %v1732 = vtanh.pop %v1713
    %v1733 = vmul.f32 %v1729, %v1615
    %v1734 = vmul.f32 %v1727, %v1732
    %v1735 = vadd.f32 %v1733, %v1734
    %v1736 = vtanh.pop %v1735
    %v1737 = vmul.f32 %v1731, %v1736
    %v1738 = vpack.c.bf16 %v1737, %v1737
    %s1739 = scalar_lea.vmem [#allocation2], 24
    %1740 = vst [vmem:[%s1739] sm:$0xf] %v1738
    %s1741 = scalar_lea.vmem [#allocation3], 112
    %v1742 = vld [vmem:[%s1741] sm:$0xff]
    %v1743 = vld [vmem:[%s1741 + $0x8] sm:$0xff]
    %v1744 = vunpack.c.l.bf16 %v1742
    %v1745 = vunpack.c.h.bf16 %v1742
    %v1746 = vunpack.c.l.bf16 %v1743
    %v1747 = vunpack.c.h.bf16 %v1743
    %1748 = vmatprep.subr.bf16.mxu0 %v875
    %1749 = vmatpush1.bf16.msra.mxu0 %v874
    %1750 = vmatprep.subr.bf16.mxu0 %v871
    %1751 = vmatpush1.bf16.msra.mxu0 %v870
    %1752 = vmatprep.subr.bf16.mxu0 %v867
    %1753 = vmatpush1.bf16.msra.mxu0 %v866
    %1754 = vmatprep.subr.bf16.mxu0 %v863
    %1755 = vmatpush1.bf16.msra.mxu0 %v862
    %1756 = vmatprep.subr.bf16.mxu0 %v859
    %1757 = vmatpush1.bf16.msra.mxu0 %v858
    %1758 = vmatprep.subr.bf16.mxu0 %v855
    %1759 = vmatpush1.bf16.msra.mxu0 %v854
    %1760 = vmatprep.subr.bf16.mxu0 %v851
    %1761 = vmatpush1.bf16.msra.mxu0 %v850
    %1762 = vmatprep.subr.bf16.mxu0 %v847
    %1763 = vmatpush1.bf16.msra.mxu0 %v846
    %1764 = vmatprep.subr.bf16.mxu0 0
    %1765 = vmatpush2.bf16.msra.mxu0 0
    %1766 = vmatprep.subr.bf16.mxu0 0
    %1767 = vmatpush2.bf16.msra.mxu0 0
    %1768 = vmatprep.subr.bf16.mxu0 0
    %1769 = vmatpush2.bf16.msra.mxu0 0
    %1770 = vmatprep.subr.bf16.mxu0 0
    %1771 = vmatpush2.bf16.msra.mxu0 0
    %1772 = vmatprep.subr.bf16.mxu0 0
    %1773 = vmatpush2.bf16.msra.mxu0 0
    %1774 = vmatprep.subr.bf16.mxu0 0
    %1775 = vmatpush2.bf16.msra.mxu0 0
    %1776 = vmatprep.subr.bf16.mxu0 0
    %1777 = vmatpush2.bf16.msra.mxu0 0
    %1778 = vmatprep.subr.bf16.mxu0 0
    %1779 = vmatpush2.bf16.msra.mxu0 0
    %1780 = vmatprep.mubr.bf16.mxu0 0
    %1781 = vmatmul.mubr.bf16.gmra.mxu0 %v1738
    %v1782 = vpop.f32.mrf.mxu0
    %v1783 = vadd.f32 0.0, %v1782
    %v1784 = vpop.f32.mrf.mxu0
    %v1785 = vadd.f32 0.0, %v1784
    %v1786 = vpop.f32.mrf.mxu0
    %v1787 = vpop.f32.mrf.mxu0
    %1788 = vdwg.mxu0
    %1789 = vmatprep.subr.bf16.mxu0 %v877
    %1790 = vmatpush1.bf16.msra.mxu0 %v876
    %1791 = vmatprep.subr.bf16.mxu0 %v873
    %1792 = vmatpush1.bf16.msra.mxu0 %v872
    %1793 = vmatprep.subr.bf16.mxu0 %v869
    %1794 = vmatpush1.bf16.msra.mxu0 %v868
    %1795 = vmatprep.subr.bf16.mxu0 %v865
    %1796 = vmatpush1.bf16.msra.mxu0 %v864
    %1797 = vmatprep.subr.bf16.mxu0 %v861
    %1798 = vmatpush1.bf16.msra.mxu0 %v860
    %1799 = vmatprep.subr.bf16.mxu0 %v857
    %1800 = vmatpush1.bf16.msra.mxu0 %v856
    %1801 = vmatprep.subr.bf16.mxu0 %v853
    %1802 = vmatpush1.bf16.msra.mxu0 %v852
    %1803 = vmatprep.subr.bf16.mxu0 %v849
    %1804 = vmatpush1.bf16.msra.mxu0 %v848
    %1805 = vmatprep.subr.bf16.mxu0 0
    %1806 = vmatpush2.bf16.msra.mxu0 0
    %1807 = vmatprep.subr.bf16.mxu0 0
    %1808 = vmatpush2.bf16.msra.mxu0 0
    %1809 = vmatprep.subr.bf16.mxu0 0
    %1810 = vmatpush2.bf16.msra.mxu0 0
    %1811 = vmatprep.subr.bf16.mxu0 0
    %1812 = vmatpush2.bf16.msra.mxu0 0
    %1813 = vmatprep.subr.bf16.mxu0 0
    %1814 = vmatpush2.bf16.msra.mxu0 0
    %1815 = vmatprep.subr.bf16.mxu0 0
    %1816 = vmatpush2.bf16.msra.mxu0 0
    %1817 = vmatprep.subr.bf16.mxu0 0
    %1818 = vmatpush2.bf16.msra.mxu0 0
    %1819 = vmatprep.subr.bf16.mxu0 0
    %1820 = vmatpush2.bf16.msra.mxu0 0
    %1821 = vmatprep.mubr.bf16.mxu0 0
    %1822 = vmatmul.mubr.bf16.gmra.mxu0 %v1738
    %v1823 = vpop.f32.mrf.mxu0
    %v1824 = vadd.f32 0.0, %v1823
    %v1825 = vpop.f32.mrf.mxu0
    %v1826 = vadd.f32 0.0, %v1825
    %v1827 = vpop.f32.mrf.mxu0
    %v1828 = vpop.f32.mrf.mxu0
    %1829 = vdwg.mxu0
    %v1830 = vadd.f32 %v1744, %v1783
    %v1831 = vadd.f32 %v1745, %v1785
    %v1832 = vadd.f32 %v1746, %v1824
    %v1833 = vadd.f32 %v1747, %v1826
    %v1834 = vxor.u32 %v1830, 2147483648
    %v1835 = vxor.u32 %v1831, 2147483648
    %v1836 = vxor.u32 %v1832, 2147483648
    %v1837 = vmul.f32 %v1834, 1.442695
    %v1838 = vpow.pop %v1837
    %v1839 = vmul.f32 %v1835, 1.442695
    %v1840 = vpow.pop %v1839
    %v1841 = vmul.f32 %v1836, 1.442695
    %v1842 = vpow.pop %v1841
    %v1843 = vadd.f32 %v1838, 1.0
    %v1844 = vadd.f32 %v1840, 1.0
    %v1845 = vadd.f32 %v1842, 1.0
    %v1846 = vrcp.pop %v1843
    %v1847 = vmul.f32 1.0, %v1846
    %v1848 = vrcp.pop %v1844
    %v1849 = vmul.f32 1.0, %v1848
    %v1850 = vrcp.pop %v1845
    %v1851 = vmul.f32 1.0, %v1850
    %v1852 = vtanh.pop %v1833
    %v1853 = vmul.f32 %v1849, %v1735
    %v1854 = vmul.f32 %v1847, %v1852
    %v1855 = vadd.f32 %v1853, %v1854
    %v1856 = vtanh.pop %v1855
    %v1857 = vmul.f32 %v1851, %v1856
    %v1858 = vpack.c.bf16 %v1857, %v1857
    %s1859 = scalar_lea.vmem [#allocation2], 28
    %1860 = vst [vmem:[%s1859] sm:$0xf] %v1858
    %v1861 = vld [vmem:[#allocation2] sm:$0xf]
    %v1862 = vld [vmem:[#allocation2 + $0x4] sm:$0xf]
    %v1863 = vld [vmem:[#allocation2 + $0x8] sm:$0xf]
    %v1864 = vld [vmem:[#allocation2 + $0xc] sm:$0xf]
    %v1865 = vld [vmem:[#allocation2 + $0x10] sm:$0xf]
    %v1866 = vld [vmem:[#allocation2 + $0x14] sm:$0xf]
    %v1867 = vld [vmem:[#allocation2 + $0x18] sm:$0xf]
    %v1868 = vld [vmem:[#allocation2 + $0x1c] sm:$0xf]
    %v1869 = vld [vmem:[%s4] sm:$0xf]
    %v1870 = vld [vmem:[%s4 + $0x4] sm:$0xf]
    %v1871 = vld [vmem:[%s4 + $0x8] sm:$0xf]
    %v1872 = vld [vmem:[%s4 + $0xc] sm:$0xf]
    %v1873 = vld [vmem:[%s4 + $0x10] sm:$0xf]
    %v1874 = vld [vmem:[%s4 + $0x14] sm:$0xf]
    %v1875 = vld [vmem:[%s4 + $0x18] sm:$0xf]
    %v1876 = vld [vmem:[%s4 + $0x1c] sm:$0xf]
    %v1877 = vld [vmem:[%s4 + $0x20] sm:$0xf]
    %v1878 = vld [vmem:[%s4 + $0x24] sm:$0xf]
    %v1879 = vld [vmem:[%s4 + $0x28] sm:$0xf]
    %v1880 = vld [vmem:[%s4 + $0x2c] sm:$0xf]
    %v1881 = vld [vmem:[%s4 + $0x30] sm:$0xf]
    %v1882 = vld [vmem:[%s4 + $0x34] sm:$0xf]
    %v1883 = vld [vmem:[%s4 + $0x38] sm:$0xf]
    %v1884 = vld [vmem:[%s4 + $0x3c] sm:$0xf]
    %v1885 = vld [vmem:[#allocation4] sm:$0x1]
    %v1887 = vlaneseq
    %v1888 = vshrl.u32 %v1887, 7
    %v1889 = vsub.s32 0, %v1888
    %v1890 = vrot.slane %v1885, %v1889
    %v1900 = vunpack.c.l.b16 %v1861
    %v1901 = vunpack.c.l.b16 %v1862
    %v1902 = vunpack.c.l.b16 %v1863
    %v1903 = vunpack.c.l.b16 %v1864
    %v1904 = vunpack.c.l.b16 %v1865
    %v1905 = vunpack.c.l.b16 %v1866
    %v1906 = vunpack.c.l.b16 %v1867
    %v1907 = vunpack.c.l.b16 %v1868
    %v1908 = vpack.c.b16 %v1901, %v1900
    %v1909 = vpack.c.b16 %v1903, %v1902
    %v1910 = vpack.c.b16 %v1905, %v1904
    %v1911 = vpack.c.b16 %v1907, %v1906
    %v1932 = vunpack.c.l.b16 %v1869
    %v1933 = vunpack.c.l.b16 %v1870
    %v1934 = vunpack.c.l.b16 %v1871
    %v1935 = vunpack.c.l.b16 %v1872
    %v1936 = vunpack.c.l.b16 %v1873
    %v1937 = vunpack.c.l.b16 %v1874
    %v1938 = vunpack.c.l.b16 %v1875
    %v1939 = vunpack.c.l.b16 %v1876
    %v1940 = vunpack.c.l.b16 %v1877
    %v1941 = vunpack.c.l.b16 %v1878
    %v1942 = vunpack.c.l.b16 %v1879
    %v1943 = vunpack.c.l.b16 %v1880
    %v1944 = vunpack.c.l.b16 %v1881
    %v1945 = vunpack.c.l.b16 %v1882
    %v1946 = vunpack.c.l.b16 %v1883
    %v1947 = vunpack.c.l.b16 %v1884
    %v1948 = vpack.c.b16 %v1933, %v1932
    %v1949 = vpack.c.b16 %v1935, %v1934
    %v1950 = vpack.c.b16 %v1937, %v1936
    %v1951 = vpack.c.b16 %v1939, %v1938
    %v1952 = vpack.c.b16 %v1941, %v1940
    %v1953 = vpack.c.b16 %v1943, %v1942
    %v1954 = vpack.c.b16 %v1945, %v1944
    %v1955 = vpack.c.b16 %v1947, %v1946
    %1964 = vmatprep.subr.bf16.mxu0 0
    %1965 = vmatpush1.bf16.msra.mxu0 %v1955
    %1966 = vmatprep.subr.bf16.mxu0 0
    %1967 = vmatpush1.bf16.msra.mxu0 %v1954
    %1968 = vmatprep.subr.bf16.mxu0 0
    %1969 = vmatpush1.bf16.msra.mxu0 %v1953
    %1970 = vmatprep.subr.bf16.mxu0 0
    %1971 = vmatpush1.bf16.msra.mxu0 %v1952
    %1972 = vmatprep.subr.bf16.mxu0 0
    %1973 = vmatpush1.bf16.msra.mxu0 %v1951
    %1974 = vmatprep.subr.bf16.mxu0 0
    %1975 = vmatpush1.bf16.msra.mxu0 %v1950
    %1976 = vmatprep.subr.bf16.mxu0 0
    %1977 = vmatpush1.bf16.msra.mxu0 %v1949
    %1978 = vmatprep.subr.bf16.mxu0 0
    %1979 = vmatpush1.bf16.msra.mxu0 %v1948
    %1980 = vmatprep.subr.bf16.mxu0 0
    %1981 = vmatpush2.bf16.msra.mxu0 0
    %1982 = vmatprep.subr.bf16.mxu0 0
    %1983 = vmatpush2.bf16.msra.mxu0 0
    %1984 = vmatprep.subr.bf16.mxu0 0
    %1985 = vmatpush2.bf16.msra.mxu0 0
    %1986 = vmatprep.subr.bf16.mxu0 0
    %1987 = vmatpush2.bf16.msra.mxu0 0
    %1988 = vmatprep.subr.bf16.mxu0 0
    %1989 = vmatpush2.bf16.msra.mxu0 0
    %1990 = vmatprep.subr.bf16.mxu0 0
    %1991 = vmatpush2.bf16.msra.mxu0 0
    %1992 = vmatprep.subr.bf16.mxu0 0
    %1993 = vmatpush2.bf16.msra.mxu0 0
    %1994 = vmatprep.subr.bf16.mxu0 0
    %1995 = vmatpush2.bf16.msra.mxu0 0
    %1996 = vmatprep.mubr.bf16.mxu0 0
    %1997 = vmatmul.mubr.bf16.gmra.mxu0 %v1908
    %v1998 = vpop.f32.mrf.mxu0
    %v1999 = vadd.f32 %v1890, %v1998
    %v2000 = vpop.f32.mrf.mxu0
    %v2001 = vpop.f32.mrf.mxu0
    %v2002 = vadd.f32 %v1890, %v2001
    %v2003 = vpop.f32.mrf.mxu0
    %2004 = vmatprep.mubr.bf16.mxu0 0
    %2005 = vmatmul.mubr.bf16.gmra.mxu0 %v1909
    %v2006 = vpop.f32.mrf.mxu0
    %v2007 = vadd.f32 %v1890, %v2006
    %v2008 = vpop.f32.mrf.mxu0
    %v2009 = vpop.f32.mrf.mxu0
    %v2010 = vadd.f32 %v1890, %v2009
    %v2011 = vpop.f32.mrf.mxu0
    %2012 = vmatprep.mubr.bf16.mxu0 0
    %2013 = vmatmul.mubr.bf16.gmra.mxu0 %v1910
    %v2014 = vpop.f32.mrf.mxu0
    %v2015 = vadd.f32 %v1890, %v2014
    %v2016 = vpop.f32.mrf.mxu0
    %v2017 = vpop.f32.mrf.mxu0
    %v2018 = vadd.f32 %v1890, %v2017
    %v2019 = vpop.f32.mrf.mxu0
    %2020 = vmatprep.mubr.bf16.mxu0 0
    %2021 = vmatmul.mubr.bf16.gmra.mxu0 %v1911
    %v2022 = vpop.f32.mrf.mxu0
    %v2023 = vadd.f32 %v1890, %v2022
    %v2024 = vpop.f32.mrf.mxu0
    %v2025 = vpop.f32.mrf.mxu0
    %v2026 = vadd.f32 %v1890, %v2025
    %v2027 = vpop.f32.mrf.mxu0
    %2028 = vdwg.mxu0
    %vm2029 = vcmask 7168
    %2030 = vst.msk [vmem:[%s6] sm:$0xff] %vm2029, %v1999
    %2031 = vst.msk [vmem:[%s6 + $0x8] sm:$0xff] %vm2029, %v2002
    %2032 = vst.msk [vmem:[%s6 + $0x10] sm:$0xff] %vm2029, %v2007
    %2033 = vst.msk [vmem:[%s6 + $0x18] sm:$0xff] %vm2029, %v2010
    %2034 = vst.msk [vmem:[%s6 + $0x20] sm:$0xff] %vm2029, %v2015
    %2035 = vst.msk [vmem:[%s6 + $0x28] sm:$0xff] %vm2029, %v2018
    %2036 = vst.msk [vmem:[%s6 + $0x30] sm:$0xff] %vm2029, %v2023
    %2037 = vst.msk [vmem:[%s6 + $0x38] sm:$0xff] %vm2029, %v2026
    // Predicated region
    $region30: #{model_forward.3} parent=1 // pred_check
      _
    $region31: #{model_forward.3} parent=1 // pred_check_branch
      %2039 = sbr.rel (0) target = $region33
    $region32: #{model_forward.3} parent=1 // pred_region
      _
    $region33: #{model_forward.3} parent=1 // pred_fallthru
      _
    // Predicated region
    $region34: #{model_forward.3} parent=1 // pred_check
      _
    $region35: #{model_forward.3} parent=1 // pred_check_branch
      %2041 = sbr.rel (0) target = $region37
    $region36: #{model_forward.3} parent=1 // pred_region
      _
    $region37: #{model_forward.3} parent=1 // pred_fallthru
      _
    %2042 = vsyncpa [#allocation6], 1

</llo_original>
